<compile_context>
chip_gen: v7x
topology: tpu7x:2x2x1
jax: 0.10.0
libtpu: 0.0.40
codegen_flags: <defaults>
</compile_context>

<pallas_src>
import math
from functools import partial

import jax
import jax.numpy as jnp
from jax import lax
from jax.experimental import pallas as pl
from jax.experimental.pallas import tpu as pltpu

MY_INF = 1000000000000.0
NEG_INF = -MY_INF


# ---------------------------------------------------------------------------
# In-kernel helpers
# ---------------------------------------------------------------------------
def _layer_norm(x, g, b, eps=1e-5):
    mu = jnp.mean(x, axis=-1, keepdims=True)
    var = jnp.mean((x - mu) ** 2, axis=-1, keepdims=True)
    return (x - mu) * lax.rsqrt(var + eps) * g + b


# ---------------------------------------------------------------------------
# Fused decoder kernel: BB batch rows per grid step, all layers via fori_loop.
# ---------------------------------------------------------------------------
def _decoder_kernel(x_ref, enc_ref, dst_pad_ref, src_pad_ref, pe_ref,
                    sa_wqkv_ref, sa_bqkv_ref, sa_wo_ref, sa_bo_ref,
                    ca_wq_ref, ca_bq_ref, ca_wkv_ref, ca_bkv_ref,
                    ca_wo_ref, ca_bo_ref,
                    ln1g_ref, ln1b_ref, ln2g_ref, ln2b_ref, ln3g_ref, ln3b_ref,
                    w1_ref, b1_ref, w2_ref, b2_ref,
                    o_ref, *, heads, n_layers):
    f32 = jnp.float32
    bf16 = jnp.bfloat16

    B, S, D = x_ref.shape                 # batch-block rows, dec seq, d_model
    Sk = enc_ref.shape[1]                 # encoder seq
    H = heads
    dk = D // H

    # ---- head relayout helpers -------------------------------------------
    # Only 2-D transposes / last-two-dim transposes + tile-aligned reshapes.
    def to_heads(t, seq):
        # (B*seq, D) f32 -> (H*B, seq, dk) head-major
        tt = t.T.reshape(H, dk, B * seq)          # lane split moved to rows
        th = jnp.swapaxes(tt, 1, 2)               # (H, B*seq, dk)
        return th.reshape(H * B, seq, dk)

    def from_heads(t, seq):
        # (H*B, seq, dk) -> (B*seq, D)  (concat heads back onto lanes)
        tt = jnp.swapaxes(t.reshape(H, B * seq, dk), 1, 2)   # (H, dk, B*seq)
        return tt.reshape(D, B * seq).T

    def mha(q, k, v, add_mask, skv):
        # q: (B*S, D) f32; k/v: (B*skv, D) f32
        # add_mask: additive f32 mask broadcastable to (1, B, S, skv)
        qh = to_heads(q, S).astype(bf16)
        kh = to_heads(k, skv).astype(bf16)
        vh = to_heads(v, skv).astype(bf16)
        s = jnp.einsum('nqe,nke->nqk', qh, kh,
                       preferred_element_type=f32)            # (H*B, S, skv)
        s = s.reshape(H, B, S, skv) + add_mask                 # single VALU add
        m = jnp.max(s, axis=-1, keepdims=True)
        p = jnp.exp(s - m)
        denom = jnp.sum(p, axis=-1, keepdims=True)
        p = (p * pl.reciprocal(denom, approx=True)).reshape(H * B, S, skv)
        ctx = jnp.einsum('nqk,nke->nqe', p.astype(bf16), vh,
                         preferred_element_type=f32)           # (H*B, S, dk)
        return from_heads(ctx, S)                              # (B*S, D) f32

    # ---- positional encoding: x * sqrt(D) + pe (dropout == identity) -------
    x = x_ref[...].astype(f32) * math.sqrt(float(D)) + pe_ref[...].astype(f32)
    x = x.reshape(B * S, D)                                    # (B*S, D) f32
    enc_b = enc_ref[...].astype(bf16).reshape(B * Sk, D)       # bf16 once

    # ---- additive masks, built once and reused by every layer ---------------
    row = lax.broadcasted_iota(jnp.int32, (S, S), 0)
    col = lax.broadcasted_iota(jnp.int32, (S, S), 1)
    causal = col > row                                         # look-ahead mask
    dst_pad = dst_pad_ref[...] > 0.5                           # (B, 1, S)
    dst_add = jnp.where(jnp.logical_or(causal[None, :, :], dst_pad),
                        f32(NEG_INF), f32(0.0))[None]          # (1, B, S, S)
    src_add = jnp.where(src_pad_ref[...] > 0.5,
                        f32(NEG_INF), f32(0.0))[None]          # (1, B, 1, Sk)

    # ---- decoder layers ------------------------------------------------------
    def layer(l, x):
        # masked self-attention (1/sqrt(dk) is folded into the Q weights)
        xb = x.astype(bf16)
        qkv = jnp.dot(xb, sa_wqkv_ref[l],
                      preferred_element_type=f32) + sa_bqkv_ref[l]   # (B*S, 3D)
        att = mha(qkv[:, 0:D], qkv[:, D:2 * D], qkv[:, 2 * D:3 * D], dst_add, S)
        att = jnp.dot(att.astype(bf16), sa_wo_ref[l],
                      preferred_element_type=f32) + sa_bo_ref[l]
        x = _layer_norm(x + att, ln1g_ref[l], ln1b_ref[l])

        # encoder-decoder cross-attention
        xb = x.astype(bf16)
        qc = jnp.dot(xb, ca_wq_ref[l],
                     preferred_element_type=f32) + ca_bq_ref[l]       # (B*S, D)
        kvc = jnp.dot(enc_b, ca_wkv_ref[l],
                      preferred_element_type=f32) + ca_bkv_ref[l]     # (B*Sk, 2D)
        att = mha(qc, kvc[:, 0:D], kvc[:, D:2 * D], src_add, Sk)
        att = jnp.dot(att.astype(bf16), ca_wo_ref[l],
                      preferred_element_type=f32) + ca_bo_ref[l]
        x = _layer_norm(x + att, ln2g_ref[l], ln2b_ref[l])

        # feed-forward
        xb = x.astype(bf16)
        h = jnp.dot(xb, w1_ref[l], preferred_element_type=f32) + b1_ref[l]
        h = jnp.maximum(h, 0.0).astype(bf16)
        h = jnp.dot(h, w2_ref[l], preferred_element_type=f32) + b2_ref[l]
        x = _layer_norm(x + h, ln3g_ref[l], ln3b_ref[l])
        return x

    x = lax.fori_loop(0, n_layers, layer, x)

    o_ref[...] = x.reshape(B, S, D).astype(o_ref.dtype)


# ---------------------------------------------------------------------------
# Parameter packing (JAX side): stack per-layer weights, fuse QKV / KV, fold
# the attention scale into the Q projection.
# ---------------------------------------------------------------------------
def _stack_params(layer_params, heads):
    D = layer_params[0]["sa_wq"].shape[0]
    dk = D // heads
    inv = 1.0 / math.sqrt(dk)
    bf16, f32 = jnp.bfloat16, jnp.float32

    def stk(fn):
        return jnp.stack([fn(p) for p in layer_params], axis=0)

    # NOTE: weights here are stored (in, out).  Real torch nn.Linear weights
    # are (out, in) and must be transposed before packing.
    return dict(
        sa_wqkv=stk(lambda p: jnp.concatenate(
            [p["sa_wq"] * inv, p["sa_wk"], p["sa_wv"]], axis=1)).astype(bf16),
        sa_bqkv=stk(lambda p: jnp.concatenate(
            [p["sa_bq"] * inv, p["sa_bk"], p["sa_bv"]], axis=0)[None, :]).astype(f32),
        sa_wo=stk(lambda p: p["sa_wo"]).astype(bf16),
        sa_bo=stk(lambda p: p["sa_bo"][None, :]).astype(f32),
        ca_wq=stk(lambda p: p["ca_wq"] * inv).astype(bf16),
        ca_bq=stk(lambda p: (p["ca_bq"] * inv)[None, :]).astype(f32),
        ca_wkv=stk(lambda p: jnp.concatenate(
            [p["ca_wk"], p["ca_wv"]], axis=1)).astype(bf16),
        ca_bkv=stk(lambda p: jnp.concatenate(
            [p["ca_bk"], p["ca_bv"]], axis=0)[None, :]).astype(f32),
        ca_wo=stk(lambda p: p["ca_wo"]).astype(bf16),
        ca_bo=stk(lambda p: p["ca_bo"][None, :]).astype(f32),
        ln1g=stk(lambda p: p["ln1g"][None, :]).astype(f32),
        ln1b=stk(lambda p: p["ln1b"][None, :]).astype(f32),
        ln2g=stk(lambda p: p["ln2g"][None, :]).astype(f32),
        ln2b=stk(lambda p: p["ln2b"][None, :]).astype(f32),
        ln3g=stk(lambda p: p["ln3g"][None, :]).astype(f32),
        ln3b=stk(lambda p: p["ln3b"][None, :]).astype(f32),
        w1=stk(lambda p: p["w1"]).astype(bf16),
        b1=stk(lambda p: p["b1"][None, :]).astype(f32),
        w2=stk(lambda p: p["w2"]).astype(bf16),
        b2=stk(lambda p: p["b2"][None, :]).astype(f32),
    )


def _pick_batch_block(n, s):
    # Fold batch rows so a grid step sees ~256 matmul rows (and at least the
    # 16-row bf16 sublane tile) while still dividing the batch.
    bb = max(1, min(n, 256 // max(s, 1)))
    while n % bb:
        bb -= 1
    return bb


def decoder_forward(tokens, encoder_kv, dst_pad, src_pad,
                    emb_table, pe_table, layer_params, heads,
                    batch_block=None):
    N, S = tokens.shape
    D = emb_table.shape[1]
    Sk = encoder_kv.shape[1]
    L = len(layer_params)
    F = layer_params[0]["w1"].shape[1]

    if batch_block is None:
        batch_block = _pick_batch_block(N, S)
    assert N % batch_block == 0
    BB = batch_block

    # TODO(synk): embedding gather left in plain JAX (HBM gather, not a Pallas hot path).
    x = jnp.take(emb_table, tokens, axis=0)          # (N, S, D)
    pe = pe_table[:, :S, :]                          # (1, S, D)

    pk = _stack_params(layer_params, heads)

    def full(shape):
        nd = len(shape)
        return pl.BlockSpec(shape, lambda n_, _nd=nd: (0,) * _nd)

    in_specs = [
        pl.BlockSpec((BB, S, D), lambda n_: (n_, 0, 0)),    # x (embeddings)
        pl.BlockSpec((BB, Sk, D), lambda n_: (n_, 0, 0)),   # encoder_kv
        pl.BlockSpec((BB, 1, S), lambda n_: (n_, 0, 0)),    # dst key-pad vector
        pl.BlockSpec((BB, 1, Sk), lambda n_: (n_, 0, 0)),   # src key-pad vector
        pl.BlockSpec((1, S, D), lambda n_: (0, 0, 0)),      # positional encoding
        full((L, D, 3 * D)), full((L, 1, 3 * D)),           # self-attn fused QKV
        full((L, D, D)), full((L, 1, D)),                   # self-attn out proj
        full((L, D, D)), full((L, 1, D)),                   # cross-attn Q
        full((L, D, 2 * D)), full((L, 1, 2 * D)),           # cross-attn fused KV
        full((L, D, D)), full((L, 1, D)),                   # cross-attn out proj
        full((L, 1, D)), full((L, 1, D)),                   # ln1 gamma/beta
        full((L, 1, D)), full((L, 1, D)),                   # ln2 gamma/beta
        full((L, 1, D)), full((L, 1, D)),                   # ln3 gamma/beta
        full((L, D, F)), full((L, 1, F)),                   # ffn w1/b1
        full((L, F, D)), full((L, 1, D)),                   # ffn w2/b2
    ]

    args = [x, encoder_kv, dst_pad, src_pad, pe,
            pk["sa_wqkv"], pk["sa_bqkv"], pk["sa_wo"], pk["sa_bo"],
            pk["ca_wq"], pk["ca_bq"], pk["ca_wkv"], pk["ca_bkv"],
            pk["ca_wo"], pk["ca_bo"],
            pk["ln1g"], pk["ln1b"], pk["ln2g"], pk["ln2b"],
            pk["ln3g"], pk["ln3b"],
            pk["w1"], pk["b1"], pk["w2"], pk["b2"]]

    # Explicit VMEM budget: stacked weights (double-buffered by default) +
    # activation blocks + slack, raised above the 16/32 MiB default and capped
    # at v7x's 64 MiB physical VMEM.
    weight_bytes = sum(int(v.size) * v.dtype.itemsize for v in pk.values())
    act_bytes = (BB * S * D + BB * Sk * D) * 4
    vmem_limit = int(min(max(2 * weight_bytes + 8 * act_bytes + (8 << 20),
                             32 << 20), 64 << 20))

    return pl.pallas_call(
        partial(_decoder_kernel, heads=heads, n_layers=L),
        out_shape=jax.ShapeDtypeStruct((N, S, D), jnp.float32),
        grid=(N // BB,),
        in_specs=in_specs,
        out_specs=pl.BlockSpec((BB, S, D), lambda n_: (n_, 0, 0)),
        compiler_params=pltpu.CompilerParams(
            dimension_semantics=("parallel",),     # batch blocks across TCs (v7x)
            vmem_limit_bytes=vmem_limit),
    )(*args)


# ---------------------------------------------------------------------------
# Parameter / buffer setup (deterministic, synthetic)
# ---------------------------------------------------------------------------
def make_pe_table(d_model, max_seq_len):
    # matches PositionalEncoding.__init__ (torch.meshgrid default = 'ij')
    i_seq = jnp.linspace(0.0, max_seq_len - 1, max_seq_len)
    j_seq = jnp.linspace(0.0, d_model - 2, d_model // 2)
    pos, two_i = jnp.meshgrid(i_seq, j_seq, indexing="ij")
    pe_2i = jnp.sin(pos / 10000 ** (two_i / d_model))
    pe_2i_1 = jnp.cos(pos / 10000 ** (two_i / d_model))
    pe = jnp.stack([pe_2i, pe_2i_1], axis=-1).reshape(1, max_seq_len, d_model)
    return pe.astype(jnp.float32)


def init_layer_params(key, d_model, d_ff):
    ks = jax.random.split(key, 14)
    s = 0.02
    D, F = d_model, d_ff

    def w(k, shape):
        return s * jax.random.normal(k, shape, jnp.float32)

    return {
        # self-attention (weights stored pre-transposed: (in, out))
        "sa_wq": w(ks[0], (D, D)), "sa_bq": w(ks[1], (D,)),
        "sa_wk": w(ks[2], (D, D)), "sa_bk": jnp.zeros((D,), jnp.float32),
        "sa_wv": w(ks[3], (D, D)), "sa_bv": jnp.zeros((D,), jnp.float32),
        "sa_wo": w(ks[4], (D, D)), "sa_bo": jnp.zeros((D,), jnp.float32),
        # encoder-decoder cross-attention
        "ca_wq": w(ks[5], (D, D)), "ca_bq": jnp.zeros((D,), jnp.float32),
        "ca_wk": w(ks[6], (D, D)), "ca_bk": jnp.zeros((D,), jnp.float32),
        "ca_wv": w(ks[7], (D, D)), "ca_bv": jnp.zeros((D,), jnp.float32),
        "ca_wo": w(ks[8], (D, D)), "ca_bo": jnp.zeros((D,), jnp.float32),
        # layer norms
        "ln1g": jnp.ones((D,), jnp.float32), "ln1b": jnp.zeros((D,), jnp.float32),
        "ln2g": jnp.ones((D,), jnp.float32), "ln2b": jnp.zeros((D,), jnp.float32),
        "ln3g": jnp.ones((D,), jnp.float32), "ln3b": jnp.zeros((D,), jnp.float32),
        # feed-forward
        "w1": w(ks[9], (D, F)), "b1": w(ks[10], (F,)),
        "w2": w(ks[11], (F, D)), "b2": w(ks[12], (D,)),
    }


# ---------------------------------------------------------------------------
if __name__ == "__main__":
    vocab_size = 50
    pad_idx = 0
    d_model = 32
    d_ff = 64
    n_layers = 2
    heads = 4
    max_seq_len = 16
    N, S_dst, S_src = 2, 8, 8

    key = jax.random.PRNGKey(0)
    k_emb, k_tok, k_enc, *k_layers = jax.random.split(key, 3 + n_layers)

    # embedding table with padding_idx row zeroed (nn.Embedding(padding_idx=...))
    emb_table = 0.02 * jax.random.normal(k_emb, (vocab_size, d_model), jnp.float32)
    emb_table = emb_table.at[pad_idx].set(0.0)

    pe_table = make_pe_table(d_model, max_seq_len)
    layer_params = [init_layer_params(k, d_model, d_ff) for k in k_layers]

    tokens = jax.random.randint(k_tok, (N, S_dst), 1, vocab_size, dtype=jnp.int32)
    tokens = tokens.at[0, -2:].set(pad_idx)          # some target-side padding

    encoder_kv = 0.1 * jax.random.normal(k_enc, (N, S_src, d_model), jnp.float32)

    # dst_mask = causal (built in-kernel) OR dst key padding;
    # src_dst_mask = src key padding broadcast over decoder queries.
    dst_pad = (tokens == pad_idx).astype(jnp.float32)[:, None, :]     # (N,1,S_dst)
    src_pad = jnp.zeros((N, 1, S_src), jnp.float32).at[1, 0, -1].set(1.0)

    out = decoder_forward(tokens, encoder_kv, dst_pad, src_pad,
                          emb_table, pe_table, layer_params, heads)
    out = jax.block_until_ready(out)
    assert out.shape == (N, S_dst, d_model)
    assert bool(jnp.all(jnp.isfinite(out)))
    print("KERNEL_OK")
</pallas_src>

<mosaic_0001>
module attributes {stable_mosaic.version = 11 : i64} {
  func.func @_decoder_kernel(%arg0: i32, %arg1: memref<2x8x32xf32, #tpu.memory_space<vmem>>, %arg2: memref<2x8x32xf32, #tpu.memory_space<vmem>>, %arg3: memref<2x1x8xf32, #tpu.memory_space<vmem>>, %arg4: memref<2x1x8xf32, #tpu.memory_space<vmem>>, %arg5: memref<1x8x32xf32, #tpu.memory_space<vmem>>, %arg6: memref<2x32x96xbf16, #tpu.memory_space<vmem>>, %arg7: memref<2x1x96xf32, #tpu.memory_space<vmem>>, %arg8: memref<2x32x32xbf16, #tpu.memory_space<vmem>>, %arg9: memref<2x1x32xf32, #tpu.memory_space<vmem>>, %arg10: memref<2x32x32xbf16, #tpu.memory_space<vmem>>, %arg11: memref<2x1x32xf32, #tpu.memory_space<vmem>>, %arg12: memref<2x32x64xbf16, #tpu.memory_space<vmem>>, %arg13: memref<2x1x64xf32, #tpu.memory_space<vmem>>, %arg14: memref<2x32x32xbf16, #tpu.memory_space<vmem>>, %arg15: memref<2x1x32xf32, #tpu.memory_space<vmem>>, %arg16: memref<2x1x32xf32, #tpu.memory_space<vmem>>, %arg17: memref<2x1x32xf32, #tpu.memory_space<vmem>>, %arg18: memref<2x1x32xf32, #tpu.memory_space<vmem>>, %arg19: memref<2x1x32xf32, #tpu.memory_space<vmem>>, %arg20: memref<2x1x32xf32, #tpu.memory_space<vmem>>, %arg21: memref<2x1x32xf32, #tpu.memory_space<vmem>>, %arg22: memref<2x32x64xbf16, #tpu.memory_space<vmem>>, %arg23: memref<2x1x64xf32, #tpu.memory_space<vmem>>, %arg24: memref<2x64x32xbf16, #tpu.memory_space<vmem>>, %arg25: memref<2x1x32xf32, #tpu.memory_space<vmem>>, %arg26: memref<2x8x32xf32, #tpu.memory_space<vmem>>) attributes {dimension_semantics = [#tpu.dimension_semantics<parallel>], iteration_bounds = array<i64: 1>, scalar_prefetch = 0 : i64, scratch_operands = 0 : i64, tpu.core_type = #tpu.core_type<tc>, window_params = [{transform_indices = @transform_0, window_bounds = array<i64: 2, 8, 32>}, {transform_indices = @transform_1, window_bounds = array<i64: 2, 8, 32>}, {transform_indices = @transform_2, window_bounds = array<i64: 2, 1, 8>}, {transform_indices = @transform_3, window_bounds = array<i64: 2, 1, 8>}, {pipeline_mode = #tpu.pipeline_mode<synchronous>, transform_indices = @transform_4, window_bounds = array<i64: 1, 8, 32>}, {pipeline_mode = #tpu.pipeline_mode<synchronous>, transform_indices = @transform_5, window_bounds = array<i64: 2, 32, 96>}, {pipeline_mode = #tpu.pipeline_mode<synchronous>, transform_indices = @transform_6, window_bounds = array<i64: 2, 1, 96>}, {pipeline_mode = #tpu.pipeline_mode<synchronous>, transform_indices = @transform_7, window_bounds = array<i64: 2, 32, 32>}, {pipeline_mode = #tpu.pipeline_mode<synchronous>, transform_indices = @transform_8, window_bounds = array<i64: 2, 1, 32>}, {pipeline_mode = #tpu.pipeline_mode<synchronous>, transform_indices = @transform_9, window_bounds = array<i64: 2, 32, 32>}, {pipeline_mode = #tpu.pipeline_mode<synchronous>, transform_indices = @transform_10, window_bounds = array<i64: 2, 1, 32>}, {pipeline_mode = #tpu.pipeline_mode<synchronous>, transform_indices = @transform_11, window_bounds = array<i64: 2, 32, 64>}, {pipeline_mode = #tpu.pipeline_mode<synchronous>, transform_indices = @transform_12, window_bounds = array<i64: 2, 1, 64>}, {pipeline_mode = #tpu.pipeline_mode<synchronous>, transform_indices = @transform_13, window_bounds = array<i64: 2, 32, 32>}, {pipeline_mode = #tpu.pipeline_mode<synchronous>, transform_indices = @transform_14, window_bounds = array<i64: 2, 1, 32>}, {pipeline_mode = #tpu.pipeline_mode<synchronous>, transform_indices = @transform_15, window_bounds = array<i64: 2, 1, 32>}, {pipeline_mode = #tpu.pipeline_mode<synchronous>, transform_indices = @transform_16, window_bounds = array<i64: 2, 1, 32>}, {pipeline_mode = #tpu.pipeline_mode<synchronous>, transform_indices = @transform_17, window_bounds = array<i64: 2, 1, 32>}, {pipeline_mode = #tpu.pipeline_mode<synchronous>, transform_indices = @transform_18, window_bounds = array<i64: 2, 1, 32>}, {pipeline_mode = #tpu.pipeline_mode<synchronous>, transform_indices = @transform_19, window_bounds = array<i64: 2, 1, 32>}, {pipeline_mode = #tpu.pipeline_mode<synchronous>, transform_indices = @transform_20, window_bounds = array<i64: 2, 1, 32>}, {pipeline_mode = #tpu.pipeline_mode<synchronous>, transform_indices = @transform_21, window_bounds = array<i64: 2, 32, 64>}, {pipeline_mode = #tpu.pipeline_mode<synchronous>, transform_indices = @transform_22, window_bounds = array<i64: 2, 1, 64>}, {pipeline_mode = #tpu.pipeline_mode<synchronous>, transform_indices = @transform_23, window_bounds = array<i64: 2, 64, 32>}, {pipeline_mode = #tpu.pipeline_mode<synchronous>, transform_indices = @transform_24, window_bounds = array<i64: 2, 1, 32>}, {transform_indices = @transform_25, window_bounds = array<i64: 2, 8, 32>}]} {
    %c0 = arith.constant 0 : index
    %c0_0 = arith.constant 0 : index
    %c0_1 = arith.constant 0 : index
    %0 = vector.load %arg1[%c0, %c0_0, %c0_1] : memref<2x8x32xf32, #tpu.memory_space<vmem>>, vector<2x8x32xf32>
    %cst = arith.constant 5.65685415 : f32
    %1 = vector.broadcast %cst : f32 to vector<2x8x32xf32>
    %2 = arith.mulf %0, %1 : vector<2x8x32xf32>
    %c0_2 = arith.constant 0 : index
    %c0_3 = arith.constant 0 : index
    %c0_4 = arith.constant 0 : index
    %3 = vector.load %arg5[%c0_2, %c0_3, %c0_4] : memref<1x8x32xf32, #tpu.memory_space<vmem>>, vector<1x8x32xf32>
    %4 = vector.broadcast %3 : vector<1x8x32xf32> to vector<2x8x32xf32>
    %5 = arith.addf %2, %4 : vector<2x8x32xf32>
    %6 = vector.shape_cast %5 : vector<2x8x32xf32> to vector<16x32xf32>
    %c0_5 = arith.constant 0 : index
    %c0_6 = arith.constant 0 : index
    %c0_7 = arith.constant 0 : index
    %7 = vector.load %arg2[%c0_5, %c0_6, %c0_7] : memref<2x8x32xf32, #tpu.memory_space<vmem>>, vector<2x8x32xf32>
    %8 = arith.truncf %7 : vector<2x8x32xf32> to vector<2x8x32xbf16>
    %9 = vector.shape_cast %8 : vector<2x8x32xbf16> to vector<16x32xbf16>
    %10 = tpu.iota {dimensions = array<i32: 0>} : vector<8x8xi32>
    %11 = tpu.iota {dimensions = array<i32: 1>} : vector<8x8xi32>
    %12 = arith.cmpi sgt, %11, %10 : vector<8x8xi32>
    %c0_8 = arith.constant 0 : index
    %c0_9 = arith.constant 0 : index
    %c0_10 = arith.constant 0 : index
    %13 = vector.load %arg3[%c0_8, %c0_9, %c0_10] : memref<2x1x8xf32, #tpu.memory_space<vmem>>, vector<2x1x8xf32>
    %cst_11 = arith.constant 5.000000e-01 : f32
    %14 = vector.broadcast %cst_11 : f32 to vector<2x1x8xf32>
    %15 = arith.cmpf ogt, %13, %14 : vector<2x1x8xf32>
    %16 = vector.shape_cast %12 : vector<8x8xi1> to vector<1x8x8xi1>
    %17 = vector.broadcast %16 : vector<1x8x8xi1> to vector<2x8x8xi1>
    %18 = vector.broadcast %15 : vector<2x1x8xi1> to vector<2x8x8xi1>
    %19 = arith.ori %17, %18 : vector<2x8x8xi1>
    %cst_12 = arith.constant -9.99999995E+11 : f32
    %cst_13 = arith.constant 0.000000e+00 : f32
    %20 = vector.broadcast %cst_12 : f32 to vector<2x8x8xf32>
    %21 = vector.broadcast %cst_13 : f32 to vector<2x8x8xf32>
    %22 = arith.select %19, %20, %21 : vector<2x8x8xi1>, vector<2x8x8xf32>
    %23 = vector.shape_cast %22 : vector<2x8x8xf32> to vector<1x2x8x8xf32>
    %c0_14 = arith.constant 0 : index
    %c0_15 = arith.constant 0 : index
    %c0_16 = arith.constant 0 : index
    %24 = vector.load %arg4[%c0_14, %c0_15, %c0_16] : memref<2x1x8xf32, #tpu.memory_space<vmem>>, vector<2x1x8xf32>
    %cst_17 = arith.constant 5.000000e-01 : f32
    %25 = vector.broadcast %cst_17 : f32 to vector<2x1x8xf32>
    %26 = arith.cmpf ogt, %24, %25 : vector<2x1x8xf32>
    %cst_18 = arith.constant -9.99999995E+11 : f32
    %cst_19 = arith.constant 0.000000e+00 : f32
    %27 = vector.broadcast %cst_18 : f32 to vector<2x1x8xf32>
    %28 = vector.broadcast %cst_19 : f32 to vector<2x1x8xf32>
    %29 = arith.select %26, %27, %28 : vector<2x1x8xi1>, vector<2x1x8xf32>
    %30 = vector.shape_cast %29 : vector<2x1x8xf32> to vector<1x2x1x8xf32>
    %c0_i32 = arith.constant 0 : i32
    %c2_i32 = arith.constant 2 : i32
    %31 = arith.addi %c0_i32, %c2_i32 : i32
    %c1_i32 = arith.constant 1 : i32
    %32 = scf.for %arg27 = %c0_i32 to %31 step %c1_i32 iter_args(%arg28 = %6) -> (vector<16x32xf32>)  : i32 {
      %35 = arith.truncf %arg28 : vector<16x32xf32> to vector<16x32xbf16>
      %36 = arith.index_cast %arg27 : i32 to index
      %c0_24 = arith.constant 0 : index
      %c0_25 = arith.constant 0 : index
      %37 = vector.load %arg6[%36, %c0_24, %c0_25] : memref<2x32x96xbf16, #tpu.memory_space<vmem>>, vector<1x32x96xbf16>
      %38 = vector.shape_cast %37 : vector<1x32x96xbf16> to vector<32x96xbf16>
      %cst_26 = arith.constant dense<0.000000e+00> : vector<16x96xf32>
      %39 = tpu.matmul %35, %38, %cst_26 {dimension_numbers = #tpu.dot_dimension_numbers<[1], [0], [0], [1], [0, 0, 1, 1], [], []>} : vector<16x32xbf16>, vector<32x96xbf16>, vector<16x96xf32> -> vector<16x96xf32>
      %40 = arith.index_cast %arg27 : i32 to index
      %c0_27 = arith.constant 0 : index
      %c0_28 = arith.constant 0 : index
      %41 = vector.load %arg7[%40, %c0_27, %c0_28] : memref<2x1x96xf32, #tpu.memory_space<vmem>>, vector<1x1x96xf32>
      %42 = vector.shape_cast %41 : vector<1x1x96xf32> to vector<1x96xf32>
      %43 = vector.broadcast %42 : vector<1x96xf32> to vector<16x96xf32>
      %44 = arith.addf %39, %43 : vector<16x96xf32>
      %45 = vector.extract_strided_slice %44 {offsets = [0, 0], sizes = [16, 32], strides = [1, 1]} : vector<16x96xf32> to vector<16x32xf32>
      %46 = vector.extract_strided_slice %44 {offsets = [0, 32], sizes = [16, 32], strides = [1, 1]} : vector<16x96xf32> to vector<16x32xf32>
      %47 = vector.extract_strided_slice %44 {offsets = [0, 64], sizes = [16, 32], strides = [1, 1]} : vector<16x96xf32> to vector<16x32xf32>
      %48 = tpu.transpose %45, [1, 0] : vector<16x32xf32> -> vector<32x16xf32>
      %49 = vector.shape_cast %48 : vector<32x16xf32> to vector<4x8x16xf32>
      %50 = tpu.transpose %49, [0, 2, 1] : vector<4x8x16xf32> -> vector<4x16x8xf32>
      %51 = vector.shape_cast %50 : vector<4x16x8xf32> to vector<8x8x8xf32>
      %52 = arith.truncf %51 : vector<8x8x8xf32> to vector<8x8x8xbf16>
      %53 = tpu.transpose %46, [1, 0] : vector<16x32xf32> -> vector<32x16xf32>
      %54 = vector.shape_cast %53 : vector<32x16xf32> to vector<4x8x16xf32>
      %55 = tpu.transpose %54, [0, 2, 1] : vector<4x8x16xf32> -> vector<4x16x8xf32>
      %56 = vector.shape_cast %55 : vector<4x16x8xf32> to vector<8x8x8xf32>
      %57 = arith.truncf %56 : vector<8x8x8xf32> to vector<8x8x8xbf16>
      %58 = tpu.transpose %47, [1, 0] : vector<16x32xf32> -> vector<32x16xf32>
      %59 = vector.shape_cast %58 : vector<32x16xf32> to vector<4x8x16xf32>
      %60 = tpu.transpose %59, [0, 2, 1] : vector<4x8x16xf32> -> vector<4x16x8xf32>
      %61 = vector.shape_cast %60 : vector<4x16x8xf32> to vector<8x8x8xf32>
      %62 = arith.truncf %61 : vector<8x8x8xf32> to vector<8x8x8xbf16>
      "tpu.trace_start"() <{level = 10 : i32, message = "nqe,nke->nqk"}> : () -> ()
      %cst_29 = arith.constant dense<0.000000e+00> : vector<8x8x8xf32>
      %63 = tpu.matmul %52, %57, %cst_29 {dimension_numbers = #tpu.dot_dimension_numbers<[2], [2], [1], [1], [0, 0, 0, 1, 1, 1], [0], [0]>} : vector<8x8x8xbf16>, vector<8x8x8xbf16>, vector<8x8x8xf32> -> vector<8x8x8xf32>
      "tpu.trace_stop"() : () -> ()
      %64 = vector.shape_cast %63 : vector<8x8x8xf32> to vector<4x2x8x8xf32>
      %65 = vector.broadcast %23 : vector<1x2x8x8xf32> to vector<4x2x8x8xf32>
      %66 = arith.addf %64, %65 : vector<4x2x8x8xf32>
      %cst_30 = arith.constant dense<0xFF800000> : vector<4x2x8xf32>
      %67 = vector.multi_reduction <maximumf>, %66, %cst_30 [3] : vector<4x2x8x8xf32> to vector<4x2x8xf32>
      %68 = vector.shape_cast %67 : vector<4x2x8xf32> to vector<4x2x8x1xf32>
      %69 = vector.broadcast %68 : vector<4x2x8x1xf32> to vector<4x2x8x8xf32>
      %70 = arith.subf %66, %69 : vector<4x2x8x8xf32>
      %71 = math.exp %70 : vector<4x2x8x8xf32>
      %cst_31 = arith.constant dense<0.000000e+00> : vector<4x2x8xf32>
      %72 = vector.multi_reduction <add>, %71, %cst_31 [3] : vector<4x2x8x8xf32> to vector<4x2x8xf32>
      %73 = vector.shape_cast %72 : vector<4x2x8xf32> to vector<4x2x8x1xf32>
      %74 = tpu.reciprocal %73 {approx = true} : vector<4x2x8x1xf32> -> vector<4x2x8x1xf32>
      %75 = vector.broadcast %74 : vector<4x2x8x1xf32> to vector<4x2x8x8xf32>
      %76 = arith.mulf %71, %75 : vector<4x2x8x8xf32>
      %77 = vector.shape_cast %76 : vector<4x2x8x8xf32> to vector<8x8x8xf32>
      %78 = arith.truncf %77 : vector<8x8x8xf32> to vector<8x8x8xbf16>
      "tpu.trace_start"() <{level = 10 : i32, message = "nqk,nke->nqe"}> : () -> ()
      %cst_32 = arith.constant dense<0.000000e+00> : vector<8x8x8xf32>
      %79 = tpu.matmul %78, %62, %cst_32 {dimension_numbers = #tpu.dot_dimension_numbers<[2], [1], [1], [2], [0, 0, 0, 1, 1, 2], [0], [0]>} : vector<8x8x8xbf16>, vector<8x8x8xbf16>, vector<8x8x8xf32> -> vector<8x8x8xf32>
      "tpu.trace_stop"() : () -> ()
      %80 = vector.shape_cast %79 : vector<8x8x8xf32> to vector<4x16x8xf32>
      %81 = tpu.transpose %80, [0, 2, 1] : vector<4x16x8xf32> -> vector<4x8x16xf32>
      %82 = vector.shape_cast %81 : vector<4x8x16xf32> to vector<32x16xf32>
      %83 = tpu.transpose %82, [1, 0] : vector<32x16xf32> -> vector<16x32xf32>
      %84 = arith.truncf %83 : vector<16x32xf32> to vector<16x32xbf16>
      %85 = arith.index_cast %arg27 : i32 to index
      %c0_33 = arith.constant 0 : index
      %c0_34 = arith.constant 0 : index
      %86 = vector.load %arg8[%85, %c0_33, %c0_34] : memref<2x32x32xbf16, #tpu.memory_space<vmem>>, vector<1x32x32xbf16>
      %87 = vector.shape_cast %86 : vector<1x32x32xbf16> to vector<32x32xbf16>
      %cst_35 = arith.constant dense<0.000000e+00> : vector<16x32xf32>
      %88 = tpu.matmul %84, %87, %cst_35 {dimension_numbers = #tpu.dot_dimension_numbers<[1], [0], [0], [1], [0, 0, 1, 1], [], []>} : vector<16x32xbf16>, vector<32x32xbf16>, vector<16x32xf32> -> vector<16x32xf32>
      %89 = arith.index_cast %arg27 : i32 to index
      %c0_36 = arith.constant 0 : index
      %c0_37 = arith.constant 0 : index
      %90 = vector.load %arg9[%89, %c0_36, %c0_37] : memref<2x1x32xf32, #tpu.memory_space<vmem>>, vector<1x1x32xf32>
      %91 = vector.shape_cast %90 : vector<1x1x32xf32> to vector<1x32xf32>
      %92 = vector.broadcast %91 : vector<1x32xf32> to vector<16x32xf32>
      %93 = arith.addf %88, %92 : vector<16x32xf32>
      %94 = arith.addf %arg28, %93 : vector<16x32xf32>
      %95 = arith.index_cast %arg27 : i32 to index
      %c0_38 = arith.constant 0 : index
      %c0_39 = arith.constant 0 : index
      %96 = vector.load %arg16[%95, %c0_38, %c0_39] : memref<2x1x32xf32, #tpu.memory_space<vmem>>, vector<1x1x32xf32>
      %97 = vector.shape_cast %96 : vector<1x1x32xf32> to vector<1x32xf32>
      %98 = arith.index_cast %arg27 : i32 to index
      %c0_40 = arith.constant 0 : index
      %c0_41 = arith.constant 0 : index
      %99 = vector.load %arg17[%98, %c0_40, %c0_41] : memref<2x1x32xf32, #tpu.memory_space<vmem>>, vector<1x1x32xf32>
      %100 = vector.shape_cast %99 : vector<1x1x32xf32> to vector<1x32xf32>
      %cst_42 = arith.constant dense<0.000000e+00> : vector<16xf32>
      %101 = vector.multi_reduction <add>, %94, %cst_42 [1] : vector<16x32xf32> to vector<16xf32>
      %102 = vector.shape_cast %101 : vector<16xf32> to vector<16x1xf32>
      %cst_43 = arith.constant 3.200000e+01 : f32
      %103 = vector.broadcast %cst_43 : f32 to vector<16x1xf32>
      %104 = arith.divf %102, %103 : vector<16x1xf32>
      %105 = vector.broadcast %104 : vector<16x1xf32> to vector<16x32xf32>
      %106 = arith.subf %94, %105 : vector<16x32xf32>
      %107 = arith.mulf %106, %106 : vector<16x32xf32>
      %cst_44 = arith.constant dense<0.000000e+00> : vector<16xf32>
      %108 = vector.multi_reduction <add>, %107, %cst_44 [1] : vector<16x32xf32> to vector<16xf32>
      %109 = vector.shape_cast %108 : vector<16xf32> to vector<16x1xf32>
      %cst_45 = arith.constant 3.200000e+01 : f32
      %110 = vector.broadcast %cst_45 : f32 to vector<16x1xf32>
      %111 = arith.divf %109, %110 : vector<16x1xf32>
      %112 = vector.broadcast %104 : vector<16x1xf32> to vector<16x32xf32>
      %113 = arith.subf %94, %112 : vector<16x32xf32>
      %cst_46 = arith.constant 9.99999974E-6 : f32
      %114 = vector.broadcast %cst_46 : f32 to vector<16x1xf32>
      %115 = arith.addf %111, %114 : vector<16x1xf32>
      %116 = math.rsqrt %115 : vector<16x1xf32>
      %117 = vector.broadcast %116 : vector<16x1xf32> to vector<16x32xf32>
      %118 = arith.mulf %113, %117 : vector<16x32xf32>
      %119 = vector.broadcast %97 : vector<1x32xf32> to vector<16x32xf32>
      %120 = arith.mulf %118, %119 : vector<16x32xf32>
      %121 = vector.broadcast %100 : vector<1x32xf32> to vector<16x32xf32>
      %122 = arith.addf %120, %121 : vector<16x32xf32>
      %123 = arith.truncf %122 : vector<16x32xf32> to vector<16x32xbf16>
      %124 = arith.index_cast %arg27 : i32 to index
      %c0_47 = arith.constant 0 : index
      %c0_48 = arith.constant 0 : index
      %125 = vector.load %arg10[%124, %c0_47, %c0_48] : memref<2x32x32xbf16, #tpu.memory_space<vmem>>, vector<1x32x32xbf16>
      %126 = vector.shape_cast %125 : vector<1x32x32xbf16> to vector<32x32xbf16>
      %cst_49 = arith.constant dense<0.000000e+00> : vector<16x32xf32>
      %127 = tpu.matmul %123, %126, %cst_49 {dimension_numbers = #tpu.dot_dimension_numbers<[1], [0], [0], [1], [0, 0, 1, 1], [], []>} : vector<16x32xbf16>, vector<32x32xbf16>, vector<16x32xf32> -> vector<16x32xf32>
      %128 = arith.index_cast %arg27 : i32 to index
      %c0_50 = arith.constant 0 : index
      %c0_51 = arith.constant 0 : index
      %129 = vector.load %arg11[%128, %c0_50, %c0_51] : memref<2x1x32xf32, #tpu.memory_space<vmem>>, vector<1x1x32xf32>
      %130 = vector.shape_cast %129 : vector<1x1x32xf32> to vector<1x32xf32>
      %131 = vector.broadcast %130 : vector<1x32xf32> to vector<16x32xf32>
      %132 = arith.addf %127, %131 : vector<16x32xf32>
      %133 = arith.index_cast %arg27 : i32 to index
      %c0_52 = arith.constant 0 : index
      %c0_53 = arith.constant 0 : index
      %134 = vector.load %arg12[%133, %c0_52, %c0_53] : memref<2x32x64xbf16, #tpu.memory_space<vmem>>, vector<1x32x64xbf16>
      %135 = vector.shape_cast %134 : vector<1x32x64xbf16> to vector<32x64xbf16>
      %cst_54 = arith.constant dense<0.000000e+00> : vector<16x64xf32>
      %136 = tpu.matmul %9, %135, %cst_54 {dimension_numbers = #tpu.dot_dimension_numbers<[1], [0], [0], [1], [0, 0, 1, 1], [], []>} : vector<16x32xbf16>, vector<32x64xbf16>, vector<16x64xf32> -> vector<16x64xf32>
      %137 = arith.index_cast %arg27 : i32 to index
      %c0_55 = arith.constant 0 : index
      %c0_56 = arith.constant 0 : index
      %138 = vector.load %arg13[%137, %c0_55, %c0_56] : memref<2x1x64xf32, #tpu.memory_space<vmem>>, vector<1x1x64xf32>
      %139 = vector.shape_cast %138 : vector<1x1x64xf32> to vector<1x64xf32>
      %140 = vector.broadcast %139 : vector<1x64xf32> to vector<16x64xf32>
      %141 = arith.addf %136, %140 : vector<16x64xf32>
      %142 = vector.extract_strided_slice %141 {offsets = [0, 0], sizes = [16, 32], strides = [1, 1]} : vector<16x64xf32> to vector<16x32xf32>
      %143 = vector.extract_strided_slice %141 {offsets = [0, 32], sizes = [16, 32], strides = [1, 1]} : vector<16x64xf32> to vector<16x32xf32>
      %144 = tpu.transpose %132, [1, 0] : vector<16x32xf32> -> vector<32x16xf32>
      %145 = vector.shape_cast %144 : vector<32x16xf32> to vector<4x8x16xf32>
      %146 = tpu.transpose %145, [0, 2, 1] : vector<4x8x16xf32> -> vector<4x16x8xf32>
      %147 = vector.shape_cast %146 : vector<4x16x8xf32> to vector<8x8x8xf32>
      %148 = arith.truncf %147 : vector<8x8x8xf32> to vector<8x8x8xbf16>
      %149 = tpu.transpose %142, [1, 0] : vector<16x32xf32> -> vector<32x16xf32>
      %150 = vector.shape_cast %149 : vector<32x16xf32> to vector<4x8x16xf32>
      %151 = tpu.transpose %150, [0, 2, 1] : vector<4x8x16xf32> -> vector<4x16x8xf32>
      %152 = vector.shape_cast %151 : vector<4x16x8xf32> to vector<8x8x8xf32>
      %153 = arith.truncf %152 : vector<8x8x8xf32> to vector<8x8x8xbf16>
      %154 = tpu.transpose %143, [1, 0] : vector<16x32xf32> -> vector<32x16xf32>
      %155 = vector.shape_cast %154 : vector<32x16xf32> to vector<4x8x16xf32>
      %156 = tpu.transpose %155, [0, 2, 1] : vector<4x8x16xf32> -> vector<4x16x8xf32>
      %157 = vector.shape_cast %156 : vector<4x16x8xf32> to vector<8x8x8xf32>
      %158 = arith.truncf %157 : vector<8x8x8xf32> to vector<8x8x8xbf16>
      "tpu.trace_start"() <{level = 10 : i32, message = "nqe,nke->nqk"}> : () -> ()
      %cst_57 = arith.constant dense<0.000000e+00> : vector<8x8x8xf32>
      %159 = tpu.matmul %148, %153, %cst_57 {dimension_numbers = #tpu.dot_dimension_numbers<[2], [2], [1], [1], [0, 0, 0, 1, 1, 1], [0], [0]>} : vector<8x8x8xbf16>, vector<8x8x8xbf16>, vector<8x8x8xf32> -> vector<8x8x8xf32>
      "tpu.trace_stop"() : () -> ()
      %160 = vector.shape_cast %159 : vector<8x8x8xf32> to vector<4x2x8x8xf32>
      %161 = vector.broadcast %30 : vector<1x2x1x8xf32> to vector<4x2x8x8xf32>
      %162 = arith.addf %160, %161 : vector<4x2x8x8xf32>
      %cst_58 = arith.constant dense<0xFF800000> : vector<4x2x8xf32>
      %163 = vector.multi_reduction <maximumf>, %162, %cst_58 [3] : vector<4x2x8x8xf32> to vector<4x2x8xf32>
      %164 = vector.shape_cast %163 : vector<4x2x8xf32> to vector<4x2x8x1xf32>
      %165 = vector.broadcast %164 : vector<4x2x8x1xf32> to vector<4x2x8x8xf32>
      %166 = arith.subf %162, %165 : vector<4x2x8x8xf32>
      %167 = math.exp %166 : vector<4x2x8x8xf32>
      %cst_59 = arith.constant dense<0.000000e+00> : vector<4x2x8xf32>
      %168 = vector.multi_reduction <add>, %167, %cst_59 [3] : vector<4x2x8x8xf32> to vector<4x2x8xf32>
      %169 = vector.shape_cast %168 : vector<4x2x8xf32> to vector<4x2x8x1xf32>
      %170 = tpu.reciprocal %169 {approx = true} : vector<4x2x8x1xf32> -> vector<4x2x8x1xf32>
      %171 = vector.broadcast %170 : vector<4x2x8x1xf32> to vector<4x2x8x8xf32>
      %172 = arith.mulf %167, %171 : vector<4x2x8x8xf32>
      %173 = vector.shape_cast %172 : vector<4x2x8x8xf32> to vector<8x8x8xf32>
      %174 = arith.truncf %173 : vector<8x8x8xf32> to vector<8x8x8xbf16>
      "tpu.trace_start"() <{level = 10 : i32, message = "nqk,nke->nqe"}> : () -> ()
      %cst_60 = arith.constant dense<0.000000e+00> : vector<8x8x8xf32>
      %175 = tpu.matmul %174, %158, %cst_60 {dimension_numbers = #tpu.dot_dimension_numbers<[2], [1], [1], [2], [0, 0, 0, 1, 1, 2], [0], [0]>} : vector<8x8x8xbf16>, vector<8x8x8xbf16>, vector<8x8x8xf32> -> vector<8x8x8xf32>
      "tpu.trace_stop"() : () -> ()
      %176 = vector.shape_cast %175 : vector<8x8x8xf32> to vector<4x16x8xf32>
      %177 = tpu.transpose %176, [0, 2, 1] : vector<4x16x8xf32> -> vector<4x8x16xf32>
      %178 = vector.shape_cast %177 : vector<4x8x16xf32> to vector<32x16xf32>
      %179 = tpu.transpose %178, [1, 0] : vector<32x16xf32> -> vector<16x32xf32>
      %180 = arith.truncf %179 : vector<16x32xf32> to vector<16x32xbf16>
      %181 = arith.index_cast %arg27 : i32 to index
      %c0_61 = arith.constant 0 : index
      %c0_62 = arith.constant 0 : index
      %182 = vector.load %arg14[%181, %c0_61, %c0_62] : memref<2x32x32xbf16, #tpu.memory_space<vmem>>, vector<1x32x32xbf16>
      %183 = vector.shape_cast %182 : vector<1x32x32xbf16> to vector<32x32xbf16>
      %cst_63 = arith.constant dense<0.000000e+00> : vector<16x32xf32>
      %184 = tpu.matmul %180, %183, %cst_63 {dimension_numbers = #tpu.dot_dimension_numbers<[1], [0], [0], [1], [0, 0, 1, 1], [], []>} : vector<16x32xbf16>, vector<32x32xbf16>, vector<16x32xf32> -> vector<16x32xf32>
      %185 = arith.index_cast %arg27 : i32 to index
      %c0_64 = arith.constant 0 : index
      %c0_65 = arith.constant 0 : index
      %186 = vector.load %arg15[%185, %c0_64, %c0_65] : memref<2x1x32xf32, #tpu.memory_space<vmem>>, vector<1x1x32xf32>
      %187 = vector.shape_cast %186 : vector<1x1x32xf32> to vector<1x32xf32>
      %188 = vector.broadcast %187 : vector<1x32xf32> to vector<16x32xf32>
      %189 = arith.addf %184, %188 : vector<16x32xf32>
      %190 = arith.addf %122, %189 : vector<16x32xf32>
      %191 = arith.index_cast %arg27 : i32 to index
      %c0_66 = arith.constant 0 : index
      %c0_67 = arith.constant 0 : index
      %192 = vector.load %arg18[%191, %c0_66, %c0_67] : memref<2x1x32xf32, #tpu.memory_space<vmem>>, vector<1x1x32xf32>
      %193 = vector.shape_cast %192 : vector<1x1x32xf32> to vector<1x32xf32>
      %194 = arith.index_cast %arg27 : i32 to index
      %c0_68 = arith.constant 0 : index
      %c0_69 = arith.constant 0 : index
      %195 = vector.load %arg19[%194, %c0_68, %c0_69] : memref<2x1x32xf32, #tpu.memory_space<vmem>>, vector<1x1x32xf32>
      %196 = vector.shape_cast %195 : vector<1x1x32xf32> to vector<1x32xf32>
      %cst_70 = arith.constant dense<0.000000e+00> : vector<16xf32>
      %197 = vector.multi_reduction <add>, %190, %cst_70 [1] : vector<16x32xf32> to vector<16xf32>
      %198 = vector.shape_cast %197 : vector<16xf32> to vector<16x1xf32>
      %cst_71 = arith.constant 3.200000e+01 : f32
      %199 = vector.broadcast %cst_71 : f32 to vector<16x1xf32>
      %200 = arith.divf %198, %199 : vector<16x1xf32>
      %201 = vector.broadcast %200 : vector<16x1xf32> to vector<16x32xf32>
      %202 = arith.subf %190, %201 : vector<16x32xf32>
      %203 = arith.mulf %202, %202 : vector<16x32xf32>
      %cst_72 = arith.constant dense<0.000000e+00> : vector<16xf32>
      %204 = vector.multi_reduction <add>, %203, %cst_72 [1] : vector<16x32xf32> to vector<16xf32>
      %205 = vector.shape_cast %204 : vector<16xf32> to vector<16x1xf32>
      %cst_73 = arith.constant 3.200000e+01 : f32
      %206 = vector.broadcast %cst_73 : f32 to vector<16x1xf32>
      %207 = arith.divf %205, %206 : vector<16x1xf32>
      %208 = vector.broadcast %200 : vector<16x1xf32> to vector<16x32xf32>
      %209 = arith.subf %190, %208 : vector<16x32xf32>
      %cst_74 = arith.constant 9.99999974E-6 : f32
      %210 = vector.broadcast %cst_74 : f32 to vector<16x1xf32>
      %211 = arith.addf %207, %210 : vector<16x1xf32>
      %212 = math.rsqrt %211 : vector<16x1xf32>
      %213 = vector.broadcast %212 : vector<16x1xf32> to vector<16x32xf32>
      %214 = arith.mulf %209, %213 : vector<16x32xf32>
      %215 = vector.broadcast %193 : vector<1x32xf32> to vector<16x32xf32>
      %216 = arith.mulf %214, %215 : vector<16x32xf32>
      %217 = vector.broadcast %196 : vector<1x32xf32> to vector<16x32xf32>
      %218 = arith.addf %216, %217 : vector<16x32xf32>
      %219 = arith.truncf %218 : vector<16x32xf32> to vector<16x32xbf16>
      %220 = arith.index_cast %arg27 : i32 to index
      %c0_75 = arith.constant 0 : index
      %c0_76 = arith.constant 0 : index
      %221 = vector.load %arg22[%220, %c0_75, %c0_76] : memref<2x32x64xbf16, #tpu.memory_space<vmem>>, vector<1x32x64xbf16>
      %222 = vector.shape_cast %221 : vector<1x32x64xbf16> to vector<32x64xbf16>
      %cst_77 = arith.constant dense<0.000000e+00> : vector<16x64xf32>
      %223 = tpu.matmul %219, %222, %cst_77 {dimension_numbers = #tpu.dot_dimension_numbers<[1], [0], [0], [1], [0, 0, 1, 1], [], []>} : vector<16x32xbf16>, vector<32x64xbf16>, vector<16x64xf32> -> vector<16x64xf32>
      %224 = arith.index_cast %arg27 : i32 to index
      %c0_78 = arith.constant 0 : index
      %c0_79 = arith.constant 0 : index
      %225 = vector.load %arg23[%224, %c0_78, %c0_79] : memref<2x1x64xf32, #tpu.memory_space<vmem>>, vector<1x1x64xf32>
      %226 = vector.shape_cast %225 : vector<1x1x64xf32> to vector<1x64xf32>
      %227 = vector.broadcast %226 : vector<1x64xf32> to vector<16x64xf32>
      %228 = arith.addf %223, %227 : vector<16x64xf32>
      %cst_80 = arith.constant 0.000000e+00 : f32
      %229 = vector.broadcast %cst_80 : f32 to vector<16x64xf32>
      %230 = arith.maximumf %228, %229 : vector<16x64xf32>
      %231 = arith.truncf %230 : vector<16x64xf32> to vector<16x64xbf16>
      %232 = arith.index_cast %arg27 : i32 to index
      %c0_81 = arith.constant 0 : index
      %c0_82 = arith.constant 0 : index
      %233 = vector.load %arg24[%232, %c0_81, %c0_82] : memref<2x64x32xbf16, #tpu.memory_space<vmem>>, vector<1x64x32xbf16>
      %234 = vector.shape_cast %233 : vector<1x64x32xbf16> to vector<64x32xbf16>
      %cst_83 = arith.constant dense<0.000000e+00> : vector<16x32xf32>
      %235 = tpu.matmul %231, %234, %cst_83 {dimension_numbers = #tpu.dot_dimension_numbers<[1], [0], [0], [1], [0, 0, 1, 1], [], []>} : vector<16x64xbf16>, vector<64x32xbf16>, vector<16x32xf32> -> vector<16x32xf32>
      %236 = arith.index_cast %arg27 : i32 to index
      %c0_84 = arith.constant 0 : index
      %c0_85 = arith.constant 0 : index
      %237 = vector.load %arg25[%236, %c0_84, %c0_85] : memref<2x1x32xf32, #tpu.memory_space<vmem>>, vector<1x1x32xf32>
      %238 = vector.shape_cast %237 : vector<1x1x32xf32> to vector<1x32xf32>
      %239 = vector.broadcast %238 : vector<1x32xf32> to vector<16x32xf32>
      %240 = arith.addf %235, %239 : vector<16x32xf32>
      %241 = arith.addf %218, %240 : vector<16x32xf32>
      %242 = arith.index_cast %arg27 : i32 to index
      %c0_86 = arith.constant 0 : index
      %c0_87 = arith.constant 0 : index
      %243 = vector.load %arg20[%242, %c0_86, %c0_87] : memref<2x1x32xf32, #tpu.memory_space<vmem>>, vector<1x1x32xf32>
      %244 = vector.shape_cast %243 : vector<1x1x32xf32> to vector<1x32xf32>
      %245 = arith.index_cast %arg27 : i32 to index
      %c0_88 = arith.constant 0 : index
      %c0_89 = arith.constant 0 : index
      %246 = vector.load %arg21[%245, %c0_88, %c0_89] : memref<2x1x32xf32, #tpu.memory_space<vmem>>, vector<1x1x32xf32>
      %247 = vector.shape_cast %246 : vector<1x1x32xf32> to vector<1x32xf32>
      %cst_90 = arith.constant dense<0.000000e+00> : vector<16xf32>
      %248 = vector.multi_reduction <add>, %241, %cst_90 [1] : vector<16x32xf32> to vector<16xf32>
      %249 = vector.shape_cast %248 : vector<16xf32> to vector<16x1xf32>
      %cst_91 = arith.constant 3.200000e+01 : f32
      %250 = vector.broadcast %cst_91 : f32 to vector<16x1xf32>
      %251 = arith.divf %249, %250 : vector<16x1xf32>
      %252 = vector.broadcast %251 : vector<16x1xf32> to vector<16x32xf32>
      %253 = arith.subf %241, %252 : vector<16x32xf32>
      %254 = arith.mulf %253, %253 : vector<16x32xf32>
      %cst_92 = arith.constant dense<0.000000e+00> : vector<16xf32>
      %255 = vector.multi_reduction <add>, %254, %cst_92 [1] : vector<16x32xf32> to vector<16xf32>
      %256 = vector.shape_cast %255 : vector<16xf32> to vector<16x1xf32>
      %cst_93 = arith.constant 3.200000e+01 : f32
      %257 = vector.broadcast %cst_93 : f32 to vector<16x1xf32>
      %258 = arith.divf %256, %257 : vector<16x1xf32>
      %259 = vector.broadcast %251 : vector<16x1xf32> to vector<16x32xf32>
      %260 = arith.subf %241, %259 : vector<16x32xf32>
      %cst_94 = arith.constant 9.99999974E-6 : f32
      %261 = vector.broadcast %cst_94 : f32 to vector<16x1xf32>
      %262 = arith.addf %258, %261 : vector<16x1xf32>
      %263 = math.rsqrt %262 : vector<16x1xf32>
      %264 = vector.broadcast %263 : vector<16x1xf32> to vector<16x32xf32>
      %265 = arith.mulf %260, %264 : vector<16x32xf32>
      %266 = vector.broadcast %244 : vector<1x32xf32> to vector<16x32xf32>
      %267 = arith.mulf %265, %266 : vector<16x32xf32>
      %268 = vector.broadcast %247 : vector<1x32xf32> to vector<16x32xf32>
      %269 = arith.addf %267, %268 : vector<16x32xf32>
      scf.yield %269 : vector<16x32xf32>
    }
    %c2_i32_20 = arith.constant 2 : i32
    %33 = vector.shape_cast %32 : vector<16x32xf32> to vector<2x8x32xf32>
    %c0_21 = arith.constant 0 : index
    %c0_22 = arith.constant 0 : index
    %c0_23 = arith.constant 0 : index
    %34 = vector.load %arg26[%c0_21, %c0_22, %c0_23] : memref<2x8x32xf32, #tpu.memory_space<vmem>>, vector<2x8x32xf32>
    tpu.vector_store %arg26[%c0_21, %c0_22, %c0_23], %33 {strides = array<i32>} : memref<2x8x32xf32, #tpu.memory_space<vmem>>, vector<2x8x32xf32>,
    return
  }
  func.func @transform_0(%arg0: i32) -> (i32, i32, i32) {
    %c0_i32 = arith.constant 0 : i32
    %c0_i32_0 = arith.constant 0 : i32
    %c0_i32_1 = arith.constant 0 : i32
    return %arg0, %c0_i32, %c0_i32_0 : i32, i32, i32
  }
  func.func @transform_1(%arg0: i32) -> (i32, i32, i32) {
    %c0_i32 = arith.constant 0 : i32
    %c0_i32_0 = arith.constant 0 : i32
    %c0_i32_1 = arith.constant 0 : i32
    return %arg0, %c0_i32, %c0_i32_0 : i32, i32, i32
  }
  func.func @transform_2(%arg0: i32) -> (i32, i32, i32) {
    %c0_i32 = arith.constant 0 : i32
    %c0_i32_0 = arith.constant 0 : i32
    %c0_i32_1 = arith.constant 0 : i32
    return %arg0, %c0_i32, %c0_i32_0 : i32, i32, i32
  }
  func.func @transform_3(%arg0: i32) -> (i32, i32, i32) {
    %c0_i32 = arith.constant 0 : i32
    %c0_i32_0 = arith.constant 0 : i32
    %c0_i32_1 = arith.constant 0 : i32
    return %arg0, %c0_i32, %c0_i32_0 : i32, i32, i32
  }
  func.func @transform_4(%arg0: i32) -> (i32, i32, i32) {
    %c0_i32 = arith.constant 0 : i32
    %c0_i32_0 = arith.constant 0 : i32
    %c0_i32_1 = arith.constant 0 : i32
    %c0_i32_2 = arith.constant 0 : i32
    return %c0_i32, %c0_i32_0, %c0_i32_1 : i32, i32, i32
  }
  func.func @transform_5(%arg0: i32) -> (i32, i32, i32) {
    %c0_i32 = arith.constant 0 : i32
    %c0_i32_0 = arith.constant 0 : i32
    %c0_i32_1 = arith.constant 0 : i32
    %c0_i32_2 = arith.constant 0 : i32
    return %c0_i32, %c0_i32_0, %c0_i32_1 : i32, i32, i32
  }
  func.func @transform_6(%arg0: i32) -> (i32, i32, i32) {
    %c0_i32 = arith.constant 0 : i32
    %c0_i32_0 = arith.constant 0 : i32
    %c0_i32_1 = arith.constant 0 : i32
    %c0_i32_2 = arith.constant 0 : i32
    return %c0_i32, %c0_i32_0, %c0_i32_1 : i32, i32, i32
  }
  func.func @transform_7(%arg0: i32) -> (i32, i32, i32) {
    %c0_i32 = arith.constant 0 : i32
    %c0_i32_0 = arith.constant 0 : i32
    %c0_i32_1 = arith.constant 0 : i32
    %c0_i32_2 = arith.constant 0 : i32
    return %c0_i32, %c0_i32_0, %c0_i32_1 : i32, i32, i32
  }
  func.func @transform_8(%arg0: i32) -> (i32, i32, i32) {
    %c0_i32 = arith.constant 0 : i32
    %c0_i32_0 = arith.constant 0 : i32
    %c0_i32_1 = arith.constant 0 : i32
    %c0_i32_2 = arith.constant 0 : i32
    return %c0_i32, %c0_i32_0, %c0_i32_1 : i32, i32, i32
  }
  func.func @transform_9(%arg0: i32) -> (i32, i32, i32) {
    %c0_i32 = arith.constant 0 : i32
    %c0_i32_0 = arith.constant 0 : i32
    %c0_i32_1 = arith.constant 0 : i32
    %c0_i32_2 = arith.constant 0 : i32
    return %c0_i32, %c0_i32_0, %c0_i32_1 : i32, i32, i32
  }
  func.func @transform_10(%arg0: i32) -> (i32, i32, i32) {
    %c0_i32 = arith.constant 0 : i32
    %c0_i32_0 = arith.constant 0 : i32
    %c0_i32_1 = arith.constant 0 : i32
    %c0_i32_2 = arith.constant 0 : i32
    return %c0_i32, %c0_i32_0, %c0_i32_1 : i32, i32, i32
  }
  func.func @transform_11(%arg0: i32) -> (i32, i32, i32) {
    %c0_i32 = arith.constant 0 : i32
    %c0_i32_0 = arith.constant 0 : i32
    %c0_i32_1 = arith.constant 0 : i32
    %c0_i32_2 = arith.constant 0 : i32
    return %c0_i32, %c0_i32_0, %c0_i32_1 : i32, i32, i32
  }
  func.func @transform_12(%arg0: i32) -> (i32, i32, i32) {
    %c0_i32 = arith.constant 0 : i32
    %c0_i32_0 = arith.constant 0 : i32
    %c0_i32_1 = arith.constant 0 : i32
    %c0_i32_2 = arith.constant 0 : i32
    return %c0_i32, %c0_i32_0, %c0_i32_1 : i32, i32, i32
  }
  func.func @transform_13(%arg0: i32) -> (i32, i32, i32) {
    %c0_i32 = arith.constant 0 : i32
    %c0_i32_0 = arith.constant 0 : i32
    %c0_i32_1 = arith.constant 0 : i32
    %c0_i32_2 = arith.constant 0 : i32
    return %c0_i32, %c0_i32_0, %c0_i32_1 : i32, i32, i32
  }
  func.func @transform_14(%arg0: i32) -> (i32, i32, i32) {
    %c0_i32 = arith.constant 0 : i32
    %c0_i32_0 = arith.constant 0 : i32
    %c0_i32_1 = arith.constant 0 : i32
    %c0_i32_2 = arith.constant 0 : i32
    return %c0_i32, %c0_i32_0, %c0_i32_1 : i32, i32, i32
  }
  func.func @transform_15(%arg0: i32) -> (i32, i32, i32) {
    %c0_i32 = arith.constant 0 : i32
    %c0_i32_0 = arith.constant 0 : i32
    %c0_i32_1 = arith.constant 0 : i32
    %c0_i32_2 = arith.constant 0 : i32
    return %c0_i32, %c0_i32_0, %c0_i32_1 : i32, i32, i32
  }
  func.func @transform_16(%arg0: i32) -> (i32, i32, i32) {
    %c0_i32 = arith.constant 0 : i32
    %c0_i32_0 = arith.constant 0 : i32
    %c0_i32_1 = arith.constant 0 : i32
    %c0_i32_2 = arith.constant 0 : i32
    return %c0_i32, %c0_i32_0, %c0_i32_1 : i32, i32, i32
  }
  func.func @transform_17(%arg0: i32) -> (i32, i32, i32) {
    %c0_i32 = arith.constant 0 : i32
    %c0_i32_0 = arith.constant 0 : i32
    %c0_i32_1 = arith.constant 0 : i32
    %c0_i32_2 = arith.constant 0 : i32
    return %c0_i32, %c0_i32_0, %c0_i32_1 : i32, i32, i32
  }
  func.func @transform_18(%arg0: i32) -> (i32, i32, i32) {
    %c0_i32 = arith.constant 0 : i32
    %c0_i32_0 = arith.constant 0 : i32
    %c0_i32_1 = arith.constant 0 : i32
    %c0_i32_2 = arith.constant 0 : i32
    return %c0_i32, %c0_i32_0, %c0_i32_1 : i32, i32, i32
  }
  func.func @transform_19(%arg0: i32) -> (i32, i32, i32) {
    %c0_i32 = arith.constant 0 : i32
    %c0_i32_0 = arith.constant 0 : i32
    %c0_i32_1 = arith.constant 0 : i32
    %c0_i32_2 = arith.constant 0 : i32
    return %c0_i32, %c0_i32_0, %c0_i32_1 : i32, i32, i32
  }
  func.func @transform_20(%arg0: i32) -> (i32, i32, i32) {
    %c0_i32 = arith.constant 0 : i32
    %c0_i32_0 = arith.constant 0 : i32
    %c0_i32_1 = arith.constant 0 : i32
    %c0_i32_2 = arith.constant 0 : i32
    return %c0_i32, %c0_i32_0, %c0_i32_1 : i32, i32, i32
  }
  func.func @transform_21(%arg0: i32) -> (i32, i32, i32) {
    %c0_i32 = arith.constant 0 : i32
    %c0_i32_0 = arith.constant 0 : i32
    %c0_i32_1 = arith.constant 0 : i32
    %c0_i32_2 = arith.constant 0 : i32
    return %c0_i32, %c0_i32_0, %c0_i32_1 : i32, i32, i32
  }
  func.func @transform_22(%arg0: i32) -> (i32, i32, i32) {
    %c0_i32 = arith.constant 0 : i32
    %c0_i32_0 = arith.constant 0 : i32
    %c0_i32_1 = arith.constant 0 : i32
    %c0_i32_2 = arith.constant 0 : i32
    return %c0_i32, %c0_i32_0, %c0_i32_1 : i32, i32, i32
  }
  func.func @transform_23(%arg0: i32) -> (i32, i32, i32) {
    %c0_i32 = arith.constant 0 : i32
    %c0_i32_0 = arith.constant 0 : i32
    %c0_i32_1 = arith.constant 0 : i32
    %c0_i32_2 = arith.constant 0 : i32
    return %c0_i32, %c0_i32_0, %c0_i32_1 : i32, i32, i32
  }
  func.func @transform_24(%arg0: i32) -> (i32, i32, i32) {
    %c0_i32 = arith.constant 0 : i32
    %c0_i32_0 = arith.constant 0 : i32
    %c0_i32_1 = arith.constant 0 : i32
    %c0_i32_2 = arith.constant 0 : i32
    return %c0_i32, %c0_i32_0, %c0_i32_1 : i32, i32, i32
  }
  func.func @transform_25(%arg0: i32) -> (i32, i32, i32) {
    %c0_i32 = arith.constant 0 : i32
    %c0_i32_0 = arith.constant 0 : i32
    %c0_i32_1 = arith.constant 0 : i32
    return %arg0, %c0_i32, %c0_i32_0 : i32, i32, i32
  }
}

</mosaic_0001>

<llo_original>
// kernel: tpu_custom_call.1
$region0: #{tpu_custom_call.1}
  #allocation0 [shape = 'u32[]', space=smem, size = 0x4, offset = 0x4, fixed_abs, tag = 'smem constant byte address 0x4 - core index']
  #allocation1 [shape = 'u32[144,128]{1,0:T(1,128)}', space=vmem, size = 0x12000, scoped, tag = 'internal scratch']
  %s0 = inlined_call_operand.hbm [shape: f32[2,8,32], index: 0, kind: input, shape index: {}]
  %s1 = inlined_call_operand.hbm [shape: f32[2,8,32], index: 1, kind: input, shape index: {}]
  %s2 = inlined_call_operand.hbm [shape: f32[2,1,8], index: 2, kind: input, shape index: {}]
  %s3 = inlined_call_operand.hbm [shape: f32[2,1,8], index: 3, kind: input, shape index: {}]
  %s4 = inlined_call_operand.hbm [shape: f32[1,8,32], index: 4, kind: input, shape index: {}]
  %s5 = inlined_call_operand.vmem [shape: bf16[2,32,96], index: 5, kind: input, shape index: {}]
  %s6 = inlined_call_operand.hbm [shape: f32[2,1,96], index: 6, kind: input, shape index: {}]
  %s7 = inlined_call_operand.vmem [shape: bf16[2,32,32], index: 7, kind: input, shape index: {}]
  %s8 = inlined_call_operand.hbm [shape: f32[2,1,32], index: 8, kind: input, shape index: {}]
  %s9 = inlined_call_operand.vmem [shape: bf16[2,32,32], index: 9, kind: input, shape index: {}]
  %s10 = inlined_call_operand.hbm [shape: f32[2,1,32], index: 10, kind: input, shape index: {}]
  %s11 = inlined_call_operand.vmem [shape: bf16[2,32,64], index: 11, kind: input, shape index: {}]
  %s12 = inlined_call_operand.hbm [shape: f32[2,1,64], index: 12, kind: input, shape index: {}]
  %s13 = inlined_call_operand.hbm [shape: bf16[2,32,32], index: 13, kind: input, shape index: {}]
  %s14 = inlined_call_operand.hbm [shape: f32[2,1,32], index: 14, kind: input, shape index: {}]
  %s15 = inlined_call_operand.hbm [shape: f32[2,1,32], index: 15, kind: input, shape index: {}]
  %s16 = inlined_call_operand.hbm [shape: f32[2,1,32], index: 16, kind: input, shape index: {}]
  %s17 = inlined_call_operand.hbm [shape: f32[2,1,32], index: 17, kind: input, shape index: {}]
  %s18 = inlined_call_operand.vmem [shape: f32[2,1,32], index: 18, kind: input, shape index: {}]
  %s19 = inlined_call_operand.vmem [shape: f32[2,1,32], index: 19, kind: input, shape index: {}]
  %s20 = inlined_call_operand.vmem [shape: f32[2,1,32], index: 20, kind: input, shape index: {}]
  %s21 = inlined_call_operand.hbm [shape: bf16[2,32,64], index: 21, kind: input, shape index: {}]
  %s22 = inlined_call_operand.vmem [shape: f32[2,1,64], index: 22, kind: input, shape index: {}]
  %s23 = inlined_call_operand.vmem [shape: bf16[2,64,32], index: 23, kind: input, shape index: {}]
  %s24 = inlined_call_operand.vmem [shape: f32[2,1,32], index: 24, kind: input, shape index: {}]
  %s25 = inlined_call_operand.hbm [shape: f32[2,8,32], index: 25, kind: output, shape index: {}]
  %s26 = sld [smem:[#allocation0]]
  $region177: #{tpu_custom_call.1} parent=0
    _
  %s28 = ssub.s32 1, %s26
  %s29 = scalar_select 0, %s28, %s26
  $region1: #{tpu_custom_call.1} parent=0
    #allocation2 [shape = 'u8[8192]{0}', space=vmem, size = 0x2000, scoped, tag = 'input window, operand 0, single buffered']
    #allocation3 [shape = 's32[1]{0}', space=sflag, size = 0x4, scoped, tag = 'scoped memory for tpu_custom_call.1']
    #allocation4 [shape = 's32[1]{0}', space=sflag, size = 0x4, scoped, tag = 'scoped memory for tpu_custom_call.1']
    #allocation5 [shape = 'u8[8192]{0}', space=vmem, size = 0x2000, scoped, tag = 'input window, operand 1, single buffered']
    #allocation6 [shape = 's32[1]{0}', space=sflag, size = 0x4, scoped, tag = 'scoped memory for tpu_custom_call.1']
    #allocation7 [shape = 'u8[1024]{0}', space=vmem, size = 0x400, scoped, tag = 'input window, operand 2, single buffered']
    #allocation8 [shape = 'u8[1024]{0}', space=vmem, size = 0x400, scoped, tag = 'input window, operand 3, single buffered']
    #allocation9 [shape = 's32[1]{0}', space=sflag, size = 0x4, scoped, tag = 'scoped memory for tpu_custom_call.1']
    #allocation10 [shape = 'u8[4096]{0}', space=vmem, size = 0x1000, scoped, tag = 'input window, operand 4, single buffered']
    #allocation11 [shape = 'u8[1024]{0}', space=vmem, size = 0x400, scoped, tag = 'input window, operand 6, single buffered']
    #allocation12 [shape = 's32[1]{0}', space=sflag, size = 0x4, scoped, tag = 'scoped memory for tpu_custom_call.1']
    #allocation13 [shape = 'u8[1024]{0}', space=vmem, size = 0x400, scoped, tag = 'input window, operand 8, single buffered']
    #allocation14 [shape = 'u8[1024]{0}', space=vmem, size = 0x400, scoped, tag = 'input window, operand 10, single buffered']
    #allocation15 [shape = 's32[1]{0}', space=sflag, size = 0x4, scoped, tag = 'scoped memory for tpu_custom_call.1']
    #allocation16 [shape = 'u8[1024]{0}', space=vmem, size = 0x400, scoped, tag = 'input window, operand 12, single buffered']
    #allocation17 [shape = 'u8[16384]{0}', space=vmem, size = 0x4000, scoped, tag = 'input window, operand 13, single buffered']
    #allocation18 [shape = 's32[1]{0}', space=sflag, size = 0x4, scoped, tag = 'scoped memory for tpu_custom_call.1']
    #allocation19 [shape = 'u8[1024]{0}', space=vmem, size = 0x400, scoped, tag = 'input window, operand 14, single buffered']
    #allocation20 [shape = 'u8[1024]{0}', space=vmem, size = 0x400, scoped, tag = 'input window, operand 15, single buffered']
    #allocation21 [shape = 's32[1]{0}', space=sflag, size = 0x4, scoped, tag = 'scoped memory for tpu_custom_call.1']
    #allocation22 [shape = 'u8[1024]{0}', space=vmem, size = 0x400, scoped, tag = 'input window, operand 16, single buffered']
    #allocation23 [shape = 'u8[1024]{0}', space=vmem, size = 0x400, scoped, tag = 'input window, operand 17, single buffered']
    #allocation24 [shape = 's32[1]{0}', space=sflag, size = 0x4, scoped, tag = 'scoped memory for tpu_custom_call.1']
    #allocation25 [shape = 'u8[16384]{0}', space=vmem, size = 0x4000, scoped, tag = 'input window, operand 21, single buffered']
    #allocation26 [shape = 'u8[8192]{0}', space=vmem, size = 0x2000, scoped, tag = 'output window, operand 0, single buffered']
    %30 = vsyncpa [#allocation3], 0
    %31 = vsyncpa [#allocation6], 0
    %32 = vsyncpa [#allocation9], 0
    %33 = vsyncpa [#allocation12], 0
    %34 = vsyncpa [#allocation15], 0
    %35 = vsyncpa [#allocation18], 0
    %36 = vsyncpa [#allocation21], 0
    %37 = vsyncpa [#allocation24], 0
    %38 = vsyncpa [#allocation4], 0
    // Predicated region
    $region2: #{tpu_custom_call.1} parent=1 // pred_check
      _
    $region3: #{tpu_custom_call.1} parent=1 // pred_check_branch
      %40 = sbr.rel (0) target = $region5
    $region4: #{tpu_custom_call.1} parent=1 // pred_region
      %s42 = ssub.s32 256, 256
      %43 = vsyncadd [#allocation3], %s42
      %s44 = sshll.u32 [#allocation2], 4
      %s45 = int_to_ptr.vmem [resolvable:$true] %s44
      %50 = dma.hbm_to_vmem [thread:$0]  %s0, 256, %s45, [#allocation3], 128, 128, 8
    $region5: #{tpu_custom_call.1} parent=1 // pred_fallthru
      _
    // Predicated region
    $region6: #{tpu_custom_call.1} parent=1 // pred_check
      _
    $region7: #{tpu_custom_call.1} parent=1 // pred_check_branch
      %52 = sbr.rel (0) target = $region9
    $region8: #{tpu_custom_call.1} parent=1 // pred_region
      %s54 = ssub.s32 256, 256
      %55 = vsyncadd [#allocation6], %s54
      %s56 = sshll.u32 [#allocation5], 4
      %s57 = int_to_ptr.vmem [resolvable:$true] %s56
      %62 = dma.hbm_to_vmem [thread:$0]  %s1, 256, %s57, [#allocation6], 128, 128, 8
    $region9: #{tpu_custom_call.1} parent=1 // pred_fallthru
      _
    // Predicated region
    $region10: #{tpu_custom_call.1} parent=1 // pred_check
      _
    $region11: #{tpu_custom_call.1} parent=1 // pred_check_branch
      %64 = sbr.rel (0) target = $region13
    $region12: #{tpu_custom_call.1} parent=1 // pred_region
      %s66 = ssub.s32 32, 32
      %67 = vsyncadd [#allocation6], %s66
      %s68 = sshll.u32 [#allocation7], 4
      %s69 = int_to_ptr.vmem [resolvable:$true] %s68
      %74 = dma.hbm_to_vmem [thread:$0]  %s2, 32, %s69, [#allocation6], 16, 16, 1
    $region13: #{tpu_custom_call.1} parent=1 // pred_fallthru
      _
    // Predicated region
    $region14: #{tpu_custom_call.1} parent=1 // pred_check
      _
    $region15: #{tpu_custom_call.1} parent=1 // pred_check_branch
      %76 = sbr.rel (0) target = $region17
    $region16: #{tpu_custom_call.1} parent=1 // pred_region
      %s78 = ssub.s32 32, 32
      %79 = vsyncadd [#allocation9], %s78
      %s80 = sshll.u32 [#allocation8], 4
      %s81 = int_to_ptr.vmem [resolvable:$true] %s80
      %86 = dma.hbm_to_vmem [thread:$0]  %s3, 32, %s81, [#allocation9], 16, 16, 1
    $region17: #{tpu_custom_call.1} parent=1 // pred_fallthru
      _
    // Predicated region
    $region18: #{tpu_custom_call.1} parent=1 // pred_check
      _
    $region19: #{tpu_custom_call.1} parent=1 // pred_check_branch
      %88 = sbr.rel (0) target = $region21
    $region20: #{tpu_custom_call.1} parent=1 // pred_region
      %s90 = ssub.s32 128, 128
      %91 = vsyncadd [#allocation9], %s90
      %s93 = sshll.u32 [#allocation10], 4
      %s94 = int_to_ptr.vmem [resolvable:$true] %s93
      %96 = dma.hbm_to_vmem [thread:$0]  %s4, 128, %s94, [#allocation9]
    $region21: #{tpu_custom_call.1} parent=1 // pred_fallthru
      _
    // Predicated region
    $region22: #{tpu_custom_call.1} parent=1 // pred_check
      _
    $region23: #{tpu_custom_call.1} parent=1 // pred_check_branch
      %98 = sbr.rel (0) target = $region25
    $region24: #{tpu_custom_call.1} parent=1 // pred_region
      _
    $region25: #{tpu_custom_call.1} parent=1 // pred_fallthru
      _
    // Predicated region
    $region26: #{tpu_custom_call.1} parent=1 // pred_check
      _
    $region27: #{tpu_custom_call.1} parent=1 // pred_check_branch
      %100 = sbr.rel (0) target = $region29
    $region28: #{tpu_custom_call.1} parent=1 // pred_region
      %s102 = ssub.s32 32, 32
      %103 = vsyncadd [#allocation12], %s102
      %s104 = sshll.u32 [#allocation11], 4
      %s105 = int_to_ptr.vmem [resolvable:$true] %s104
      %110 = dma.hbm_to_vmem [thread:$0]  %s6, 32, %s105, [#allocation12], 16, 16, 1
    $region29: #{tpu_custom_call.1} parent=1 // pred_fallthru
      _
    // Predicated region
    $region30: #{tpu_custom_call.1} parent=1 // pred_check
      _
    $region31: #{tpu_custom_call.1} parent=1 // pred_check_branch
      %112 = sbr.rel (0) target = $region33
    $region32: #{tpu_custom_call.1} parent=1 // pred_region
      _
    $region33: #{tpu_custom_call.1} parent=1 // pred_fallthru
      _
    // Predicated region
    $region34: #{tpu_custom_call.1} parent=1 // pred_check
      _
    $region35: #{tpu_custom_call.1} parent=1 // pred_check_branch
      %114 = sbr.rel (0) target = $region37
    $region36: #{tpu_custom_call.1} parent=1 // pred_region
      %s116 = ssub.s32 32, 32
      %117 = vsyncadd [#allocation12], %s116
      %s118 = sshll.u32 [#allocation13], 4
      %s119 = int_to_ptr.vmem [resolvable:$true] %s118
      %124 = dma.hbm_to_vmem [thread:$0]  %s8, 32, %s119, [#allocation12], 16, 16, 1
    $region37: #{tpu_custom_call.1} parent=1 // pred_fallthru
      _
    // Predicated region
    $region38: #{tpu_custom_call.1} parent=1 // pred_check
      _
    $region39: #{tpu_custom_call.1} parent=1 // pred_check_branch
      %126 = sbr.rel (0) target = $region41
    $region40: #{tpu_custom_call.1} parent=1 // pred_region
      _
    $region41: #{tpu_custom_call.1} parent=1 // pred_fallthru
      _
    // Predicated region
    $region42: #{tpu_custom_call.1} parent=1 // pred_check
      _
    $region43: #{tpu_custom_call.1} parent=1 // pred_check_branch
      %128 = sbr.rel (0) target = $region45
    $region44: #{tpu_custom_call.1} parent=1 // pred_region
      %s130 = ssub.s32 32, 32
      %131 = vsyncadd [#allocation15], %s130
      %s132 = sshll.u32 [#allocation14], 4
      %s133 = int_to_ptr.vmem [resolvable:$true] %s132
      %138 = dma.hbm_to_vmem [thread:$0]  %s10, 32, %s133, [#allocation15], 16, 16, 1
    $region45: #{tpu_custom_call.1} parent=1 // pred_fallthru
      _
    // Predicated region
    $region46: #{tpu_custom_call.1} parent=1 // pred_check
      _
    $region47: #{tpu_custom_call.1} parent=1 // pred_check_branch
      %140 = sbr.rel (0) target = $region49
    $region48: #{tpu_custom_call.1} parent=1 // pred_region
      _
    $region49: #{tpu_custom_call.1} parent=1 // pred_fallthru
      _
    // Predicated region
    $region50: #{tpu_custom_call.1} parent=1 // pred_check
      _
    $region51: #{tpu_custom_call.1} parent=1 // pred_check_branch
      %142 = sbr.rel (0) target = $region53
    $region52: #{tpu_custom_call.1} parent=1 // pred_region
      %s144 = ssub.s32 32, 32
      %145 = vsyncadd [#allocation15], %s144
      %s146 = sshll.u32 [#allocation16], 4
      %s147 = int_to_ptr.vmem [resolvable:$true] %s146
      %152 = dma.hbm_to_vmem [thread:$0]  %s12, 32, %s147, [#allocation15], 16, 16, 1
    $region53: #{tpu_custom_call.1} parent=1 // pred_fallthru
      _
    // Predicated region
    $region54: #{tpu_custom_call.1} parent=1 // pred_check
      _
    $region55: #{tpu_custom_call.1} parent=1 // pred_check_branch
      %154 = sbr.rel (0) target = $region57
    $region56: #{tpu_custom_call.1} parent=1 // pred_region
      %s156 = ssub.s32 512, 512
      %157 = vsyncadd [#allocation18], %s156
      %s158 = sshll.u32 [#allocation17], 4
      %s159 = int_to_ptr.vmem [resolvable:$true] %s158
      %164 = dma.hbm_to_vmem [thread:$0]  %s13, 512, %s159, [#allocation18], 64, 64, 4
    $region57: #{tpu_custom_call.1} parent=1 // pred_fallthru
      _
    // Predicated region
    $region58: #{tpu_custom_call.1} parent=1 // pred_check
      _
    $region59: #{tpu_custom_call.1} parent=1 // pred_check_branch
      %166 = sbr.rel (0) target = $region61
    $region60: #{tpu_custom_call.1} parent=1 // pred_region
      %s168 = ssub.s32 32, 32
      %169 = vsyncadd [#allocation18], %s168
      %s170 = sshll.u32 [#allocation19], 4
      %s171 = int_to_ptr.vmem [resolvable:$true] %s170
      %176 = dma.hbm_to_vmem [thread:$0]  %s14, 32, %s171, [#allocation18], 16, 16, 1
    $region61: #{tpu_custom_call.1} parent=1 // pred_fallthru
      _
    // Predicated region
    $region62: #{tpu_custom_call.1} parent=1 // pred_check
      _
    $region63: #{tpu_custom_call.1} parent=1 // pred_check_branch
      %178 = sbr.rel (0) target = $region65
    $region64: #{tpu_custom_call.1} parent=1 // pred_region
      %s180 = ssub.s32 32, 32
      %181 = vsyncadd [#allocation21], %s180
      %s182 = sshll.u32 [#allocation20], 4
      %s183 = int_to_ptr.vmem [resolvable:$true] %s182
      %188 = dma.hbm_to_vmem [thread:$0]  %s15, 32, %s183, [#allocation21], 16, 16, 1
    $region65: #{tpu_custom_call.1} parent=1 // pred_fallthru
      _
    // Predicated region
    $region66: #{tpu_custom_call.1} parent=1 // pred_check
      _
    $region67: #{tpu_custom_call.1} parent=1 // pred_check_branch
      %190 = sbr.rel (0) target = $region69
    $region68: #{tpu_custom_call.1} parent=1 // pred_region
      %s192 = ssub.s32 32, 32
      %193 = vsyncadd [#allocation21], %s192
      %s194 = sshll.u32 [#allocation22], 4
      %s195 = int_to_ptr.vmem [resolvable:$true] %s194
      %200 = dma.hbm_to_vmem [thread:$0]  %s16, 32, %s195, [#allocation21], 16, 16, 1
    $region69: #{tpu_custom_call.1} parent=1 // pred_fallthru
      _
    // Predicated region
    $region70: #{tpu_custom_call.1} parent=1 // pred_check
      _
    $region71: #{tpu_custom_call.1} parent=1 // pred_check_branch
      %202 = sbr.rel (0) target = $region73
    $region72: #{tpu_custom_call.1} parent=1 // pred_region
      %s204 = ssub.s32 32, 32
      %205 = vsyncadd [#allocation24], %s204
      %s206 = sshll.u32 [#allocation23], 4
      %s207 = int_to_ptr.vmem [resolvable:$true] %s206
      %212 = dma.hbm_to_vmem [thread:$0]  %s17, 32, %s207, [#allocation24], 16, 16, 1
    $region73: #{tpu_custom_call.1} parent=1 // pred_fallthru
      _
    // Predicated region
    $region74: #{tpu_custom_call.1} parent=1 // pred_check
      _
    $region75: #{tpu_custom_call.1} parent=1 // pred_check_branch
      %214 = sbr.rel (0) target = $region77
    $region76: #{tpu_custom_call.1} parent=1 // pred_region
      _
    $region77: #{tpu_custom_call.1} parent=1 // pred_fallthru
      _
    // Predicated region
    $region78: #{tpu_custom_call.1} parent=1 // pred_check
      _
    $region79: #{tpu_custom_call.1} parent=1 // pred_check_branch
      %216 = sbr.rel (0) target = $region81
    $region80: #{tpu_custom_call.1} parent=1 // pred_region
      _
    $region81: #{tpu_custom_call.1} parent=1 // pred_fallthru
      _
    // Predicated region
    $region82: #{tpu_custom_call.1} parent=1 // pred_check
      _
    $region83: #{tpu_custom_call.1} parent=1 // pred_check_branch
      %218 = sbr.rel (0) target = $region85
    $region84: #{tpu_custom_call.1} parent=1 // pred_region
      _
    $region85: #{tpu_custom_call.1} parent=1 // pred_fallthru
      _
    // Predicated region
    $region86: #{tpu_custom_call.1} parent=1 // pred_check
      _
    $region87: #{tpu_custom_call.1} parent=1 // pred_check_branch
      %220 = sbr.rel (0) target = $region89
    $region88: #{tpu_custom_call.1} parent=1 // pred_region
      %s222 = ssub.s32 512, 512
      %223 = vsyncadd [#allocation24], %s222
      %s224 = sshll.u32 [#allocation25], 4
      %s225 = int_to_ptr.vmem [resolvable:$true] %s224
      %230 = dma.hbm_to_vmem [thread:$0]  %s21, 512, %s225, [#allocation24], 64, 64, 4
    $region89: #{tpu_custom_call.1} parent=1 // pred_fallthru
      _
    // Predicated region
    $region90: #{tpu_custom_call.1} parent=1 // pred_check
      _
    $region91: #{tpu_custom_call.1} parent=1 // pred_check_branch
      %232 = sbr.rel (0) target = $region93
    $region92: #{tpu_custom_call.1} parent=1 // pred_region
      _
    $region93: #{tpu_custom_call.1} parent=1 // pred_fallthru
      _
    // Predicated region
    $region94: #{tpu_custom_call.1} parent=1 // pred_check
      _
    $region95: #{tpu_custom_call.1} parent=1 // pred_check_branch
      %234 = sbr.rel (0) target = $region97
    $region96: #{tpu_custom_call.1} parent=1 // pred_region
      _
    $region97: #{tpu_custom_call.1} parent=1 // pred_fallthru
      _
    // Predicated region
    $region98: #{tpu_custom_call.1} parent=1 // pred_check
      _
    $region99: #{tpu_custom_call.1} parent=1 // pred_check_branch
      %236 = sbr.rel (0) target = $region101
    $region100: #{tpu_custom_call.1} parent=1 // pred_region
      _
    $region101: #{tpu_custom_call.1} parent=1 // pred_fallthru
      _
    // Predicated region
    $region102: #{tpu_custom_call.1} parent=1 // pred_check
      _
    $region103: #{tpu_custom_call.1} parent=1 // pred_check_branch
      %238 = sbr.rel (0) target = $region105
    $region104: #{tpu_custom_call.1} parent=1 // pred_region
      %239 = dma.done [#allocation3], 256
    $region105: #{tpu_custom_call.1} parent=1 // pred_fallthru
      _
    // Predicated region
    $region106: #{tpu_custom_call.1} parent=1 // pred_check
      _
    $region107: #{tpu_custom_call.1} parent=1 // pred_check_branch
      %241 = sbr.rel (0) target = $region109
    $region108: #{tpu_custom_call.1} parent=1 // pred_region
      %242 = dma.done [#allocation6], 256
    $region109: #{tpu_custom_call.1} parent=1 // pred_fallthru
      _
    // Predicated region
    $region110: #{tpu_custom_call.1} parent=1 // pred_check
      _
    $region111: #{tpu_custom_call.1} parent=1 // pred_check_branch
      %244 = sbr.rel (0) target = $region113
    $region112: #{tpu_custom_call.1} parent=1 // pred_region
      %245 = dma.done [#allocation6], 32
    $region113: #{tpu_custom_call.1} parent=1 // pred_fallthru
      _
    // Predicated region
    $region114: #{tpu_custom_call.1} parent=1 // pred_check
      _
    $region115: #{tpu_custom_call.1} parent=1 // pred_check_branch
      %247 = sbr.rel (0) target = $region117
    $region116: #{tpu_custom_call.1} parent=1 // pred_region
      %248 = dma.done [#allocation9], 32
    $region117: #{tpu_custom_call.1} parent=1 // pred_fallthru
      _
    // Predicated region
    $region118: #{tpu_custom_call.1} parent=1 // pred_check
      _
    $region119: #{tpu_custom_call.1} parent=1 // pred_check_branch
      %250 = sbr.rel (0) target = $region121
    $region120: #{tpu_custom_call.1} parent=1 // pred_region
      %251 = dma.done [#allocation9], 128
    $region121: #{tpu_custom_call.1} parent=1 // pred_fallthru
      _
    // Predicated region
    $region122: #{tpu_custom_call.1} parent=1 // pred_check
      _
    $region123: #{tpu_custom_call.1} parent=1 // pred_check_branch
      %253 = sbr.rel (0) target = $region125
    $region124: #{tpu_custom_call.1} parent=1 // pred_region
      %254 = dma.done [#allocation12], 32
    $region125: #{tpu_custom_call.1} parent=1 // pred_fallthru
      _
    // Predicated region
    $region126: #{tpu_custom_call.1} parent=1 // pred_check
      _
    $region127: #{tpu_custom_call.1} parent=1 // pred_check_branch
      %256 = sbr.rel (0) target = $region129
    $region128: #{tpu_custom_call.1} parent=1 // pred_region
      %257 = dma.done [#allocation12], 32
    $region129: #{tpu_custom_call.1} parent=1 // pred_fallthru
      _
    // Predicated region
    $region130: #{tpu_custom_call.1} parent=1 // pred_check
      _
    $region131: #{tpu_custom_call.1} parent=1 // pred_check_branch
      %259 = sbr.rel (0) target = $region133
    $region132: #{tpu_custom_call.1} parent=1 // pred_region
      %260 = dma.done [#allocation15], 32
    $region133: #{tpu_custom_call.1} parent=1 // pred_fallthru
      _
    // Predicated region
    $region134: #{tpu_custom_call.1} parent=1 // pred_check
      _
    $region135: #{tpu_custom_call.1} parent=1 // pred_check_branch
      %262 = sbr.rel (0) target = $region137
    $region136: #{tpu_custom_call.1} parent=1 // pred_region
      %263 = dma.done [#allocation15], 32
    $region137: #{tpu_custom_call.1} parent=1 // pred_fallthru
      _
    // Predicated region
    $region138: #{tpu_custom_call.1} parent=1 // pred_check
      _
    $region139: #{tpu_custom_call.1} parent=1 // pred_check_branch
      %265 = sbr.rel (0) target = $region141
    $region140: #{tpu_custom_call.1} parent=1 // pred_region
      %266 = dma.done [#allocation18], 512
    $region141: #{tpu_custom_call.1} parent=1 // pred_fallthru
      _
    // Predicated region
    $region142: #{tpu_custom_call.1} parent=1 // pred_check
      _
    $region143: #{tpu_custom_call.1} parent=1 // pred_check_branch
      %268 = sbr.rel (0) target = $region145
    $region144: #{tpu_custom_call.1} parent=1 // pred_region
      %269 = dma.done [#allocation18], 32
    $region145: #{tpu_custom_call.1} parent=1 // pred_fallthru
      _
    // Predicated region
    $region146: #{tpu_custom_call.1} parent=1 // pred_check
      _
    $region147: #{tpu_custom_call.1} parent=1 // pred_check_branch
      %271 = sbr.rel (0) target = $region149
    $region148: #{tpu_custom_call.1} parent=1 // pred_region
      %272 = dma.done [#allocation21], 32
    $region149: #{tpu_custom_call.1} parent=1 // pred_fallthru
      _
    // Predicated region
    $region150: #{tpu_custom_call.1} parent=1 // pred_check
      _
    $region151: #{tpu_custom_call.1} parent=1 // pred_check_branch
      %274 = sbr.rel (0) target = $region153
    $region152: #{tpu_custom_call.1} parent=1 // pred_region
      %275 = dma.done [#allocation21], 32
    $region153: #{tpu_custom_call.1} parent=1 // pred_fallthru
      _
    // Predicated region
    $region154: #{tpu_custom_call.1} parent=1 // pred_check
      _
    $region155: #{tpu_custom_call.1} parent=1 // pred_check_branch
      %277 = sbr.rel (0) target = $region157
    $region156: #{tpu_custom_call.1} parent=1 // pred_region
      %278 = dma.done [#allocation24], 32
    $region157: #{tpu_custom_call.1} parent=1 // pred_fallthru
      _
    // Predicated region
    $region158: #{tpu_custom_call.1} parent=1 // pred_check
      _
    $region159: #{tpu_custom_call.1} parent=1 // pred_check_branch
      %280 = sbr.rel (0) target = $region161
    $region160: #{tpu_custom_call.1} parent=1 // pred_region
      %281 = dma.done [#allocation24], 512
    $region161: #{tpu_custom_call.1} parent=1 // pred_fallthru
      _
    %v283 = vld [vmem:[#allocation2] sm:$0xff]
    %v284 = vld [vmem:[#allocation2 + $0x8] sm:$0xff]
    %v285 = vmul.f32 %v283, 5.656854
    %v286 = vmul.f32 %v284, 5.656854
    %v287 = vld [vmem:[#allocation10] sm:$0xff]
    %v288 = vadd.f32 %v285, %v287
    %v289 = vadd.f32 %v286, %v287
    %v290 = vld [vmem:[#allocation5] sm:$0xff]
    %v291 = vld [vmem:[#allocation5 + $0x8] sm:$0xff]
    %v292 = vpack.c.bf16 %v290, %v290
    %v293 = vpack.c.bf16 %v291, %v291
    %v294 = vlaneseq
    %v295 = vshrl.u32 %v294, 7
    %v296 = vlaneseq
    %v297 = vand.u32 %v296, 127
    %vm298 = vcmp.gt.s32.totalorder %v297, %v295
    %v299 = vld [vmem:[#allocation7] sm:$0x1]
    %v300 = vld [vmem:[#allocation7 + $0x1] sm:$0x1]
    %vm301 = vcmp.gt.f32.partialorder %v299, 0.5
    %vm302 = vcmp.gt.f32.partialorder %v300, 0.5
    %v303 = vsel %vm298, 1, 0
    %vm304 = vcmp.eq.s32.totalorder %v303, 1
    %v305 = vsel %vm301, 1, 0
    %v306 = vsel %vm302, 1, 0
    %v307 = vlaneseq
    %v308 = vshrl.u32 %v307, 7
    %v309 = vsub.s32 0, %v308
    %v310 = vrot.slane %v305, %v309
    %v311 = vlaneseq
    %v312 = vshrl.u32 %v311, 7
    %v313 = vsub.s32 0, %v312
    %v314 = vrot.slane %v306, %v313
    %vm315 = vcmp.eq.s32.totalorder %v310, 1
    %vm316 = vcmp.eq.s32.totalorder %v314, 1
    %vm317 = vmor %vm304, %vm315
    %vm318 = vmor %vm304, %vm316
    %v319 = vsel %vm317, -1e+12, 0.0
    %v320 = vsel %vm318, -1e+12, 0.0
    %v321 = vld [vmem:[#allocation8] sm:$0x1]
    %v322 = vld [vmem:[#allocation8 + $0x1] sm:$0x1]
    %vm323 = vcmp.gt.f32.partialorder %v321, 0.5
    %vm324 = vcmp.gt.f32.partialorder %v322, 0.5
    %v325 = vsel %vm323, -1e+12, 0.0
    %v326 = vsel %vm324, -1e+12, 0.0
    loop: start=0, step=1, limit=2
    $region162: #{tpu_custom_call.1} parent=1 // loop_pre_header
      _
    $region163: #{tpu_custom_call.1} parent=1 // loop_header
      %s328 = sphi 0, %s332
      %p329 = scmp.ge.s32.totalorder %s328, 2
      %v333 = vphi %v288, %v4045
      %v334 = vphi %v289, %v4046
    $region164: #{tpu_custom_call.1} parent=1 // loop_header_branch
      %331 = sbr.rel (%p329) target = $region168
    $region165: #{tpu_custom_call.1} parent=1 // loop_body
      %v335 = vpack.c.bf16 %v334, %v333
      %s336 = smul.u32 %s328, 4
      %s337 = smul.addr %s336, 4
      %s338 = scalar_lea.vmem %s5, %s337
      %v339 = vld [vmem:[%s338] sm:$0xf]
      %v340 = vld [vmem:[%s338 + $0x4] sm:$0xf]
      %v341 = vld [vmem:[%s338 + $0x8] sm:$0xf]
      %v342 = vld [vmem:[%s338 + $0xc] sm:$0xf]
      %s343 = scalar_lea.vmem [#allocation11], %s328
      %v344 = vld [vmem:[%s343] sm:$0x1]
      %v346 = vlaneseq
      %v347 = vshrl.u32 %v346, 7
      %v348 = vsub.s32 0, %v347
      %v349 = vrot.slane %v344, %v348
      %v355 = vunpack.c.l.b16 %v339
      %v356 = vunpack.c.l.b16 %v340
      %v357 = vunpack.c.l.b16 %v341
      %v358 = vunpack.c.l.b16 %v342
      %v359 = vpack.c.b16 %v356, %v355
      %v360 = vpack.c.b16 %v358, %v357
      %vm363 = vcmask 261120
      %v365 = vsel %vm363, %v335, 0
      %367 = vmatprep.subr.bf16.mxu0 0
      %368 = vmatpush1.bf16.msra.mxu0 %v359
      %369 = vmatprep.subr.bf16.mxu0 0
      %370 = vmatpush1.bf16.msra.mxu0 %v360
      %371 = vmatprep.subr.bf16.mxu0 0
      %372 = vmatpush1.bf16.msra.mxu0 0
      %373 = vmatprep.subr.bf16.mxu0 0
      %374 = vmatpush1.bf16.msra.mxu0 0
      %375 = vmatprep.subr.bf16.mxu0 0
      %376 = vmatpush1.bf16.msra.mxu0 0
      %377 = vmatprep.subr.bf16.mxu0 0
      %378 = vmatpush1.bf16.msra.mxu0 0
      %379 = vmatprep.subr.bf16.mxu0 0
      %380 = vmatpush1.bf16.msra.mxu0 0
      %381 = vmatprep.subr.bf16.mxu0 0
      %382 = vmatpush1.bf16.msra.mxu0 0
      %383 = vmatprep.subr.bf16.mxu0 0
      %384 = vmatpush1.bf16.msra.mxu0 0
      %385 = vmatprep.subr.bf16.mxu0 0
      %386 = vmatpush1.bf16.msra.mxu0 0
      %387 = vmatprep.subr.bf16.mxu0 0
      %388 = vmatpush1.bf16.msra.mxu0 0
      %389 = vmatprep.subr.bf16.mxu0 0
      %390 = vmatpush1.bf16.msra.mxu0 0
      %391 = vmatprep.subr.bf16.mxu0 0
      %392 = vmatpush1.bf16.msra.mxu0 0
      %393 = vmatprep.subr.bf16.mxu0 0
      %394 = vmatpush1.bf16.msra.mxu0 0
      %395 = vmatprep.subr.bf16.mxu0 0
      %396 = vmatpush1.bf16.msra.mxu0 0
      %397 = vmatprep.subr.bf16.mxu0 0
      %398 = vmatpush1.bf16.msra.mxu0 0
      %399 = vmatprep.mubr.bf16.mxu0 0
      %400 = vmatmul.mubr.bf16.gmra.mrb[0].mxu0 %v365
      %v401 = vpop.f32.mrb[0].mxu0
      %v402 = vadd.f32 %v349, %v401
      %v403 = vpop.f32.mrb[0].mxu0
      %v404 = vpop.f32.mrb[0].mxu0
      %v405 = vadd.f32 %v349, %v404
      %v406 = vpop.f32.mrb[0].mxu0
      %407 = vdwg.mxu0
      %408 = vxpose.xlu0.b32.start [1/16] %v402, 128
      %409 = vxpose.xlu0.b32.cont [2/16] %v405, 128
      %410 = vxpose.xlu0.b32.cont [3/16] 0.0, 128
      %411 = vxpose.xlu0.b32.cont [4/16] 0.0, 128
      %412 = vxpose.xlu0.b32.cont [5/16] 0.0, 128
      %413 = vxpose.xlu0.b32.cont [6/16] 0.0, 128
      %414 = vxpose.xlu0.b32.cont [7/16] 0.0, 128
      %415 = vxpose.xlu0.b32.cont [8/16] 0.0, 128
      %416 = vxpose.xlu0.b32.cont [9/16] 0.0, 128
      %417 = vxpose.xlu0.b32.cont [10/16] 0.0, 128
      %418 = vxpose.xlu0.b32.cont [11/16] 0.0, 128
      %419 = vxpose.xlu0.b32.cont [12/16] 0.0, 128
      %420 = vxpose.xlu0.b32.cont [13/16] 0.0, 128
      %421 = vxpose.xlu0.b32.cont [14/16] 0.0, 128
      %422 = vxpose.xlu0.b32.cont [15/16] 0.0, 128
      %423 = vxpose.xlu0.b32.end [16/16] 0.0, 128
      %v424 = vpop.trf.xlu0
      %v425 = vpop.trf.xlu0
      %v426 = vpop.trf.xlu0
      %v427 = vpop.trf.xlu0
      %v428 = vpop.trf.xlu0
      %v429 = vpop.trf.xlu0
      %v430 = vpop.trf.xlu0
      %v431 = vpop.trf.xlu0
      %v432 = vpop.trf.xlu0
      %v433 = vpop.trf.xlu0
      %v434 = vpop.trf.xlu0
      %v435 = vpop.trf.xlu0
      %v436 = vpop.trf.xlu0
      %v437 = vpop.trf.xlu0
      %v438 = vpop.trf.xlu0
      %v439 = vpop.trf.xlu0
      %440 = vxpose.xlu0.b32.start [1/16] %v424, 128
      %441 = vxpose.xlu0.b32.cont [2/16] 0.0, 128
      %442 = vxpose.xlu0.b32.cont [3/16] 0.0, 128
      %443 = vxpose.xlu0.b32.cont [4/16] 0.0, 128
      %444 = vxpose.xlu0.b32.cont [5/16] 0.0, 128
      %445 = vxpose.xlu0.b32.cont [6/16] 0.0, 128
      %446 = vxpose.xlu0.b32.cont [7/16] 0.0, 128
      %447 = vxpose.xlu0.b32.cont [8/16] 0.0, 128
      %448 = vxpose.xlu0.b32.cont [9/16] 0.0, 128
      %449 = vxpose.xlu0.b32.cont [10/16] 0.0, 128
      %450 = vxpose.xlu0.b32.cont [11/16] 0.0, 128
      %451 = vxpose.xlu0.b32.cont [12/16] 0.0, 128
      %452 = vxpose.xlu0.b32.cont [13/16] 0.0, 128
      %453 = vxpose.xlu0.b32.cont [14/16] 0.0, 128
      %454 = vxpose.xlu0.b32.cont [15/16] 0.0, 128
      %455 = vxpose.xlu0.b32.end [16/16] 0.0, 128
      %v456 = vpop.trf.xlu0
      %v457 = vpop.trf.xlu0
      %v458 = vpop.trf.xlu0
      %v459 = vpop.trf.xlu0
      %v460 = vpop.trf.xlu0
      %v461 = vpop.trf.xlu0
      %v462 = vpop.trf.xlu0
      %v463 = vpop.trf.xlu0
      %v464 = vpop.trf.xlu0
      %v465 = vpop.trf.xlu0
      %v466 = vpop.trf.xlu0
      %v467 = vpop.trf.xlu0
      %v468 = vpop.trf.xlu0
      %v469 = vpop.trf.xlu0
      %v470 = vpop.trf.xlu0
      %v471 = vpop.trf.xlu0
      %472 = vxpose.xlu0.b32.start [1/16] %v425, 128
      %473 = vxpose.xlu0.b32.cont [2/16] 0.0, 128
      %474 = vxpose.xlu0.b32.cont [3/16] 0.0, 128
      %475 = vxpose.xlu0.b32.cont [4/16] 0.0, 128
      %476 = vxpose.xlu0.b32.cont [5/16] 0.0, 128
      %477 = vxpose.xlu0.b32.cont [6/16] 0.0, 128
      %478 = vxpose.xlu0.b32.cont [7/16] 0.0, 128
      %479 = vxpose.xlu0.b32.cont [8/16] 0.0, 128
      %480 = vxpose.xlu0.b32.cont [9/16] 0.0, 128
      %481 = vxpose.xlu0.b32.cont [10/16] 0.0, 128
      %482 = vxpose.xlu0.b32.cont [11/16] 0.0, 128
      %483 = vxpose.xlu0.b32.cont [12/16] 0.0, 128
      %484 = vxpose.xlu0.b32.cont [13/16] 0.0, 128
      %485 = vxpose.xlu0.b32.cont [14/16] 0.0, 128
      %486 = vxpose.xlu0.b32.cont [15/16] 0.0, 128
      %487 = vxpose.xlu0.b32.end [16/16] 0.0, 128
      %v488 = vpop.trf.xlu0
      %v489 = vpop.trf.xlu0
      %v490 = vpop.trf.xlu0
      %v491 = vpop.trf.xlu0
      %v492 = vpop.trf.xlu0
      %v493 = vpop.trf.xlu0
      %v494 = vpop.trf.xlu0
      %v495 = vpop.trf.xlu0
      %v496 = vpop.trf.xlu0
      %v497 = vpop.trf.xlu0
      %v498 = vpop.trf.xlu0
      %v499 = vpop.trf.xlu0
      %v500 = vpop.trf.xlu0
      %v501 = vpop.trf.xlu0
      %v502 = vpop.trf.xlu0
      %v503 = vpop.trf.xlu0
      %504 = vxpose.xlu0.b32.start [1/16] %v426, 128
      %505 = vxpose.xlu0.b32.cont [2/16] 0.0, 128
      %506 = vxpose.xlu0.b32.cont [3/16] 0.0, 128
      %507 = vxpose.xlu0.b32.cont [4/16] 0.0, 128
      %508 = vxpose.xlu0.b32.cont [5/16] 0.0, 128
      %509 = vxpose.xlu0.b32.cont [6/16] 0.0, 128
      %510 = vxpose.xlu0.b32.cont [7/16] 0.0, 128
      %511 = vxpose.xlu0.b32.cont [8/16] 0.0, 128
      %512 = vxpose.xlu0.b32.cont [9/16] 0.0, 128
      %513 = vxpose.xlu0.b32.cont [10/16] 0.0, 128
      %514 = vxpose.xlu0.b32.cont [11/16] 0.0, 128
      %515 = vxpose.xlu0.b32.cont [12/16] 0.0, 128
      %516 = vxpose.xlu0.b32.cont [13/16] 0.0, 128
      %517 = vxpose.xlu0.b32.cont [14/16] 0.0, 128
      %518 = vxpose.xlu0.b32.cont [15/16] 0.0, 128
      %519 = vxpose.xlu0.b32.end [16/16] 0.0, 128
      %v520 = vpop.trf.xlu0
      %v521 = vpop.trf.xlu0
      %v522 = vpop.trf.xlu0
      %v523 = vpop.trf.xlu0
      %v524 = vpop.trf.xlu0
      %v525 = vpop.trf.xlu0
      %v526 = vpop.trf.xlu0
      %v527 = vpop.trf.xlu0
      %v528 = vpop.trf.xlu0
      %v529 = vpop.trf.xlu0
      %v530 = vpop.trf.xlu0
      %v531 = vpop.trf.xlu0
      %v532 = vpop.trf.xlu0
      %v533 = vpop.trf.xlu0
      %v534 = vpop.trf.xlu0
      %v535 = vpop.trf.xlu0
      %536 = vxpose.xlu0.b32.start [1/16] %v427, 128
      %537 = vxpose.xlu0.b32.cont [2/16] 0.0, 128
      %538 = vxpose.xlu0.b32.cont [3/16] 0.0, 128
      %539 = vxpose.xlu0.b32.cont [4/16] 0.0, 128
      %540 = vxpose.xlu0.b32.cont [5/16] 0.0, 128
      %541 = vxpose.xlu0.b32.cont [6/16] 0.0, 128
      %542 = vxpose.xlu0.b32.cont [7/16] 0.0, 128
      %543 = vxpose.xlu0.b32.cont [8/16] 0.0, 128
      %544 = vxpose.xlu0.b32.cont [9/16] 0.0, 128
      %545 = vxpose.xlu0.b32.cont [10/16] 0.0, 128
      %546 = vxpose.xlu0.b32.cont [11/16] 0.0, 128
      %547 = vxpose.xlu0.b32.cont [12/16] 0.0, 128
      %548 = vxpose.xlu0.b32.cont [13/16] 0.0, 128
      %549 = vxpose.xlu0.b32.cont [14/16] 0.0, 128
      %550 = vxpose.xlu0.b32.cont [15/16] 0.0, 128
      %551 = vxpose.xlu0.b32.end [16/16] 0.0, 128
      %v552 = vpop.trf.xlu0
      %v553 = vpop.trf.xlu0
      %v554 = vpop.trf.xlu0
      %v555 = vpop.trf.xlu0
      %v556 = vpop.trf.xlu0
      %v557 = vpop.trf.xlu0
      %v558 = vpop.trf.xlu0
      %v559 = vpop.trf.xlu0
      %v560 = vpop.trf.xlu0
      %v561 = vpop.trf.xlu0
      %v562 = vpop.trf.xlu0
      %v563 = vpop.trf.xlu0
      %v564 = vpop.trf.xlu0
      %v565 = vpop.trf.xlu0
      %v566 = vpop.trf.xlu0
      %v567 = vpop.trf.xlu0
      %v568 = vpack.c.bf16 %v456, %v456
      %v569 = vpack.c.bf16 %v457, %v457
      %v570 = vpack.c.bf16 %v488, %v488
      %v571 = vpack.c.bf16 %v489, %v489
      %v572 = vpack.c.bf16 %v520, %v520
      %v573 = vpack.c.bf16 %v521, %v521
      %v574 = vpack.c.bf16 %v552, %v552
      %v575 = vpack.c.bf16 %v553, %v553
      %578 = vrot.lane.b32.xlu0 %v402, 96
      %v579 = vpop.permute.xlu0 %578
      %580 = vrot.lane.b32.xlu0 %v405, 96
      %v581 = vpop.permute.xlu0 %580
      %584 = vxpose.xlu0.b32.start [1/16] %v579, 128
      %585 = vxpose.xlu0.b32.cont [2/16] %v581, 128
      %586 = vxpose.xlu0.b32.cont [3/16] 0.0, 128
      %587 = vxpose.xlu0.b32.cont [4/16] 0.0, 128
      %588 = vxpose.xlu0.b32.cont [5/16] 0.0, 128
      %589 = vxpose.xlu0.b32.cont [6/16] 0.0, 128
      %590 = vxpose.xlu0.b32.cont [7/16] 0.0, 128
      %591 = vxpose.xlu0.b32.cont [8/16] 0.0, 128
      %592 = vxpose.xlu0.b32.cont [9/16] 0.0, 128
      %593 = vxpose.xlu0.b32.cont [10/16] 0.0, 128
      %594 = vxpose.xlu0.b32.cont [11/16] 0.0, 128
      %595 = vxpose.xlu0.b32.cont [12/16] 0.0, 128
      %596 = vxpose.xlu0.b32.cont [13/16] 0.0, 128
      %597 = vxpose.xlu0.b32.cont [14/16] 0.0, 128
      %598 = vxpose.xlu0.b32.cont [15/16] 0.0, 128
      %599 = vxpose.xlu0.b32.end [16/16] 0.0, 128
      %v600 = vpop.trf.xlu0
      %v601 = vpop.trf.xlu0
      %v602 = vpop.trf.xlu0
      %v603 = vpop.trf.xlu0
      %v604 = vpop.trf.xlu0
      %v605 = vpop.trf.xlu0
      %v606 = vpop.trf.xlu0
      %v607 = vpop.trf.xlu0
      %v608 = vpop.trf.xlu0
      %v609 = vpop.trf.xlu0
      %v610 = vpop.trf.xlu0
      %v611 = vpop.trf.xlu0
      %v612 = vpop.trf.xlu0
      %v613 = vpop.trf.xlu0
      %v614 = vpop.trf.xlu0
      %v615 = vpop.trf.xlu0
      %616 = vxpose.xlu0.b32.start [1/16] %v600, 128
      %617 = vxpose.xlu0.b32.cont [2/16] 0.0, 128
      %618 = vxpose.xlu0.b32.cont [3/16] 0.0, 128
      %619 = vxpose.xlu0.b32.cont [4/16] 0.0, 128
      %620 = vxpose.xlu0.b32.cont [5/16] 0.0, 128
      %621 = vxpose.xlu0.b32.cont [6/16] 0.0, 128
      %622 = vxpose.xlu0.b32.cont [7/16] 0.0, 128
      %623 = vxpose.xlu0.b32.cont [8/16] 0.0, 128
      %624 = vxpose.xlu0.b32.cont [9/16] 0.0, 128
      %625 = vxpose.xlu0.b32.cont [10/16] 0.0, 128
      %626 = vxpose.xlu0.b32.cont [11/16] 0.0, 128
      %627 = vxpose.xlu0.b32.cont [12/16] 0.0, 128
      %628 = vxpose.xlu0.b32.cont [13/16] 0.0, 128
      %629 = vxpose.xlu0.b32.cont [14/16] 0.0, 128
      %630 = vxpose.xlu0.b32.cont [15/16] 0.0, 128
      %631 = vxpose.xlu0.b32.end [16/16] 0.0, 128
      %v632 = vpop.trf.xlu0
      %v633 = vpop.trf.xlu0
      %v634 = vpop.trf.xlu0
      %v635 = vpop.trf.xlu0
      %v636 = vpop.trf.xlu0
      %v637 = vpop.trf.xlu0
      %v638 = vpop.trf.xlu0
      %v639 = vpop.trf.xlu0
      %v640 = vpop.trf.xlu0
      %v641 = vpop.trf.xlu0
      %v642 = vpop.trf.xlu0
      %v643 = vpop.trf.xlu0
      %v644 = vpop.trf.xlu0
      %v645 = vpop.trf.xlu0
      %v646 = vpop.trf.xlu0
      %v647 = vpop.trf.xlu0
      %648 = vxpose.xlu0.b32.start [1/16] %v601, 128
      %649 = vxpose.xlu0.b32.cont [2/16] 0.0, 128
      %650 = vxpose.xlu0.b32.cont [3/16] 0.0, 128
      %651 = vxpose.xlu0.b32.cont [4/16] 0.0, 128
      %652 = vxpose.xlu0.b32.cont [5/16] 0.0, 128
      %653 = vxpose.xlu0.b32.cont [6/16] 0.0, 128
      %654 = vxpose.xlu0.b32.cont [7/16] 0.0, 128
      %655 = vxpose.xlu0.b32.cont [8/16] 0.0, 128
      %656 = vxpose.xlu0.b32.cont [9/16] 0.0, 128
      %657 = vxpose.xlu0.b32.cont [10/16] 0.0, 128
      %658 = vxpose.xlu0.b32.cont [11/16] 0.0, 128
      %659 = vxpose.xlu0.b32.cont [12/16] 0.0, 128
      %660 = vxpose.xlu0.b32.cont [13/16] 0.0, 128
      %661 = vxpose.xlu0.b32.cont [14/16] 0.0, 128
      %662 = vxpose.xlu0.b32.cont [15/16] 0.0, 128
      %663 = vxpose.xlu0.b32.end [16/16] 0.0, 128
      %v664 = vpop.trf.xlu0
      %v665 = vpop.trf.xlu0
      %v666 = vpop.trf.xlu0
      %v667 = vpop.trf.xlu0
      %v668 = vpop.trf.xlu0
      %v669 = vpop.trf.xlu0
      %v670 = vpop.trf.xlu0
      %v671 = vpop.trf.xlu0
      %v672 = vpop.trf.xlu0
      %v673 = vpop.trf.xlu0
      %v674 = vpop.trf.xlu0
      %v675 = vpop.trf.xlu0
      %v676 = vpop.trf.xlu0
      %v677 = vpop.trf.xlu0
      %v678 = vpop.trf.xlu0
      %v679 = vpop.trf.xlu0
      %680 = vxpose.xlu0.b32.start [1/16] %v602, 128
      %681 = vxpose.xlu0.b32.cont [2/16] 0.0, 128
      %682 = vxpose.xlu0.b32.cont [3/16] 0.0, 128
      %683 = vxpose.xlu0.b32.cont [4/16] 0.0, 128
      %684 = vxpose.xlu0.b32.cont [5/16] 0.0, 128
      %685 = vxpose.xlu0.b32.cont [6/16] 0.0, 128
      %686 = vxpose.xlu0.b32.cont [7/16] 0.0, 128
      %687 = vxpose.xlu0.b32.cont [8/16] 0.0, 128
      %688 = vxpose.xlu0.b32.cont [9/16] 0.0, 128
      %689 = vxpose.xlu0.b32.cont [10/16] 0.0, 128
      %690 = vxpose.xlu0.b32.cont [11/16] 0.0, 128
      %691 = vxpose.xlu0.b32.cont [12/16] 0.0, 128
      %692 = vxpose.xlu0.b32.cont [13/16] 0.0, 128
      %693 = vxpose.xlu0.b32.cont [14/16] 0.0, 128
      %694 = vxpose.xlu0.b32.cont [15/16] 0.0, 128
      %695 = vxpose.xlu0.b32.end [16/16] 0.0, 128
      %v696 = vpop.trf.xlu0
      %v697 = vpop.trf.xlu0
      %v698 = vpop.trf.xlu0
      %v699 = vpop.trf.xlu0
      %v700 = vpop.trf.xlu0
      %v701 = vpop.trf.xlu0
      %v702 = vpop.trf.xlu0
      %v703 = vpop.trf.xlu0
      %v704 = vpop.trf.xlu0
      %v705 = vpop.trf.xlu0
      %v706 = vpop.trf.xlu0
      %v707 = vpop.trf.xlu0
      %v708 = vpop.trf.xlu0
      %v709 = vpop.trf.xlu0
      %v710 = vpop.trf.xlu0
      %v711 = vpop.trf.xlu0
      %712 = vxpose.xlu0.b32.start [1/16] %v603, 128
      %713 = vxpose.xlu0.b32.cont [2/16] 0.0, 128
      %714 = vxpose.xlu0.b32.cont [3/16] 0.0, 128
      %715 = vxpose.xlu0.b32.cont [4/16] 0.0, 128
      %716 = vxpose.xlu0.b32.cont [5/16] 0.0, 128
      %717 = vxpose.xlu0.b32.cont [6/16] 0.0, 128
      %718 = vxpose.xlu0.b32.cont [7/16] 0.0, 128
      %719 = vxpose.xlu0.b32.cont [8/16] 0.0, 128
      %720 = vxpose.xlu0.b32.cont [9/16] 0.0, 128
      %721 = vxpose.xlu0.b32.cont [10/16] 0.0, 128
      %722 = vxpose.xlu0.b32.cont [11/16] 0.0, 128
      %723 = vxpose.xlu0.b32.cont [12/16] 0.0, 128
      %724 = vxpose.xlu0.b32.cont [13/16] 0.0, 128
      %725 = vxpose.xlu0.b32.cont [14/16] 0.0, 128
      %726 = vxpose.xlu0.b32.cont [15/16] 0.0, 128
      %727 = vxpose.xlu0.b32.end [16/16] 0.0, 128
      %v728 = vpop.trf.xlu0
      %v729 = vpop.trf.xlu0
      %v730 = vpop.trf.xlu0
      %v731 = vpop.trf.xlu0
      %v732 = vpop.trf.xlu0
      %v733 = vpop.trf.xlu0
      %v734 = vpop.trf.xlu0
      %v735 = vpop.trf.xlu0
      %v736 = vpop.trf.xlu0
      %v737 = vpop.trf.xlu0
      %v738 = vpop.trf.xlu0
      %v739 = vpop.trf.xlu0
      %v740 = vpop.trf.xlu0
      %v741 = vpop.trf.xlu0
      %v742 = vpop.trf.xlu0
      %v743 = vpop.trf.xlu0
      %v744 = vpack.c.bf16 %v632, %v632
      %v745 = vpack.c.bf16 %v633, %v633
      %v746 = vpack.c.bf16 %v664, %v664
      %v747 = vpack.c.bf16 %v665, %v665
      %v748 = vpack.c.bf16 %v696, %v696
      %v749 = vpack.c.bf16 %v697, %v697
      %v750 = vpack.c.bf16 %v728, %v728
      %v751 = vpack.c.bf16 %v729, %v729
      %752 = vrot.lane.b32.xlu0 %v402, 64
      %v753 = vpop.permute.xlu0 %752
      %754 = vrot.lane.b32.xlu0 %v405, 64
      %v755 = vpop.permute.xlu0 %754
      %758 = vxpose.xlu0.b32.start [1/16] %v753, 128
      %759 = vxpose.xlu0.b32.cont [2/16] %v755, 128
      %760 = vxpose.xlu0.b32.cont [3/16] 0.0, 128
      %761 = vxpose.xlu0.b32.cont [4/16] 0.0, 128
      %762 = vxpose.xlu0.b32.cont [5/16] 0.0, 128
      %763 = vxpose.xlu0.b32.cont [6/16] 0.0, 128
      %764 = vxpose.xlu0.b32.cont [7/16] 0.0, 128
      %765 = vxpose.xlu0.b32.cont [8/16] 0.0, 128
      %766 = vxpose.xlu0.b32.cont [9/16] 0.0, 128
      %767 = vxpose.xlu0.b32.cont [10/16] 0.0, 128
      %768 = vxpose.xlu0.b32.cont [11/16] 0.0, 128
      %769 = vxpose.xlu0.b32.cont [12/16] 0.0, 128
      %770 = vxpose.xlu0.b32.cont [13/16] 0.0, 128
      %771 = vxpose.xlu0.b32.cont [14/16] 0.0, 128
      %772 = vxpose.xlu0.b32.cont [15/16] 0.0, 128
      %773 = vxpose.xlu0.b32.end [16/16] 0.0, 128
      %v774 = vpop.trf.xlu0
      %v775 = vpop.trf.xlu0
      %v776 = vpop.trf.xlu0
      %v777 = vpop.trf.xlu0
      %v778 = vpop.trf.xlu0
      %v779 = vpop.trf.xlu0
      %v780 = vpop.trf.xlu0
      %v781 = vpop.trf.xlu0
      %v782 = vpop.trf.xlu0
      %v783 = vpop.trf.xlu0
      %v784 = vpop.trf.xlu0
      %v785 = vpop.trf.xlu0
      %v786 = vpop.trf.xlu0
      %v787 = vpop.trf.xlu0
      %v788 = vpop.trf.xlu0
      %v789 = vpop.trf.xlu0
      %790 = vxpose.xlu0.b32.start [1/16] %v774, 128
      %791 = vxpose.xlu0.b32.cont [2/16] 0.0, 128
      %792 = vxpose.xlu0.b32.cont [3/16] 0.0, 128
      %793 = vxpose.xlu0.b32.cont [4/16] 0.0, 128
      %794 = vxpose.xlu0.b32.cont [5/16] 0.0, 128
      %795 = vxpose.xlu0.b32.cont [6/16] 0.0, 128
      %796 = vxpose.xlu0.b32.cont [7/16] 0.0, 128
      %797 = vxpose.xlu0.b32.cont [8/16] 0.0, 128
      %798 = vxpose.xlu0.b32.cont [9/16] 0.0, 128
      %799 = vxpose.xlu0.b32.cont [10/16] 0.0, 128
      %800 = vxpose.xlu0.b32.cont [11/16] 0.0, 128
      %801 = vxpose.xlu0.b32.cont [12/16] 0.0, 128
      %802 = vxpose.xlu0.b32.cont [13/16] 0.0, 128
      %803 = vxpose.xlu0.b32.cont [14/16] 0.0, 128
      %804 = vxpose.xlu0.b32.cont [15/16] 0.0, 128
      %805 = vxpose.xlu0.b32.end [16/16] 0.0, 128
      %v806 = vpop.trf.xlu0
      %v807 = vpop.trf.xlu0
      %v808 = vpop.trf.xlu0
      %v809 = vpop.trf.xlu0
      %v810 = vpop.trf.xlu0
      %v811 = vpop.trf.xlu0
      %v812 = vpop.trf.xlu0
      %v813 = vpop.trf.xlu0
      %v814 = vpop.trf.xlu0
      %v815 = vpop.trf.xlu0
      %v816 = vpop.trf.xlu0
      %v817 = vpop.trf.xlu0
      %v818 = vpop.trf.xlu0
      %v819 = vpop.trf.xlu0
      %v820 = vpop.trf.xlu0
      %v821 = vpop.trf.xlu0
      %822 = vxpose.xlu0.b32.start [1/16] %v775, 128
      %823 = vxpose.xlu0.b32.cont [2/16] 0.0, 128
      %824 = vxpose.xlu0.b32.cont [3/16] 0.0, 128
      %825 = vxpose.xlu0.b32.cont [4/16] 0.0, 128
      %826 = vxpose.xlu0.b32.cont [5/16] 0.0, 128
      %827 = vxpose.xlu0.b32.cont [6/16] 0.0, 128
      %828 = vxpose.xlu0.b32.cont [7/16] 0.0, 128
      %829 = vxpose.xlu0.b32.cont [8/16] 0.0, 128
      %830 = vxpose.xlu0.b32.cont [9/16] 0.0, 128
      %831 = vxpose.xlu0.b32.cont [10/16] 0.0, 128
      %832 = vxpose.xlu0.b32.cont [11/16] 0.0, 128
      %833 = vxpose.xlu0.b32.cont [12/16] 0.0, 128
      %834 = vxpose.xlu0.b32.cont [13/16] 0.0, 128
      %835 = vxpose.xlu0.b32.cont [14/16] 0.0, 128
      %836 = vxpose.xlu0.b32.cont [15/16] 0.0, 128
      %837 = vxpose.xlu0.b32.end [16/16] 0.0, 128
      %v838 = vpop.trf.xlu0
      %v839 = vpop.trf.xlu0
      %v840 = vpop.trf.xlu0
      %v841 = vpop.trf.xlu0
      %v842 = vpop.trf.xlu0
      %v843 = vpop.trf.xlu0
      %v844 = vpop.trf.xlu0
      %v845 = vpop.trf.xlu0
      %v846 = vpop.trf.xlu0
      %v847 = vpop.trf.xlu0
      %v848 = vpop.trf.xlu0
      %v849 = vpop.trf.xlu0
      %v850 = vpop.trf.xlu0
      %v851 = vpop.trf.xlu0
      %v852 = vpop.trf.xlu0
      %v853 = vpop.trf.xlu0
      %854 = vxpose.xlu0.b32.start [1/16] %v776, 128
      %855 = vxpose.xlu0.b32.cont [2/16] 0.0, 128
      %856 = vxpose.xlu0.b32.cont [3/16] 0.0, 128
      %857 = vxpose.xlu0.b32.cont [4/16] 0.0, 128
      %858 = vxpose.xlu0.b32.cont [5/16] 0.0, 128
      %859 = vxpose.xlu0.b32.cont [6/16] 0.0, 128
      %860 = vxpose.xlu0.b32.cont [7/16] 0.0, 128
      %861 = vxpose.xlu0.b32.cont [8/16] 0.0, 128
      %862 = vxpose.xlu0.b32.cont [9/16] 0.0, 128
      %863 = vxpose.xlu0.b32.cont [10/16] 0.0, 128
      %864 = vxpose.xlu0.b32.cont [11/16] 0.0, 128
      %865 = vxpose.xlu0.b32.cont [12/16] 0.0, 128
      %866 = vxpose.xlu0.b32.cont [13/16] 0.0, 128
      %867 = vxpose.xlu0.b32.cont [14/16] 0.0, 128
      %868 = vxpose.xlu0.b32.cont [15/16] 0.0, 128
      %869 = vxpose.xlu0.b32.end [16/16] 0.0, 128
      %v870 = vpop.trf.xlu0
      %v871 = vpop.trf.xlu0
      %v872 = vpop.trf.xlu0
      %v873 = vpop.trf.xlu0
      %v874 = vpop.trf.xlu0
      %v875 = vpop.trf.xlu0
      %v876 = vpop.trf.xlu0
      %v877 = vpop.trf.xlu0
      %v878 = vpop.trf.xlu0
      %v879 = vpop.trf.xlu0
      %v880 = vpop.trf.xlu0
      %v881 = vpop.trf.xlu0
      %v882 = vpop.trf.xlu0
      %v883 = vpop.trf.xlu0
      %v884 = vpop.trf.xlu0
      %v885 = vpop.trf.xlu0
      %886 = vxpose.xlu0.b32.start [1/16] %v777, 128
      %887 = vxpose.xlu0.b32.cont [2/16] 0.0, 128
      %888 = vxpose.xlu0.b32.cont [3/16] 0.0, 128
      %889 = vxpose.xlu0.b32.cont [4/16] 0.0, 128
      %890 = vxpose.xlu0.b32.cont [5/16] 0.0, 128
      %891 = vxpose.xlu0.b32.cont [6/16] 0.0, 128
      %892 = vxpose.xlu0.b32.cont [7/16] 0.0, 128
      %893 = vxpose.xlu0.b32.cont [8/16] 0.0, 128
      %894 = vxpose.xlu0.b32.cont [9/16] 0.0, 128
      %895 = vxpose.xlu0.b32.cont [10/16] 0.0, 128
      %896 = vxpose.xlu0.b32.cont [11/16] 0.0, 128
      %897 = vxpose.xlu0.b32.cont [12/16] 0.0, 128
      %898 = vxpose.xlu0.b32.cont [13/16] 0.0, 128
      %899 = vxpose.xlu0.b32.cont [14/16] 0.0, 128
      %900 = vxpose.xlu0.b32.cont [15/16] 0.0, 128
      %901 = vxpose.xlu0.b32.end [16/16] 0.0, 128
      %v902 = vpop.trf.xlu0
      %v903 = vpop.trf.xlu0
      %v904 = vpop.trf.xlu0
      %v905 = vpop.trf.xlu0
      %v906 = vpop.trf.xlu0
      %v907 = vpop.trf.xlu0
      %v908 = vpop.trf.xlu0
      %v909 = vpop.trf.xlu0
      %v910 = vpop.trf.xlu0
      %v911 = vpop.trf.xlu0
      %v912 = vpop.trf.xlu0
      %v913 = vpop.trf.xlu0
      %v914 = vpop.trf.xlu0
      %v915 = vpop.trf.xlu0
      %v916 = vpop.trf.xlu0
      %v917 = vpop.trf.xlu0
      %v918 = vpack.c.bf16 %v806, %v806
      %v919 = vpack.c.bf16 %v807, %v807
      %v920 = vpack.c.bf16 %v838, %v838
      %v921 = vpack.c.bf16 %v839, %v839
      %v922 = vpack.c.bf16 %v870, %v870
      %v923 = vpack.c.bf16 %v871, %v871
      %v924 = vpack.c.bf16 %v902, %v902
      %v925 = vpack.c.bf16 %v903, %v903
      %vm926 = vcmask 64512
      %v928 = vsel %vm926, %v568, 0
      %v931 = vsel %vm926, %v744, 0
      %933 = vmatprep.subr.bf16.mxu0 0
      %934 = vmatpush1.bf16.xpose.msra.mxu0 %v931
      %935 = vmatprep.subr.bf16.mxu0 0
      %936 = vmatpush1.bf16.xpose.msra.mxu0 0
      %937 = vmatprep.subr.bf16.mxu0 0
      %938 = vmatpush1.bf16.xpose.msra.mxu0 0
      %939 = vmatprep.subr.bf16.mxu0 0
      %940 = vmatpush1.bf16.xpose.msra.mxu0 0
      %941 = vmatprep.subr.bf16.mxu0 0
      %942 = vmatpush1.bf16.xpose.msra.mxu0 0
      %943 = vmatprep.subr.bf16.mxu0 0
      %944 = vmatpush1.bf16.xpose.msra.mxu0 0
      %945 = vmatprep.subr.bf16.mxu0 0
      %946 = vmatpush1.bf16.xpose.msra.mxu0 0
      %947 = vmatprep.subr.bf16.mxu0 0
      %948 = vmatpush1.bf16.xpose.msra.mxu0 0
      %949 = vmatprep.subr.bf16.mxu0 0
      %950 = vmatpush1.bf16.xpose.msra.mxu0 0
      %951 = vmatprep.subr.bf16.mxu0 0
      %952 = vmatpush1.bf16.xpose.msra.mxu0 0
      %953 = vmatprep.subr.bf16.mxu0 0
      %954 = vmatpush1.bf16.xpose.msra.mxu0 0
      %955 = vmatprep.subr.bf16.mxu0 0
      %956 = vmatpush1.bf16.xpose.msra.mxu0 0
      %957 = vmatprep.subr.bf16.mxu0 0
      %958 = vmatpush1.bf16.xpose.msra.mxu0 0
      %959 = vmatprep.subr.bf16.mxu0 0
      %960 = vmatpush1.bf16.xpose.msra.mxu0 0
      %961 = vmatprep.subr.bf16.mxu0 0
      %962 = vmatpush1.bf16.xpose.msra.mxu0 0
      %963 = vmatprep.subr.bf16.mxu0 0
      %964 = vmatpush1.bf16.xpose.msra.mxu0 0
      %965 = vmatprep.mubr.bf16.mxu0 0
      %966 = vmatmul.mubr.bf16.gmra.mrb[0].mxu0 %v928
      %v967 = vpop.f32.mrb[0].mxu0
      %v968 = vadd.f32 0.0, %v967
      %v969 = vpop.f32.mrb[0].mxu0
      %v970 = vpop.f32.mrb[0].mxu0
      %v971 = vpop.f32.mrb[0].mxu0
      %972 = vdwg.mxu0
      %v974 = vsel %vm926, %v569, 0
      %v977 = vsel %vm926, %v745, 0
      %979 = vmatprep.subr.bf16.mxu0 0
      %980 = vmatpush1.bf16.xpose.msra.mxu0 %v977
      %981 = vmatprep.subr.bf16.mxu0 0
      %982 = vmatpush1.bf16.xpose.msra.mxu0 0
      %983 = vmatprep.subr.bf16.mxu0 0
      %984 = vmatpush1.bf16.xpose.msra.mxu0 0
      %985 = vmatprep.subr.bf16.mxu0 0
      %986 = vmatpush1.bf16.xpose.msra.mxu0 0
      %987 = vmatprep.subr.bf16.mxu0 0
      %988 = vmatpush1.bf16.xpose.msra.mxu0 0
      %989 = vmatprep.subr.bf16.mxu0 0
      %990 = vmatpush1.bf16.xpose.msra.mxu0 0
      %991 = vmatprep.subr.bf16.mxu0 0
      %992 = vmatpush1.bf16.xpose.msra.mxu0 0
      %993 = vmatprep.subr.bf16.mxu0 0
      %994 = vmatpush1.bf16.xpose.msra.mxu0 0
      %995 = vmatprep.subr.bf16.mxu0 0
      %996 = vmatpush1.bf16.xpose.msra.mxu0 0
      %997 = vmatprep.subr.bf16.mxu0 0
      %998 = vmatpush1.bf16.xpose.msra.mxu0 0
      %999 = vmatprep.subr.bf16.mxu0 0
      %1000 = vmatpush1.bf16.xpose.msra.mxu0 0
      %1001 = vmatprep.subr.bf16.mxu0 0
      %1002 = vmatpush1.bf16.xpose.msra.mxu0 0
      %1003 = vmatprep.subr.bf16.mxu0 0
      %1004 = vmatpush1.bf16.xpose.msra.mxu0 0
      %1005 = vmatprep.subr.bf16.mxu0 0
      %1006 = vmatpush1.bf16.xpose.msra.mxu0 0
      %1007 = vmatprep.subr.bf16.mxu0 0
      %1008 = vmatpush1.bf16.xpose.msra.mxu0 0
      %1009 = vmatprep.subr.bf16.mxu0 0
      %1010 = vmatpush1.bf16.xpose.msra.mxu0 0
      %1011 = vmatprep.mubr.bf16.mxu0 0
      %1012 = vmatmul.mubr.bf16.gmra.mrb[0].mxu0 %v974
      %v1013 = vpop.f32.mrb[0].mxu0
      %v1014 = vadd.f32 0.0, %v1013
      %v1015 = vpop.f32.mrb[0].mxu0
      %v1016 = vpop.f32.mrb[0].mxu0
      %v1017 = vpop.f32.mrb[0].mxu0
      %1018 = vdwg.mxu0
      %v1020 = vsel %vm926, %v570, 0
      %v1023 = vsel %vm926, %v746, 0
      %1025 = vmatprep.subr.bf16.mxu0 0
      %1026 = vmatpush1.bf16.xpose.msra.mxu0 %v1023
      %1027 = vmatprep.subr.bf16.mxu0 0
      %1028 = vmatpush1.bf16.xpose.msra.mxu0 0
      %1029 = vmatprep.subr.bf16.mxu0 0
      %1030 = vmatpush1.bf16.xpose.msra.mxu0 0
      %1031 = vmatprep.subr.bf16.mxu0 0
      %1032 = vmatpush1.bf16.xpose.msra.mxu0 0
      %1033 = vmatprep.subr.bf16.mxu0 0
      %1034 = vmatpush1.bf16.xpose.msra.mxu0 0
      %1035 = vmatprep.subr.bf16.mxu0 0
      %1036 = vmatpush1.bf16.xpose.msra.mxu0 0
      %1037 = vmatprep.subr.bf16.mxu0 0
      %1038 = vmatpush1.bf16.xpose.msra.mxu0 0
      %1039 = vmatprep.subr.bf16.mxu0 0
      %1040 = vmatpush1.bf16.xpose.msra.mxu0 0
      %1041 = vmatprep.subr.bf16.mxu0 0
      %1042 = vmatpush1.bf16.xpose.msra.mxu0 0
      %1043 = vmatprep.subr.bf16.mxu0 0
      %1044 = vmatpush1.bf16.xpose.msra.mxu0 0
      %1045 = vmatprep.subr.bf16.mxu0 0
      %1046 = vmatpush1.bf16.xpose.msra.mxu0 0
      %1047 = vmatprep.subr.bf16.mxu0 0
      %1048 = vmatpush1.bf16.xpose.msra.mxu0 0
      %1049 = vmatprep.subr.bf16.mxu0 0
      %1050 = vmatpush1.bf16.xpose.msra.mxu0 0
      %1051 = vmatprep.subr.bf16.mxu0 0
      %1052 = vmatpush1.bf16.xpose.msra.mxu0 0
      %1053 = vmatprep.subr.bf16.mxu0 0
      %1054 = vmatpush1.bf16.xpose.msra.mxu0 0
      %1055 = vmatprep.subr.bf16.mxu0 0
      %1056 = vmatpush1.bf16.xpose.msra.mxu0 0
      %1057 = vmatprep.mubr.bf16.mxu0 0
      %1058 = vmatmul.mubr.bf16.gmra.mrb[0].mxu0 %v1020
      %v1059 = vpop.f32.mrb[0].mxu0
      %v1060 = vadd.f32 0.0, %v1059
      %v1061 = vpop.f32.mrb[0].mxu0
      %v1062 = vpop.f32.mrb[0].mxu0
      %v1063 = vpop.f32.mrb[0].mxu0
      %1064 = vdwg.mxu0
      %v1066 = vsel %vm926, %v571, 0
      %v1069 = vsel %vm926, %v747, 0
      %1071 = vmatprep.subr.bf16.mxu0 0
      %1072 = vmatpush1.bf16.xpose.msra.mxu0 %v1069
      %1073 = vmatprep.subr.bf16.mxu0 0
      %1074 = vmatpush1.bf16.xpose.msra.mxu0 0
      %1075 = vmatprep.subr.bf16.mxu0 0
      %1076 = vmatpush1.bf16.xpose.msra.mxu0 0
      %1077 = vmatprep.subr.bf16.mxu0 0
      %1078 = vmatpush1.bf16.xpose.msra.mxu0 0
      %1079 = vmatprep.subr.bf16.mxu0 0
      %1080 = vmatpush1.bf16.xpose.msra.mxu0 0
      %1081 = vmatprep.subr.bf16.mxu0 0
      %1082 = vmatpush1.bf16.xpose.msra.mxu0 0
      %1083 = vmatprep.subr.bf16.mxu0 0
      %1084 = vmatpush1.bf16.xpose.msra.mxu0 0
      %1085 = vmatprep.subr.bf16.mxu0 0
      %1086 = vmatpush1.bf16.xpose.msra.mxu0 0
      %1087 = vmatprep.subr.bf16.mxu0 0
      %1088 = vmatpush1.bf16.xpose.msra.mxu0 0
      %1089 = vmatprep.subr.bf16.mxu0 0
      %1090 = vmatpush1.bf16.xpose.msra.mxu0 0
      %1091 = vmatprep.subr.bf16.mxu0 0
      %1092 = vmatpush1.bf16.xpose.msra.mxu0 0
      %1093 = vmatprep.subr.bf16.mxu0 0
      %1094 = vmatpush1.bf16.xpose.msra.mxu0 0
      %1095 = vmatprep.subr.bf16.mxu0 0
      %1096 = vmatpush1.bf16.xpose.msra.mxu0 0
      %1097 = vmatprep.subr.bf16.mxu0 0
      %1098 = vmatpush1.bf16.xpose.msra.mxu0 0
      %1099 = vmatprep.subr.bf16.mxu0 0
      %1100 = vmatpush1.bf16.xpose.msra.mxu0 0
      %1101 = vmatprep.subr.bf16.mxu0 0
      %1102 = vmatpush1.bf16.xpose.msra.mxu0 0
      %1103 = vmatprep.mubr.bf16.mxu0 0
      %1104 = vmatmul.mubr.bf16.gmra.mrb[0].mxu0 %v1066
      %v1105 = vpop.f32.mrb[0].mxu0
      %v1106 = vadd.f32 0.0, %v1105
      %v1107 = vpop.f32.mrb[0].mxu0
      %v1108 = vpop.f32.mrb[0].mxu0
      %v1109 = vpop.f32.mrb[0].mxu0
      %1110 = vdwg.mxu0
      %v1112 = vsel %vm926, %v572, 0
      %v1115 = vsel %vm926, %v748, 0
      %1117 = vmatprep.subr.bf16.mxu0 0
      %1118 = vmatpush1.bf16.xpose.msra.mxu0 %v1115
      %1119 = vmatprep.subr.bf16.mxu0 0
      %1120 = vmatpush1.bf16.xpose.msra.mxu0 0
      %1121 = vmatprep.subr.bf16.mxu0 0
      %1122 = vmatpush1.bf16.xpose.msra.mxu0 0
      %1123 = vmatprep.subr.bf16.mxu0 0
      %1124 = vmatpush1.bf16.xpose.msra.mxu0 0
      %1125 = vmatprep.subr.bf16.mxu0 0
      %1126 = vmatpush1.bf16.xpose.msra.mxu0 0
      %1127 = vmatprep.subr.bf16.mxu0 0
      %1128 = vmatpush1.bf16.xpose.msra.mxu0 0
      %1129 = vmatprep.subr.bf16.mxu0 0
      %1130 = vmatpush1.bf16.xpose.msra.mxu0 0
      %1131 = vmatprep.subr.bf16.mxu0 0
      %1132 = vmatpush1.bf16.xpose.msra.mxu0 0
      %1133 = vmatprep.subr.bf16.mxu0 0
      %1134 = vmatpush1.bf16.xpose.msra.mxu0 0
      %1135 = vmatprep.subr.bf16.mxu0 0
      %1136 = vmatpush1.bf16.xpose.msra.mxu0 0
      %1137 = vmatprep.subr.bf16.mxu0 0
      %1138 = vmatpush1.bf16.xpose.msra.mxu0 0
      %1139 = vmatprep.subr.bf16.mxu0 0
      %1140 = vmatpush1.bf16.xpose.msra.mxu0 0
      %1141 = vmatprep.subr.bf16.mxu0 0
      %1142 = vmatpush1.bf16.xpose.msra.mxu0 0
      %1143 = vmatprep.subr.bf16.mxu0 0
      %1144 = vmatpush1.bf16.xpose.msra.mxu0 0
      %1145 = vmatprep.subr.bf16.mxu0 0
      %1146 = vmatpush1.bf16.xpose.msra.mxu0 0
      %1147 = vmatprep.subr.bf16.mxu0 0
      %1148 = vmatpush1.bf16.xpose.msra.mxu0 0
      %1149 = vmatprep.mubr.bf16.mxu0 0
      %1150 = vmatmul.mubr.bf16.gmra.mrb[0].mxu0 %v1112
      %v1151 = vpop.f32.mrb[0].mxu0
      %v1152 = vadd.f32 0.0, %v1151
      %v1153 = vpop.f32.mrb[0].mxu0
      %v1154 = vpop.f32.mrb[0].mxu0
      %v1155 = vpop.f32.mrb[0].mxu0
      %1156 = vdwg.mxu0
      %v1158 = vsel %vm926, %v573, 0
      %v1161 = vsel %vm926, %v749, 0
      %1163 = vmatprep.subr.bf16.mxu0 0
      %1164 = vmatpush1.bf16.xpose.msra.mxu0 %v1161
      %1165 = vmatprep.subr.bf16.mxu0 0
      %1166 = vmatpush1.bf16.xpose.msra.mxu0 0
      %1167 = vmatprep.subr.bf16.mxu0 0
      %1168 = vmatpush1.bf16.xpose.msra.mxu0 0
      %1169 = vmatprep.subr.bf16.mxu0 0
      %1170 = vmatpush1.bf16.xpose.msra.mxu0 0
      %1171 = vmatprep.subr.bf16.mxu0 0
      %1172 = vmatpush1.bf16.xpose.msra.mxu0 0
      %1173 = vmatprep.subr.bf16.mxu0 0
      %1174 = vmatpush1.bf16.xpose.msra.mxu0 0
      %1175 = vmatprep.subr.bf16.mxu0 0
      %1176 = vmatpush1.bf16.xpose.msra.mxu0 0
      %1177 = vmatprep.subr.bf16.mxu0 0
      %1178 = vmatpush1.bf16.xpose.msra.mxu0 0
      %1179 = vmatprep.subr.bf16.mxu0 0
      %1180 = vmatpush1.bf16.xpose.msra.mxu0 0
      %1181 = vmatprep.subr.bf16.mxu0 0
      %1182 = vmatpush1.bf16.xpose.msra.mxu0 0
      %1183 = vmatprep.subr.bf16.mxu0 0
      %1184 = vmatpush1.bf16.xpose.msra.mxu0 0
      %1185 = vmatprep.subr.bf16.mxu0 0
      %1186 = vmatpush1.bf16.xpose.msra.mxu0 0
      %1187 = vmatprep.subr.bf16.mxu0 0
      %1188 = vmatpush1.bf16.xpose.msra.mxu0 0
      %1189 = vmatprep.subr.bf16.mxu0 0
      %1190 = vmatpush1.bf16.xpose.msra.mxu0 0
      %1191 = vmatprep.subr.bf16.mxu0 0
      %1192 = vmatpush1.bf16.xpose.msra.mxu0 0
      %1193 = vmatprep.subr.bf16.mxu0 0
      %1194 = vmatpush1.bf16.xpose.msra.mxu0 0
      %1195 = vmatprep.mubr.bf16.mxu0 0
      %1196 = vmatmul.mubr.bf16.gmra.mrb[0].mxu0 %v1158
      %v1197 = vpop.f32.mrb[0].mxu0
      %v1198 = vadd.f32 0.0, %v1197
      %v1199 = vpop.f32.mrb[0].mxu0
      %v1200 = vpop.f32.mrb[0].mxu0
      %v1201 = vpop.f32.mrb[0].mxu0
      %1202 = vdwg.mxu0
      %v1204 = vsel %vm926, %v574, 0
      %v1207 = vsel %vm926, %v750, 0
      %1209 = vmatprep.subr.bf16.mxu0 0
      %1210 = vmatpush1.bf16.xpose.msra.mxu0 %v1207
      %1211 = vmatprep.subr.bf16.mxu0 0
      %1212 = vmatpush1.bf16.xpose.msra.mxu0 0
      %1213 = vmatprep.subr.bf16.mxu0 0
      %1214 = vmatpush1.bf16.xpose.msra.mxu0 0
      %1215 = vmatprep.subr.bf16.mxu0 0
      %1216 = vmatpush1.bf16.xpose.msra.mxu0 0
      %1217 = vmatprep.subr.bf16.mxu0 0
      %1218 = vmatpush1.bf16.xpose.msra.mxu0 0
      %1219 = vmatprep.subr.bf16.mxu0 0
      %1220 = vmatpush1.bf16.xpose.msra.mxu0 0
      %1221 = vmatprep.subr.bf16.mxu0 0
      %1222 = vmatpush1.bf16.xpose.msra.mxu0 0
      %1223 = vmatprep.subr.bf16.mxu0 0
      %1224 = vmatpush1.bf16.xpose.msra.mxu0 0
      %1225 = vmatprep.subr.bf16.mxu0 0
      %1226 = vmatpush1.bf16.xpose.msra.mxu0 0
      %1227 = vmatprep.subr.bf16.mxu0 0
      %1228 = vmatpush1.bf16.xpose.msra.mxu0 0
      %1229 = vmatprep.subr.bf16.mxu0 0
      %1230 = vmatpush1.bf16.xpose.msra.mxu0 0
      %1231 = vmatprep.subr.bf16.mxu0 0
      %1232 = vmatpush1.bf16.xpose.msra.mxu0 0
      %1233 = vmatprep.subr.bf16.mxu0 0
      %1234 = vmatpush1.bf16.xpose.msra.mxu0 0
      %1235 = vmatprep.subr.bf16.mxu0 0
      %1236 = vmatpush1.bf16.xpose.msra.mxu0 0
      %1237 = vmatprep.subr.bf16.mxu0 0
      %1238 = vmatpush1.bf16.xpose.msra.mxu0 0
      %1239 = vmatprep.subr.bf16.mxu0 0
      %1240 = vmatpush1.bf16.xpose.msra.mxu0 0
      %1241 = vmatprep.mubr.bf16.mxu0 0
      %1242 = vmatmul.mubr.bf16.gmra.mrb[0].mxu0 %v1204
      %v1243 = vpop.f32.mrb[0].mxu0
      %v1244 = vadd.f32 0.0, %v1243
      %v1245 = vpop.f32.mrb[0].mxu0
      %v1246 = vpop.f32.mrb[0].mxu0
      %v1247 = vpop.f32.mrb[0].mxu0
      %1248 = vdwg.mxu0
      %v1250 = vsel %vm926, %v575, 0
      %v1253 = vsel %vm926, %v751, 0
      %1255 = vmatprep.subr.bf16.mxu0 0
      %1256 = vmatpush1.bf16.xpose.msra.mxu0 %v1253
      %1257 = vmatprep.subr.bf16.mxu0 0
      %1258 = vmatpush1.bf16.xpose.msra.mxu0 0
      %1259 = vmatprep.subr.bf16.mxu0 0
      %1260 = vmatpush1.bf16.xpose.msra.mxu0 0
      %1261 = vmatprep.subr.bf16.mxu0 0
      %1262 = vmatpush1.bf16.xpose.msra.mxu0 0
      %1263 = vmatprep.subr.bf16.mxu0 0
      %1264 = vmatpush1.bf16.xpose.msra.mxu0 0
      %1265 = vmatprep.subr.bf16.mxu0 0
      %1266 = vmatpush1.bf16.xpose.msra.mxu0 0
      %1267 = vmatprep.subr.bf16.mxu0 0
      %1268 = vmatpush1.bf16.xpose.msra.mxu0 0
      %1269 = vmatprep.subr.bf16.mxu0 0
      %1270 = vmatpush1.bf16.xpose.msra.mxu0 0
      %1271 = vmatprep.subr.bf16.mxu0 0
      %1272 = vmatpush1.bf16.xpose.msra.mxu0 0
      %1273 = vmatprep.subr.bf16.mxu0 0
      %1274 = vmatpush1.bf16.xpose.msra.mxu0 0
      %1275 = vmatprep.subr.bf16.mxu0 0
      %1276 = vmatpush1.bf16.xpose.msra.mxu0 0
      %1277 = vmatprep.subr.bf16.mxu0 0
      %1278 = vmatpush1.bf16.xpose.msra.mxu0 0
      %1279 = vmatprep.subr.bf16.mxu0 0
      %1280 = vmatpush1.bf16.xpose.msra.mxu0 0
      %1281 = vmatprep.subr.bf16.mxu0 0
      %1282 = vmatpush1.bf16.xpose.msra.mxu0 0
      %1283 = vmatprep.subr.bf16.mxu0 0
      %1284 = vmatpush1.bf16.xpose.msra.mxu0 0
      %1285 = vmatprep.subr.bf16.mxu0 0
      %1286 = vmatpush1.bf16.xpose.msra.mxu0 0
      %1287 = vmatprep.mubr.bf16.mxu0 0
      %1288 = vmatmul.mubr.bf16.gmra.mrb[0].mxu0 %v1250
      %v1289 = vpop.f32.mrb[0].mxu0
      %v1290 = vadd.f32 0.0, %v1289
      %v1291 = vpop.f32.mrb[0].mxu0
      %v1292 = vpop.f32.mrb[0].mxu0
      %v1293 = vpop.f32.mrb[0].mxu0
      %1294 = vdwg.mxu0
      %v1295 = vadd.f32 %v968, %v319
      %v1296 = vadd.f32 %v1014, %v320
      %v1297 = vadd.f32 %v1060, %v319
      %v1298 = vadd.f32 %v1106, %v320
      %v1299 = vadd.f32 %v1152, %v319
      %v1300 = vadd.f32 %v1198, %v320
      %v1301 = vadd.f32 %v1244, %v319
      %v1302 = vadd.f32 %v1290, %v320
      %v1303 = vsel %vm926, %v1295, -inf
      %1304 = vmax.xlane.f32.xlu0 %v1303
      %v1305 = vpop.xlane.xlu0 %1304
      %v1306 = vsel %vm926, %v1296, -inf
      %1307 = vmax.xlane.f32.xlu0 %v1306
      %v1308 = vpop.xlane.xlu0 %1307
      %v1309 = vsel %vm926, %v1297, -inf
      %1310 = vmax.xlane.f32.xlu0 %v1309
      %v1311 = vpop.xlane.xlu0 %1310
      %v1312 = vsel %vm926, %v1298, -inf
      %1313 = vmax.xlane.f32.xlu0 %v1312
      %v1314 = vpop.xlane.xlu0 %1313
      %v1315 = vsel %vm926, %v1299, -inf
      %1316 = vmax.xlane.f32.xlu0 %v1315
      %v1317 = vpop.xlane.xlu0 %1316
      %v1318 = vsel %vm926, %v1300, -inf
      %1319 = vmax.xlane.f32.xlu0 %v1318
      %v1320 = vpop.xlane.xlu0 %1319
      %v1321 = vsel %vm926, %v1301, -inf
      %1322 = vmax.xlane.f32.xlu0 %v1321
      %v1323 = vpop.xlane.xlu0 %1322
      %v1324 = vsel %vm926, %v1302, -inf
      %1325 = vmax.xlane.f32.xlu0 %v1324
      %v1326 = vpop.xlane.xlu0 %1325
      %v1327 = vsub.f32 %v1295, %v1305
      %v1328 = vsub.f32 %v1296, %v1308
      %v1329 = vsub.f32 %v1297, %v1311
      %v1330 = vsub.f32 %v1298, %v1314
      %v1331 = vsub.f32 %v1299, %v1317
      %v1332 = vsub.f32 %v1300, %v1320
      %v1333 = vsub.f32 %v1301, %v1323
      %v1334 = vsub.f32 %v1302, %v1326
      %v1335 = vmul.f32 %v1327, 1.442695
      %v1336 = vpow.pop %v1335
      %v1337 = vmul.f32 %v1328, 1.442695
      %v1338 = vpow.pop %v1337
      %v1339 = vmul.f32 %v1329, 1.442695
      %v1340 = vpow.pop %v1339
      %v1341 = vmul.f32 %v1330, 1.442695
      %v1342 = vpow.pop %v1341
      %v1343 = vmul.f32 %v1331, 1.442695
      %v1344 = vpow.pop %v1343
      %v1345 = vmul.f32 %v1332, 1.442695
      %v1346 = vpow.pop %v1345
      %v1347 = vmul.f32 %v1333, 1.442695
      %v1348 = vpow.pop %v1347
      %v1349 = vmul.f32 %v1334, 1.442695
      %v1350 = vpow.pop %v1349
      %v1351 = vsel %vm926, %v1336, 0.0
      %1352 = vadd.xlane.f32.xlu0 %v1351
      %v1353 = vpop.xlane.xlu0 %1352
      %v1354 = vsel %vm926, %v1338, 0.0
      %1355 = vadd.xlane.f32.xlu0 %v1354
      %v1356 = vpop.xlane.xlu0 %1355
      %v1357 = vsel %vm926, %v1340, 0.0
      %1358 = vadd.xlane.f32.xlu0 %v1357
      %v1359 = vpop.xlane.xlu0 %1358
      %v1360 = vsel %vm926, %v1342, 0.0
      %1361 = vadd.xlane.f32.xlu0 %v1360
      %v1362 = vpop.xlane.xlu0 %1361
      %v1363 = vsel %vm926, %v1344, 0.0
      %1364 = vadd.xlane.f32.xlu0 %v1363
      %v1365 = vpop.xlane.xlu0 %1364
      %v1366 = vsel %vm926, %v1346, 0.0
      %1367 = vadd.xlane.f32.xlu0 %v1366
      %v1368 = vpop.xlane.xlu0 %1367
      %v1369 = vsel %vm926, %v1348, 0.0
      %1370 = vadd.xlane.f32.xlu0 %v1369
      %v1371 = vpop.xlane.xlu0 %1370
      %v1372 = vsel %vm926, %v1350, 0.0
      %1373 = vadd.xlane.f32.xlu0 %v1372
      %v1374 = vpop.xlane.xlu0 %1373
      %v1375 = vrcp.pop %v1353
      %v1376 = vrcp.pop %v1356
      %v1377 = vrcp.pop %v1359
      %v1378 = vrcp.pop %v1362
      %v1379 = vrcp.pop %v1365
      %v1380 = vrcp.pop %v1368
      %v1381 = vrcp.pop %v1371
      %v1382 = vrcp.pop %v1374
      %v1383 = vmul.f32 %v1336, %v1375
      %v1384 = vmul.f32 %v1338, %v1376
      %v1385 = vmul.f32 %v1340, %v1377
      %v1386 = vmul.f32 %v1342, %v1378
      %v1387 = vmul.f32 %v1344, %v1379
      %v1388 = vmul.f32 %v1346, %v1380
      %v1389 = vmul.f32 %v1348, %v1381
      %v1390 = vmul.f32 %v1350, %v1382
      %v1391 = vpack.c.bf16 %v1383, %v1383
      %v1392 = vpack.c.bf16 %v1384, %v1384
      %v1393 = vpack.c.bf16 %v1385, %v1385
      %v1394 = vpack.c.bf16 %v1386, %v1386
      %v1395 = vpack.c.bf16 %v1387, %v1387
      %v1396 = vpack.c.bf16 %v1388, %v1388
      %v1397 = vpack.c.bf16 %v1389, %v1389
      %v1398 = vpack.c.bf16 %v1390, %v1390
      %v1400 = vsel %vm926, %v1391, 0
      %vm1402 = vcmask 1043456
      %v1404 = vsel %vm1402, %v918, 0
      %1406 = vmatprep.subr.bf16.mxu0 0
      %1407 = vmatpush1.bf16.msra.mxu0 %v1404
      %1408 = vmatprep.subr.bf16.mxu0 0
      %1409 = vmatpush1.bf16.msra.mxu0 0
      %1410 = vmatprep.subr.bf16.mxu0 0
      %1411 = vmatpush1.bf16.msra.mxu0 0
      %1412 = vmatprep.subr.bf16.mxu0 0
      %1413 = vmatpush1.bf16.msra.mxu0 0
      %1414 = vmatprep.subr.bf16.mxu0 0
      %1415 = vmatpush1.bf16.msra.mxu0 0
      %1416 = vmatprep.subr.bf16.mxu0 0
      %1417 = vmatpush1.bf16.msra.mxu0 0
      %1418 = vmatprep.subr.bf16.mxu0 0
      %1419 = vmatpush1.bf16.msra.mxu0 0
      %1420 = vmatprep.subr.bf16.mxu0 0
      %1421 = vmatpush1.bf16.msra.mxu0 0
      %1422 = vmatprep.subr.bf16.mxu0 0
      %1423 = vmatpush1.bf16.msra.mxu0 0
      %1424 = vmatprep.subr.bf16.mxu0 0
      %1425 = vmatpush1.bf16.msra.mxu0 0
      %1426 = vmatprep.subr.bf16.mxu0 0
      %1427 = vmatpush1.bf16.msra.mxu0 0
      %1428 = vmatprep.subr.bf16.mxu0 0
      %1429 = vmatpush1.bf16.msra.mxu0 0
      %1430 = vmatprep.subr.bf16.mxu0 0
      %1431 = vmatpush1.bf16.msra.mxu0 0
      %1432 = vmatprep.subr.bf16.mxu0 0
      %1433 = vmatpush1.bf16.msra.mxu0 0
      %1434 = vmatprep.subr.bf16.mxu0 0
      %1435 = vmatpush1.bf16.msra.mxu0 0
      %1436 = vmatprep.subr.bf16.mxu0 0
      %1437 = vmatpush1.bf16.msra.mxu0 0
      %1438 = vmatprep.mubr.bf16.mxu0 0
      %1439 = vmatmul.mubr.bf16.gmra.mrb[0].mxu0 %v1400
      %v1440 = vpop.f32.mrb[0].mxu0
      %v1441 = vadd.f32 0.0, %v1440
      %v1442 = vpop.f32.mrb[0].mxu0
      %v1443 = vpop.f32.mrb[0].mxu0
      %v1444 = vpop.f32.mrb[0].mxu0
      %1445 = vdwg.mxu0
      %v1447 = vsel %vm926, %v1392, 0
      %v1450 = vsel %vm1402, %v919, 0
      %1452 = vmatprep.subr.bf16.mxu0 0
      %1453 = vmatpush1.bf16.msra.mxu0 %v1450
      %1454 = vmatprep.subr.bf16.mxu0 0
      %1455 = vmatpush1.bf16.msra.mxu0 0
      %1456 = vmatprep.subr.bf16.mxu0 0
      %1457 = vmatpush1.bf16.msra.mxu0 0
      %1458 = vmatprep.subr.bf16.mxu0 0
      %1459 = vmatpush1.bf16.msra.mxu0 0
      %1460 = vmatprep.subr.bf16.mxu0 0
      %1461 = vmatpush1.bf16.msra.mxu0 0
      %1462 = vmatprep.subr.bf16.mxu0 0
      %1463 = vmatpush1.bf16.msra.mxu0 0
      %1464 = vmatprep.subr.bf16.mxu0 0
      %1465 = vmatpush1.bf16.msra.mxu0 0
      %1466 = vmatprep.subr.bf16.mxu0 0
      %1467 = vmatpush1.bf16.msra.mxu0 0
      %1468 = vmatprep.subr.bf16.mxu0 0
      %1469 = vmatpush1.bf16.msra.mxu0 0
      %1470 = vmatprep.subr.bf16.mxu0 0
      %1471 = vmatpush1.bf16.msra.mxu0 0
      %1472 = vmatprep.subr.bf16.mxu0 0
      %1473 = vmatpush1.bf16.msra.mxu0 0
      %1474 = vmatprep.subr.bf16.mxu0 0
      %1475 = vmatpush1.bf16.msra.mxu0 0
      %1476 = vmatprep.subr.bf16.mxu0 0
      %1477 = vmatpush1.bf16.msra.mxu0 0
      %1478 = vmatprep.subr.bf16.mxu0 0
      %1479 = vmatpush1.bf16.msra.mxu0 0
      %1480 = vmatprep.subr.bf16.mxu0 0
      %1481 = vmatpush1.bf16.msra.mxu0 0
      %1482 = vmatprep.subr.bf16.mxu0 0
      %1483 = vmatpush1.bf16.msra.mxu0 0
      %1484 = vmatprep.mubr.bf16.mxu0 0
      %1485 = vmatmul.mubr.bf16.gmra.mrb[0].mxu0 %v1447
      %v1486 = vpop.f32.mrb[0].mxu0
      %v1487 = vadd.f32 0.0, %v1486
      %v1488 = vpop.f32.mrb[0].mxu0
      %v1489 = vpop.f32.mrb[0].mxu0
      %v1490 = vpop.f32.mrb[0].mxu0
      %1491 = vdwg.mxu0
      %v1493 = vsel %vm926, %v1393, 0
      %v1496 = vsel %vm1402, %v920, 0
      %1498 = vmatprep.subr.bf16.mxu0 0
      %1499 = vmatpush1.bf16.msra.mxu0 %v1496
      %1500 = vmatprep.subr.bf16.mxu0 0
      %1501 = vmatpush1.bf16.msra.mxu0 0
      %1502 = vmatprep.subr.bf16.mxu0 0
      %1503 = vmatpush1.bf16.msra.mxu0 0
      %1504 = vmatprep.subr.bf16.mxu0 0
      %1505 = vmatpush1.bf16.msra.mxu0 0
      %1506 = vmatprep.subr.bf16.mxu0 0
      %1507 = vmatpush1.bf16.msra.mxu0 0
      %1508 = vmatprep.subr.bf16.mxu0 0
      %1509 = vmatpush1.bf16.msra.mxu0 0
      %1510 = vmatprep.subr.bf16.mxu0 0
      %1511 = vmatpush1.bf16.msra.mxu0 0
      %1512 = vmatprep.subr.bf16.mxu0 0
      %1513 = vmatpush1.bf16.msra.mxu0 0
      %1514 = vmatprep.subr.bf16.mxu0 0
      %1515 = vmatpush1.bf16.msra.mxu0 0
      %1516 = vmatprep.subr.bf16.mxu0 0
      %1517 = vmatpush1.bf16.msra.mxu0 0
      %1518 = vmatprep.subr.bf16.mxu0 0
      %1519 = vmatpush1.bf16.msra.mxu0 0
      %1520 = vmatprep.subr.bf16.mxu0 0
      %1521 = vmatpush1.bf16.msra.mxu0 0
      %1522 = vmatprep.subr.bf16.mxu0 0
      %1523 = vmatpush1.bf16.msra.mxu0 0
      %1524 = vmatprep.subr.bf16.mxu0 0
      %1525 = vmatpush1.bf16.msra.mxu0 0
      %1526 = vmatprep.subr.bf16.mxu0 0
      %1527 = vmatpush1.bf16.msra.mxu0 0
      %1528 = vmatprep.subr.bf16.mxu0 0
      %1529 = vmatpush1.bf16.msra.mxu0 0
      %1530 = vmatprep.mubr.bf16.mxu0 0
      %1531 = vmatmul.mubr.bf16.gmra.mrb[0].mxu0 %v1493
      %v1532 = vpop.f32.mrb[0].mxu0
      %v1533 = vadd.f32 0.0, %v1532
      %v1534 = vpop.f32.mrb[0].mxu0
      %v1535 = vpop.f32.mrb[0].mxu0
      %v1536 = vpop.f32.mrb[0].mxu0
      %1537 = vdwg.mxu0
      %v1539 = vsel %vm926, %v1394, 0
      %v1542 = vsel %vm1402, %v921, 0
      %1544 = vmatprep.subr.bf16.mxu0 0
      %1545 = vmatpush1.bf16.msra.mxu0 %v1542
      %1546 = vmatprep.subr.bf16.mxu0 0
      %1547 = vmatpush1.bf16.msra.mxu0 0
      %1548 = vmatprep.subr.bf16.mxu0 0
      %1549 = vmatpush1.bf16.msra.mxu0 0
      %1550 = vmatprep.subr.bf16.mxu0 0
      %1551 = vmatpush1.bf16.msra.mxu0 0
      %1552 = vmatprep.subr.bf16.mxu0 0
      %1553 = vmatpush1.bf16.msra.mxu0 0
      %1554 = vmatprep.subr.bf16.mxu0 0
      %1555 = vmatpush1.bf16.msra.mxu0 0
      %1556 = vmatprep.subr.bf16.mxu0 0
      %1557 = vmatpush1.bf16.msra.mxu0 0
      %1558 = vmatprep.subr.bf16.mxu0 0
      %1559 = vmatpush1.bf16.msra.mxu0 0
      %1560 = vmatprep.subr.bf16.mxu0 0
      %1561 = vmatpush1.bf16.msra.mxu0 0
      %1562 = vmatprep.subr.bf16.mxu0 0
      %1563 = vmatpush1.bf16.msra.mxu0 0
      %1564 = vmatprep.subr.bf16.mxu0 0
      %1565 = vmatpush1.bf16.msra.mxu0 0
      %1566 = vmatprep.subr.bf16.mxu0 0
      %1567 = vmatpush1.bf16.msra.mxu0 0
      %1568 = vmatprep.subr.bf16.mxu0 0
      %1569 = vmatpush1.bf16.msra.mxu0 0
      %1570 = vmatprep.subr.bf16.mxu0 0
      %1571 = vmatpush1.bf16.msra.mxu0 0
      %1572 = vmatprep.subr.bf16.mxu0 0
      %1573 = vmatpush1.bf16.msra.mxu0 0
      %1574 = vmatprep.subr.bf16.mxu0 0
      %1575 = vmatpush1.bf16.msra.mxu0 0
      %1576 = vmatprep.mubr.bf16.mxu0 0
      %1577 = vmatmul.mubr.bf16.gmra.mrb[0].mxu0 %v1539
      %v1578 = vpop.f32.mrb[0].mxu0
      %v1579 = vadd.f32 0.0, %v1578
      %v1580 = vpop.f32.mrb[0].mxu0
      %v1581 = vpop.f32.mrb[0].mxu0
      %v1582 = vpop.f32.mrb[0].mxu0
      %1583 = vdwg.mxu0
      %v1585 = vsel %vm926, %v1395, 0
      %v1588 = vsel %vm1402, %v922, 0
      %1590 = vmatprep.subr.bf16.mxu0 0
      %1591 = vmatpush1.bf16.msra.mxu0 %v1588
      %1592 = vmatprep.subr.bf16.mxu0 0
      %1593 = vmatpush1.bf16.msra.mxu0 0
      %1594 = vmatprep.subr.bf16.mxu0 0
      %1595 = vmatpush1.bf16.msra.mxu0 0
      %1596 = vmatprep.subr.bf16.mxu0 0
      %1597 = vmatpush1.bf16.msra.mxu0 0
      %1598 = vmatprep.subr.bf16.mxu0 0
      %1599 = vmatpush1.bf16.msra.mxu0 0
      %1600 = vmatprep.subr.bf16.mxu0 0
      %1601 = vmatpush1.bf16.msra.mxu0 0
      %1602 = vmatprep.subr.bf16.mxu0 0
      %1603 = vmatpush1.bf16.msra.mxu0 0
      %1604 = vmatprep.subr.bf16.mxu0 0
      %1605 = vmatpush1.bf16.msra.mxu0 0
      %1606 = vmatprep.subr.bf16.mxu0 0
      %1607 = vmatpush1.bf16.msra.mxu0 0
      %1608 = vmatprep.subr.bf16.mxu0 0
      %1609 = vmatpush1.bf16.msra.mxu0 0
      %1610 = vmatprep.subr.bf16.mxu0 0
      %1611 = vmatpush1.bf16.msra.mxu0 0
      %1612 = vmatprep.subr.bf16.mxu0 0
      %1613 = vmatpush1.bf16.msra.mxu0 0
      %1614 = vmatprep.subr.bf16.mxu0 0
      %1615 = vmatpush1.bf16.msra.mxu0 0
      %1616 = vmatprep.subr.bf16.mxu0 0
      %1617 = vmatpush1.bf16.msra.mxu0 0
      %1618 = vmatprep.subr.bf16.mxu0 0
      %1619 = vmatpush1.bf16.msra.mxu0 0
      %1620 = vmatprep.subr.bf16.mxu0 0
      %1621 = vmatpush1.bf16.msra.mxu0 0
      %1622 = vmatprep.mubr.bf16.mxu0 0
      %1623 = vmatmul.mubr.bf16.gmra.mrb[0].mxu0 %v1585
      %v1624 = vpop.f32.mrb[0].mxu0
      %v1625 = vadd.f32 0.0, %v1624
      %v1626 = vpop.f32.mrb[0].mxu0
      %v1627 = vpop.f32.mrb[0].mxu0
      %v1628 = vpop.f32.mrb[0].mxu0
      %1629 = vdwg.mxu0
      %v1631 = vsel %vm926, %v1396, 0
      %v1634 = vsel %vm1402, %v923, 0
      %1636 = vmatprep.subr.bf16.mxu0 0
      %1637 = vmatpush1.bf16.msra.mxu0 %v1634
      %1638 = vmatprep.subr.bf16.mxu0 0
      %1639 = vmatpush1.bf16.msra.mxu0 0
      %1640 = vmatprep.subr.bf16.mxu0 0
      %1641 = vmatpush1.bf16.msra.mxu0 0
      %1642 = vmatprep.subr.bf16.mxu0 0
      %1643 = vmatpush1.bf16.msra.mxu0 0
      %1644 = vmatprep.subr.bf16.mxu0 0
      %1645 = vmatpush1.bf16.msra.mxu0 0
      %1646 = vmatprep.subr.bf16.mxu0 0
      %1647 = vmatpush1.bf16.msra.mxu0 0
      %1648 = vmatprep.subr.bf16.mxu0 0
      %1649 = vmatpush1.bf16.msra.mxu0 0
      %1650 = vmatprep.subr.bf16.mxu0 0
      %1651 = vmatpush1.bf16.msra.mxu0 0
      %1652 = vmatprep.subr.bf16.mxu0 0
      %1653 = vmatpush1.bf16.msra.mxu0 0
      %1654 = vmatprep.subr.bf16.mxu0 0
      %1655 = vmatpush1.bf16.msra.mxu0 0
      %1656 = vmatprep.subr.bf16.mxu0 0
      %1657 = vmatpush1.bf16.msra.mxu0 0
      %1658 = vmatprep.subr.bf16.mxu0 0
      %1659 = vmatpush1.bf16.msra.mxu0 0
      %1660 = vmatprep.subr.bf16.mxu0 0
      %1661 = vmatpush1.bf16.msra.mxu0 0
      %1662 = vmatprep.subr.bf16.mxu0 0
      %1663 = vmatpush1.bf16.msra.mxu0 0
      %1664 = vmatprep.subr.bf16.mxu0 0
      %1665 = vmatpush1.bf16.msra.mxu0 0
      %1666 = vmatprep.subr.bf16.mxu0 0
      %1667 = vmatpush1.bf16.msra.mxu0 0
      %1668 = vmatprep.mubr.bf16.mxu0 0
      %1669 = vmatmul.mubr.bf16.gmra.mrb[0].mxu0 %v1631
      %v1670 = vpop.f32.mrb[0].mxu0
      %v1671 = vadd.f32 0.0, %v1670
      %v1672 = vpop.f32.mrb[0].mxu0
      %v1673 = vpop.f32.mrb[0].mxu0
      %v1674 = vpop.f32.mrb[0].mxu0
      %1675 = vdwg.mxu0
      %v1677 = vsel %vm926, %v1397, 0
      %v1680 = vsel %vm1402, %v924, 0
      %1682 = vmatprep.subr.bf16.mxu0 0
      %1683 = vmatpush1.bf16.msra.mxu0 %v1680
      %1684 = vmatprep.subr.bf16.mxu0 0
      %1685 = vmatpush1.bf16.msra.mxu0 0
      %1686 = vmatprep.subr.bf16.mxu0 0
      %1687 = vmatpush1.bf16.msra.mxu0 0
      %1688 = vmatprep.subr.bf16.mxu0 0
      %1689 = vmatpush1.bf16.msra.mxu0 0
      %1690 = vmatprep.subr.bf16.mxu0 0
      %1691 = vmatpush1.bf16.msra.mxu0 0
      %1692 = vmatprep.subr.bf16.mxu0 0
      %1693 = vmatpush1.bf16.msra.mxu0 0
      %1694 = vmatprep.subr.bf16.mxu0 0
      %1695 = vmatpush1.bf16.msra.mxu0 0
      %1696 = vmatprep.subr.bf16.mxu0 0
      %1697 = vmatpush1.bf16.msra.mxu0 0
      %1698 = vmatprep.subr.bf16.mxu0 0
      %1699 = vmatpush1.bf16.msra.mxu0 0
      %1700 = vmatprep.subr.bf16.mxu0 0
      %1701 = vmatpush1.bf16.msra.mxu0 0
      %1702 = vmatprep.subr.bf16.mxu0 0
      %1703 = vmatpush1.bf16.msra.mxu0 0
      %1704 = vmatprep.subr.bf16.mxu0 0
      %1705 = vmatpush1.bf16.msra.mxu0 0
      %1706 = vmatprep.subr.bf16.mxu0 0
      %1707 = vmatpush1.bf16.msra.mxu0 0
      %1708 = vmatprep.subr.bf16.mxu0 0
      %1709 = vmatpush1.bf16.msra.mxu0 0
      %1710 = vmatprep.subr.bf16.mxu0 0
      %1711 = vmatpush1.bf16.msra.mxu0 0
      %1712 = vmatprep.subr.bf16.mxu0 0
      %1713 = vmatpush1.bf16.msra.mxu0 0
      %1714 = vmatprep.mubr.bf16.mxu0 0
      %1715 = vmatmul.mubr.bf16.gmra.mrb[0].mxu0 %v1677
      %v1716 = vpop.f32.mrb[0].mxu0
      %v1717 = vadd.f32 0.0, %v1716
      %v1718 = vpop.f32.mrb[0].mxu0
      %v1719 = vpop.f32.mrb[0].mxu0
      %v1720 = vpop.f32.mrb[0].mxu0
      %1721 = vdwg.mxu0
      %v1723 = vsel %vm926, %v1398, 0
      %v1726 = vsel %vm1402, %v925, 0
      %1728 = vmatprep.subr.bf16.mxu0 0
      %1729 = vmatpush1.bf16.msra.mxu0 %v1726
      %1730 = vmatprep.subr.bf16.mxu0 0
      %1731 = vmatpush1.bf16.msra.mxu0 0
      %1732 = vmatprep.subr.bf16.mxu0 0
      %1733 = vmatpush1.bf16.msra.mxu0 0
      %1734 = vmatprep.subr.bf16.mxu0 0
      %1735 = vmatpush1.bf16.msra.mxu0 0
      %1736 = vmatprep.subr.bf16.mxu0 0
      %1737 = vmatpush1.bf16.msra.mxu0 0
      %1738 = vmatprep.subr.bf16.mxu0 0
      %1739 = vmatpush1.bf16.msra.mxu0 0
      %1740 = vmatprep.subr.bf16.mxu0 0
      %1741 = vmatpush1.bf16.msra.mxu0 0
      %1742 = vmatprep.subr.bf16.mxu0 0
      %1743 = vmatpush1.bf16.msra.mxu0 0
      %1744 = vmatprep.subr.bf16.mxu0 0
      %1745 = vmatpush1.bf16.msra.mxu0 0
      %1746 = vmatprep.subr.bf16.mxu0 0
      %1747 = vmatpush1.bf16.msra.mxu0 0
      %1748 = vmatprep.subr.bf16.mxu0 0
      %1749 = vmatpush1.bf16.msra.mxu0 0
      %1750 = vmatprep.subr.bf16.mxu0 0
      %1751 = vmatpush1.bf16.msra.mxu0 0
      %1752 = vmatprep.subr.bf16.mxu0 0
      %1753 = vmatpush1.bf16.msra.mxu0 0
      %1754 = vmatprep.subr.bf16.mxu0 0
      %1755 = vmatpush1.bf16.msra.mxu0 0
      %1756 = vmatprep.subr.bf16.mxu0 0
      %1757 = vmatpush1.bf16.msra.mxu0 0
      %1758 = vmatprep.subr.bf16.mxu0 0
      %1759 = vmatpush1.bf16.msra.mxu0 0
      %1760 = vmatprep.mubr.bf16.mxu0 0
      %1761 = vmatmul.mubr.bf16.gmra.mrb[0].mxu0 %v1723
      %v1762 = vpop.f32.mrb[0].mxu0
      %v1763 = vadd.f32 0.0, %v1762
      %v1764 = vpop.f32.mrb[0].mxu0
      %v1765 = vpop.f32.mrb[0].mxu0
      %v1766 = vpop.f32.mrb[0].mxu0
      %1767 = vdwg.mxu0
      %1768 = vxpose.xlu0.b32.start [1/16] %v1441, 128
      %1769 = vxpose.xlu0.b32.cont [2/16] %v1487, 128
      %1770 = vxpose.xlu0.b32.cont [3/16] 0.0, 128
      %1771 = vxpose.xlu0.b32.cont [4/16] 0.0, 128
      %1772 = vxpose.xlu0.b32.cont [5/16] 0.0, 128
      %1773 = vxpose.xlu0.b32.cont [6/16] 0.0, 128
      %1774 = vxpose.xlu0.b32.cont [7/16] 0.0, 128
      %1775 = vxpose.xlu0.b32.cont [8/16] 0.0, 128
      %1776 = vxpose.xlu0.b32.cont [9/16] 0.0, 128
      %1777 = vxpose.xlu0.b32.cont [10/16] 0.0, 128
      %1778 = vxpose.xlu0.b32.cont [11/16] 0.0, 128
      %1779 = vxpose.xlu0.b32.cont [12/16] 0.0, 128
      %1780 = vxpose.xlu0.b32.cont [13/16] 0.0, 128
      %1781 = vxpose.xlu0.b32.cont [14/16] 0.0, 128
      %1782 = vxpose.xlu0.b32.cont [15/16] 0.0, 128
      %1783 = vxpose.xlu0.b32.end [16/16] 0.0, 128
      %v1784 = vpop.trf.xlu0
      %v1785 = vpop.trf.xlu0
      %v1786 = vpop.trf.xlu0
      %v1787 = vpop.trf.xlu0
      %v1788 = vpop.trf.xlu0
      %v1789 = vpop.trf.xlu0
      %v1790 = vpop.trf.xlu0
      %v1791 = vpop.trf.xlu0
      %v1792 = vpop.trf.xlu0
      %v1793 = vpop.trf.xlu0
      %v1794 = vpop.trf.xlu0
      %v1795 = vpop.trf.xlu0
      %v1796 = vpop.trf.xlu0
      %v1797 = vpop.trf.xlu0
      %v1798 = vpop.trf.xlu0
      %v1799 = vpop.trf.xlu0
      %1800 = vxpose.xlu0.b32.start [1/16] %v1533, 128
      %1801 = vxpose.xlu0.b32.cont [2/16] %v1579, 128
      %1802 = vxpose.xlu0.b32.cont [3/16] 0.0, 128
      %1803 = vxpose.xlu0.b32.cont [4/16] 0.0, 128
      %1804 = vxpose.xlu0.b32.cont [5/16] 0.0, 128
      %1805 = vxpose.xlu0.b32.cont [6/16] 0.0, 128
      %1806 = vxpose.xlu0.b32.cont [7/16] 0.0, 128
      %1807 = vxpose.xlu0.b32.cont [8/16] 0.0, 128
      %1808 = vxpose.xlu0.b32.cont [9/16] 0.0, 128
      %1809 = vxpose.xlu0.b32.cont [10/16] 0.0, 128
      %1810 = vxpose.xlu0.b32.cont [11/16] 0.0, 128
      %1811 = vxpose.xlu0.b32.cont [12/16] 0.0, 128
      %1812 = vxpose.xlu0.b32.cont [13/16] 0.0, 128
      %1813 = vxpose.xlu0.b32.cont [14/16] 0.0, 128
      %1814 = vxpose.xlu0.b32.cont [15/16] 0.0, 128
      %1815 = vxpose.xlu0.b32.end [16/16] 0.0, 128
      %v1816 = vpop.trf.xlu0
      %v1817 = vpop.trf.xlu0
      %v1818 = vpop.trf.xlu0
      %v1819 = vpop.trf.xlu0
      %v1820 = vpop.trf.xlu0
      %v1821 = vpop.trf.xlu0
      %v1822 = vpop.trf.xlu0
      %v1823 = vpop.trf.xlu0
      %v1824 = vpop.trf.xlu0
      %v1825 = vpop.trf.xlu0
      %v1826 = vpop.trf.xlu0
      %v1827 = vpop.trf.xlu0
      %v1828 = vpop.trf.xlu0
      %v1829 = vpop.trf.xlu0
      %v1830 = vpop.trf.xlu0
      %v1831 = vpop.trf.xlu0
      %1832 = vxpose.xlu0.b32.start [1/16] %v1625, 128
      %1833 = vxpose.xlu0.b32.cont [2/16] %v1671, 128
      %1834 = vxpose.xlu0.b32.cont [3/16] 0.0, 128
      %1835 = vxpose.xlu0.b32.cont [4/16] 0.0, 128
      %1836 = vxpose.xlu0.b32.cont [5/16] 0.0, 128
      %1837 = vxpose.xlu0.b32.cont [6/16] 0.0, 128
      %1838 = vxpose.xlu0.b32.cont [7/16] 0.0, 128
      %1839 = vxpose.xlu0.b32.cont [8/16] 0.0, 128
      %1840 = vxpose.xlu0.b32.cont [9/16] 0.0, 128
      %1841 = vxpose.xlu0.b32.cont [10/16] 0.0, 128
      %1842 = vxpose.xlu0.b32.cont [11/16] 0.0, 128
      %1843 = vxpose.xlu0.b32.cont [12/16] 0.0, 128
      %1844 = vxpose.xlu0.b32.cont [13/16] 0.0, 128
      %1845 = vxpose.xlu0.b32.cont [14/16] 0.0, 128
      %1846 = vxpose.xlu0.b32.cont [15/16] 0.0, 128
      %1847 = vxpose.xlu0.b32.end [16/16] 0.0, 128
      %v1848 = vpop.trf.xlu0
      %v1849 = vpop.trf.xlu0
      %v1850 = vpop.trf.xlu0
      %v1851 = vpop.trf.xlu0
      %v1852 = vpop.trf.xlu0
      %v1853 = vpop.trf.xlu0
      %v1854 = vpop.trf.xlu0
      %v1855 = vpop.trf.xlu0
      %v1856 = vpop.trf.xlu0
      %v1857 = vpop.trf.xlu0
      %v1858 = vpop.trf.xlu0
      %v1859 = vpop.trf.xlu0
      %v1860 = vpop.trf.xlu0
      %v1861 = vpop.trf.xlu0
      %v1862 = vpop.trf.xlu0
      %v1863 = vpop.trf.xlu0
      %1864 = vxpose.xlu0.b32.start [1/16] %v1717, 128
      %1865 = vxpose.xlu0.b32.cont [2/16] %v1763, 128
      %1866 = vxpose.xlu0.b32.cont [3/16] 0.0, 128
      %1867 = vxpose.xlu0.b32.cont [4/16] 0.0, 128
      %1868 = vxpose.xlu0.b32.cont [5/16] 0.0, 128
      %1869 = vxpose.xlu0.b32.cont [6/16] 0.0, 128
      %1870 = vxpose.xlu0.b32.cont [7/16] 0.0, 128
      %1871 = vxpose.xlu0.b32.cont [8/16] 0.0, 128
      %1872 = vxpose.xlu0.b32.cont [9/16] 0.0, 128
      %1873 = vxpose.xlu0.b32.cont [10/16] 0.0, 128
      %1874 = vxpose.xlu0.b32.cont [11/16] 0.0, 128
      %1875 = vxpose.xlu0.b32.cont [12/16] 0.0, 128
      %1876 = vxpose.xlu0.b32.cont [13/16] 0.0, 128
      %1877 = vxpose.xlu0.b32.cont [14/16] 0.0, 128
      %1878 = vxpose.xlu0.b32.cont [15/16] 0.0, 128
      %1879 = vxpose.xlu0.b32.end [16/16] 0.0, 128
      %v1880 = vpop.trf.xlu0
      %v1881 = vpop.trf.xlu0
      %v1882 = vpop.trf.xlu0
      %v1883 = vpop.trf.xlu0
      %v1884 = vpop.trf.xlu0
      %v1885 = vpop.trf.xlu0
      %v1886 = vpop.trf.xlu0
      %v1887 = vpop.trf.xlu0
      %v1888 = vpop.trf.xlu0
      %v1889 = vpop.trf.xlu0
      %v1890 = vpop.trf.xlu0
      %v1891 = vpop.trf.xlu0
      %v1892 = vpop.trf.xlu0
      %v1893 = vpop.trf.xlu0
      %v1894 = vpop.trf.xlu0
      %v1895 = vpop.trf.xlu0
      %1896 = vxpose.xlu0.b32.start [1/16] %v1784, 128
      %1897 = vxpose.xlu0.b32.cont [2/16] %v1816, 128
      %1898 = vxpose.xlu0.b32.cont [3/16] %v1848, 128
      %1899 = vxpose.xlu0.b32.cont [4/16] %v1880, 128
      %1900 = vxpose.xlu0.b32.cont [5/16] 0.0, 128
      %1901 = vxpose.xlu0.b32.cont [6/16] 0.0, 128
      %1902 = vxpose.xlu0.b32.cont [7/16] 0.0, 128
      %1903 = vxpose.xlu0.b32.cont [8/16] 0.0, 128
      %1904 = vxpose.xlu0.b32.cont [9/16] 0.0, 128
      %1905 = vxpose.xlu0.b32.cont [10/16] 0.0, 128
      %1906 = vxpose.xlu0.b32.cont [11/16] 0.0, 128
      %1907 = vxpose.xlu0.b32.cont [12/16] 0.0, 128
      %1908 = vxpose.xlu0.b32.cont [13/16] 0.0, 128
      %1909 = vxpose.xlu0.b32.cont [14/16] 0.0, 128
      %1910 = vxpose.xlu0.b32.cont [15/16] 0.0, 128
      %1911 = vxpose.xlu0.b32.end [16/16] 0.0, 128
      %v1912 = vpop.trf.xlu0
      %v1913 = vpop.trf.xlu0
      %v1914 = vpop.trf.xlu0
      %v1915 = vpop.trf.xlu0
      %v1916 = vpop.trf.xlu0
      %v1917 = vpop.trf.xlu0
      %v1918 = vpop.trf.xlu0
      %v1919 = vpop.trf.xlu0
      %v1920 = vpop.trf.xlu0
      %v1921 = vpop.trf.xlu0
      %v1922 = vpop.trf.xlu0
      %v1923 = vpop.trf.xlu0
      %v1924 = vpop.trf.xlu0
      %v1925 = vpop.trf.xlu0
      %v1926 = vpop.trf.xlu0
      %v1927 = vpop.trf.xlu0
      %v1928 = vpack.c.bf16 %v1913, %v1912
      %s1929 = smul.addr %s336, 4
      %s1930 = scalar_lea.vmem %s7, %s1929
      %v1931 = vld [vmem:[%s1930] sm:$0xf]
      %v1932 = vld [vmem:[%s1930 + $0x4] sm:$0xf]
      %v1933 = vld [vmem:[%s1930 + $0x8] sm:$0xf]
      %v1934 = vld [vmem:[%s1930 + $0xc] sm:$0xf]
      %s1935 = scalar_lea.vmem [#allocation13], %s328
      %v1936 = vld [vmem:[%s1935] sm:$0x1]
      %v1938 = vlaneseq
      %v1939 = vshrl.u32 %v1938, 7
      %v1940 = vsub.s32 0, %v1939
      %v1941 = vrot.slane %v1936, %v1940
      %v1947 = vunpack.c.l.b16 %v1931
      %v1948 = vunpack.c.l.b16 %v1932
      %v1949 = vunpack.c.l.b16 %v1933
      %v1950 = vunpack.c.l.b16 %v1934
      %v1951 = vpack.c.b16 %v1948, %v1947
      %v1952 = vpack.c.b16 %v1950, %v1949
      %v1956 = vsel %vm363, %v1928, 0
      %1958 = vmatprep.subr.bf16.mxu0 0
      %1959 = vmatpush1.bf16.msra.mxu0 %v1951
      %1960 = vmatprep.subr.bf16.mxu0 0
      %1961 = vmatpush1.bf16.msra.mxu0 %v1952
      %1962 = vmatprep.subr.bf16.mxu0 0
      %1963 = vmatpush1.bf16.msra.mxu0 0
      %1964 = vmatprep.subr.bf16.mxu0 0
      %1965 = vmatpush1.bf16.msra.mxu0 0
      %1966 = vmatprep.subr.bf16.mxu0 0
      %1967 = vmatpush1.bf16.msra.mxu0 0
      %1968 = vmatprep.subr.bf16.mxu0 0
      %1969 = vmatpush1.bf16.msra.mxu0 0
      %1970 = vmatprep.subr.bf16.mxu0 0
      %1971 = vmatpush1.bf16.msra.mxu0 0
      %1972 = vmatprep.subr.bf16.mxu0 0
      %1973 = vmatpush1.bf16.msra.mxu0 0
      %1974 = vmatprep.subr.bf16.mxu0 0
      %1975 = vmatpush1.bf16.msra.mxu0 0
      %1976 = vmatprep.subr.bf16.mxu0 0
      %1977 = vmatpush1.bf16.msra.mxu0 0
      %1978 = vmatprep.subr.bf16.mxu0 0
      %1979 = vmatpush1.bf16.msra.mxu0 0
      %1980 = vmatprep.subr.bf16.mxu0 0
      %1981 = vmatpush1.bf16.msra.mxu0 0
      %1982 = vmatprep.subr.bf16.mxu0 0
      %1983 = vmatpush1.bf16.msra.mxu0 0
      %1984 = vmatprep.subr.bf16.mxu0 0
      %1985 = vmatpush1.bf16.msra.mxu0 0
      %1986 = vmatprep.subr.bf16.mxu0 0
      %1987 = vmatpush1.bf16.msra.mxu0 0
      %1988 = vmatprep.subr.bf16.mxu0 0
      %1989 = vmatpush1.bf16.msra.mxu0 0
      %1990 = vmatprep.mubr.bf16.mxu0 0
      %1991 = vmatmul.mubr.bf16.gmra.mrb[0].mxu0 %v1956
      %v1992 = vpop.f32.mrb[0].mxu0
      %v1993 = vadd.f32 %v1941, %v1992
      %v1994 = vpop.f32.mrb[0].mxu0
      %v1995 = vpop.f32.mrb[0].mxu0
      %v1996 = vadd.f32 %v1941, %v1995
      %v1997 = vpop.f32.mrb[0].mxu0
      %1998 = vdwg.mxu0
      %v1999 = vadd.f32 %v333, %v1993
      %v2000 = vadd.f32 %v334, %v1996
      %s2001 = scalar_lea.vmem [#allocation20], %s328
      %v2002 = vld [vmem:[%s2001] sm:$0x1]
      %s2003 = scalar_lea.vmem [#allocation22], %s328
      %v2004 = vld [vmem:[%s2003] sm:$0x1]
      %v2005 = vsel %vm363, %v1999, 0.0
      %2006 = vadd.xlane.f32.xlu0 %v2005
      %v2007 = vpop.xlane.xlu0 %2006
      %v2008 = vsel %vm363, %v2000, 0.0
      %2009 = vadd.xlane.f32.xlu0 %v2008
      %v2010 = vpop.xlane.xlu0 %2009
      %v2011 = vrcp.pop 32.0
      %v2012 = vmul.f32 %v2007, %v2011
      %v2013 = vmul.f32 %v2010, %v2011
      %v2014 = vsub.f32 %v1999, %v2012
      %v2015 = vsub.f32 %v2000, %v2013
      %v2016 = vmul.f32 %v2014, %v2014
      %v2017 = vmul.f32 %v2015, %v2015
      %v2018 = vsel %vm363, %v2016, 0.0
      %2019 = vadd.xlane.f32.xlu0 %v2018
      %v2020 = vpop.xlane.xlu0 %2019
      %v2021 = vsel %vm363, %v2017, 0.0
      %2022 = vadd.xlane.f32.xlu0 %v2021
      %v2023 = vpop.xlane.xlu0 %2022
      %v2024 = vmul.f32 %v2020, %v2011
      %v2025 = vmul.f32 %v2023, %v2011
      %v2026 = vadd.f32 %v2024, 1e-05
      %v2027 = vadd.f32 %v2025, 1e-05
      %v2028 = vrsqrt.pop %v2026
      %v2029 = vrsqrt.pop %v2027
      %v2030 = vmul.f32 %v2014, %v2028
      %v2031 = vmul.f32 %v2015, %v2029
      %v2033 = vlaneseq
      %v2034 = vshrl.u32 %v2033, 7
      %v2035 = vsub.s32 0, %v2034
      %v2036 = vrot.slane %v2002, %v2035
      %v2038 = vmul.f32 %v2030, %v2036
      %v2039 = vmul.f32 %v2031, %v2036
      %v2041 = vlaneseq
      %v2042 = vshrl.u32 %v2041, 7
      %v2043 = vsub.s32 0, %v2042
      %v2044 = vrot.slane %v2004, %v2043
      %v2046 = vadd.f32 %v2038, %v2044
      %v2047 = vadd.f32 %v2039, %v2044
      %v2048 = vpack.c.bf16 %v2047, %v2046
      %s2049 = smul.addr %s336, 4
      %s2050 = scalar_lea.vmem %s9, %s2049
      %v2051 = vld [vmem:[%s2050] sm:$0xf]
      %v2052 = vld [vmem:[%s2050 + $0x4] sm:$0xf]
      %v2053 = vld [vmem:[%s2050 + $0x8] sm:$0xf]
      %v2054 = vld [vmem:[%s2050 + $0xc] sm:$0xf]
      %s2055 = scalar_lea.vmem [#allocation14], %s328
      %v2056 = vld [vmem:[%s2055] sm:$0x1]
      %v2058 = vlaneseq
      %v2059 = vshrl.u32 %v2058, 7
      %v2060 = vsub.s32 0, %v2059
      %v2061 = vrot.slane %v2056, %v2060
      %v2067 = vunpack.c.l.b16 %v2051
      %v2068 = vunpack.c.l.b16 %v2052
      %v2069 = vunpack.c.l.b16 %v2053
      %v2070 = vunpack.c.l.b16 %v2054
      %v2071 = vpack.c.b16 %v2068, %v2067
      %v2072 = vpack.c.b16 %v2070, %v2069
      %v2076 = vsel %vm363, %v2048, 0
      %2078 = vmatprep.subr.bf16.mxu0 0
      %2079 = vmatpush1.bf16.msra.mxu0 %v2071
      %2080 = vmatprep.subr.bf16.mxu0 0
      %2081 = vmatpush1.bf16.msra.mxu0 %v2072
      %2082 = vmatprep.subr.bf16.mxu0 0
      %2083 = vmatpush1.bf16.msra.mxu0 0
      %2084 = vmatprep.subr.bf16.mxu0 0
      %2085 = vmatpush1.bf16.msra.mxu0 0
      %2086 = vmatprep.subr.bf16.mxu0 0
      %2087 = vmatpush1.bf16.msra.mxu0 0
      %2088 = vmatprep.subr.bf16.mxu0 0
      %2089 = vmatpush1.bf16.msra.mxu0 0
      %2090 = vmatprep.subr.bf16.mxu0 0
      %2091 = vmatpush1.bf16.msra.mxu0 0
      %2092 = vmatprep.subr.bf16.mxu0 0
      %2093 = vmatpush1.bf16.msra.mxu0 0
      %2094 = vmatprep.subr.bf16.mxu0 0
      %2095 = vmatpush1.bf16.msra.mxu0 0
      %2096 = vmatprep.subr.bf16.mxu0 0
      %2097 = vmatpush1.bf16.msra.mxu0 0
      %2098 = vmatprep.subr.bf16.mxu0 0
      %2099 = vmatpush1.bf16.msra.mxu0 0
      %2100 = vmatprep.subr.bf16.mxu0 0
      %2101 = vmatpush1.bf16.msra.mxu0 0
      %2102 = vmatprep.subr.bf16.mxu0 0
      %2103 = vmatpush1.bf16.msra.mxu0 0
      %2104 = vmatprep.subr.bf16.mxu0 0
      %2105 = vmatpush1.bf16.msra.mxu0 0
      %2106 = vmatprep.subr.bf16.mxu0 0
      %2107 = vmatpush1.bf16.msra.mxu0 0
      %2108 = vmatprep.subr.bf16.mxu0 0
      %2109 = vmatpush1.bf16.msra.mxu0 0
      %2110 = vmatprep.mubr.bf16.mxu0 0
      %2111 = vmatmul.mubr.bf16.gmra.mrb[0].mxu0 %v2076
      %v2112 = vpop.f32.mrb[0].mxu0
      %v2113 = vadd.f32 %v2061, %v2112
      %v2114 = vpop.f32.mrb[0].mxu0
      %v2115 = vpop.f32.mrb[0].mxu0
      %v2116 = vadd.f32 %v2061, %v2115
      %v2117 = vpop.f32.mrb[0].mxu0
      %2118 = vdwg.mxu0
      %s2119 = smul.addr %s336, 4
      %s2120 = scalar_lea.vmem %s11, %s2119
      %v2121 = vld [vmem:[%s2120] sm:$0xf]
      %v2122 = vld [vmem:[%s2120 + $0x4] sm:$0xf]
      %v2123 = vld [vmem:[%s2120 + $0x8] sm:$0xf]
      %v2124 = vld [vmem:[%s2120 + $0xc] sm:$0xf]
      %s2125 = scalar_lea.vmem [#allocation16], %s328
      %v2126 = vld [vmem:[%s2125] sm:$0x1]
      %v2128 = vlaneseq
      %v2129 = vshrl.u32 %v2128, 7
      %v2130 = vsub.s32 0, %v2129
      %v2131 = vrot.slane %v2126, %v2130
      %v2135 = vunpack.c.l.b16 %v292
      %v2136 = vunpack.c.l.b16 %v293
      %v2137 = vpack.c.b16 %v2136, %v2135
      %v2142 = vunpack.c.l.b16 %v2121
      %v2143 = vunpack.c.l.b16 %v2122
      %v2144 = vunpack.c.l.b16 %v2123
      %v2145 = vunpack.c.l.b16 %v2124
      %v2146 = vpack.c.b16 %v2143, %v2142
      %v2147 = vpack.c.b16 %v2145, %v2144
      %v2151 = vsel %vm363, %v2137, 0
      %2153 = vmatprep.subr.bf16.mxu0 0
      %2154 = vmatpush1.bf16.msra.mxu0 %v2146
      %2155 = vmatprep.subr.bf16.mxu0 0
      %2156 = vmatpush1.bf16.msra.mxu0 %v2147
      %2157 = vmatprep.subr.bf16.mxu0 0
      %2158 = vmatpush1.bf16.msra.mxu0 0
      %2159 = vmatprep.subr.bf16.mxu0 0
      %2160 = vmatpush1.bf16.msra.mxu0 0
      %2161 = vmatprep.subr.bf16.mxu0 0
      %2162 = vmatpush1.bf16.msra.mxu0 0
      %2163 = vmatprep.subr.bf16.mxu0 0
      %2164 = vmatpush1.bf16.msra.mxu0 0
      %2165 = vmatprep.subr.bf16.mxu0 0
      %2166 = vmatpush1.bf16.msra.mxu0 0
      %2167 = vmatprep.subr.bf16.mxu0 0
      %2168 = vmatpush1.bf16.msra.mxu0 0
      %2169 = vmatprep.subr.bf16.mxu0 0
      %2170 = vmatpush1.bf16.msra.mxu0 0
      %2171 = vmatprep.subr.bf16.mxu0 0
      %2172 = vmatpush1.bf16.msra.mxu0 0
      %2173 = vmatprep.subr.bf16.mxu0 0
      %2174 = vmatpush1.bf16.msra.mxu0 0
      %2175 = vmatprep.subr.bf16.mxu0 0
      %2176 = vmatpush1.bf16.msra.mxu0 0
      %2177 = vmatprep.subr.bf16.mxu0 0
      %2178 = vmatpush1.bf16.msra.mxu0 0
      %2179 = vmatprep.subr.bf16.mxu0 0
      %2180 = vmatpush1.bf16.msra.mxu0 0
      %2181 = vmatprep.subr.bf16.mxu0 0
      %2182 = vmatpush1.bf16.msra.mxu0 0
      %2183 = vmatprep.subr.bf16.mxu0 0
      %2184 = vmatpush1.bf16.msra.mxu0 0
      %2185 = vmatprep.mubr.bf16.mxu0 0
      %2186 = vmatmul.mubr.bf16.gmra.mrb[0].mxu0 %v2151
      %v2187 = vpop.f32.mrb[0].mxu0
      %v2188 = vadd.f32 %v2131, %v2187
      %v2189 = vpop.f32.mrb[0].mxu0
      %v2190 = vpop.f32.mrb[0].mxu0
      %v2191 = vadd.f32 %v2131, %v2190
      %v2192 = vpop.f32.mrb[0].mxu0
      %2193 = vdwg.mxu0
      %2194 = vxpose.xlu0.b32.start [1/16] %v2113, 128
      %2195 = vxpose.xlu0.b32.cont [2/16] %v2116, 128
      %2196 = vxpose.xlu0.b32.cont [3/16] 0.0, 128
      %2197 = vxpose.xlu0.b32.cont [4/16] 0.0, 128
      %2198 = vxpose.xlu0.b32.cont [5/16] 0.0, 128
      %2199 = vxpose.xlu0.b32.cont [6/16] 0.0, 128
      %2200 = vxpose.xlu0.b32.cont [7/16] 0.0, 128
      %2201 = vxpose.xlu0.b32.cont [8/16] 0.0, 128
      %2202 = vxpose.xlu0.b32.cont [9/16] 0.0, 128
      %2203 = vxpose.xlu0.b32.cont [10/16] 0.0, 128
      %2204 = vxpose.xlu0.b32.cont [11/16] 0.0, 128
      %2205 = vxpose.xlu0.b32.cont [12/16] 0.0, 128
      %2206 = vxpose.xlu0.b32.cont [13/16] 0.0, 128
      %2207 = vxpose.xlu0.b32.cont [14/16] 0.0, 128
      %2208 = vxpose.xlu0.b32.cont [15/16] 0.0, 128
      %2209 = vxpose.xlu0.b32.end [16/16] 0.0, 128
      %v2210 = vpop.trf.xlu0
      %v2211 = vpop.trf.xlu0
      %v2212 = vpop.trf.xlu0
      %v2213 = vpop.trf.xlu0
      %v2214 = vpop.trf.xlu0
      %v2215 = vpop.trf.xlu0
      %v2216 = vpop.trf.xlu0
      %v2217 = vpop.trf.xlu0
      %v2218 = vpop.trf.xlu0
      %v2219 = vpop.trf.xlu0
      %v2220 = vpop.trf.xlu0
      %v2221 = vpop.trf.xlu0
      %v2222 = vpop.trf.xlu0
      %v2223 = vpop.trf.xlu0
      %v2224 = vpop.trf.xlu0
      %v2225 = vpop.trf.xlu0
      %2226 = vxpose.xlu0.b32.start [1/16] %v2210, 128
      %2227 = vxpose.xlu0.b32.cont [2/16] 0.0, 128
      %2228 = vxpose.xlu0.b32.cont [3/16] 0.0, 128
      %2229 = vxpose.xlu0.b32.cont [4/16] 0.0, 128
      %2230 = vxpose.xlu0.b32.cont [5/16] 0.0, 128
      %2231 = vxpose.xlu0.b32.cont [6/16] 0.0, 128
      %2232 = vxpose.xlu0.b32.cont [7/16] 0.0, 128
      %2233 = vxpose.xlu0.b32.cont [8/16] 0.0, 128
      %2234 = vxpose.xlu0.b32.cont [9/16] 0.0, 128
      %2235 = vxpose.xlu0.b32.cont [10/16] 0.0, 128
      %2236 = vxpose.xlu0.b32.cont [11/16] 0.0, 128
      %2237 = vxpose.xlu0.b32.cont [12/16] 0.0, 128
      %2238 = vxpose.xlu0.b32.cont [13/16] 0.0, 128
      %2239 = vxpose.xlu0.b32.cont [14/16] 0.0, 128
      %2240 = vxpose.xlu0.b32.cont [15/16] 0.0, 128
      %2241 = vxpose.xlu0.b32.end [16/16] 0.0, 128
      %v2242 = vpop.trf.xlu0
      %v2243 = vpop.trf.xlu0
      %v2244 = vpop.trf.xlu0
      %v2245 = vpop.trf.xlu0
      %v2246 = vpop.trf.xlu0
      %v2247 = vpop.trf.xlu0
      %v2248 = vpop.trf.xlu0
      %v2249 = vpop.trf.xlu0
      %v2250 = vpop.trf.xlu0
      %v2251 = vpop.trf.xlu0
      %v2252 = vpop.trf.xlu0
      %v2253 = vpop.trf.xlu0
      %v2254 = vpop.trf.xlu0
      %v2255 = vpop.trf.xlu0
      %v2256 = vpop.trf.xlu0
      %v2257 = vpop.trf.xlu0
      %2258 = vxpose.xlu0.b32.start [1/16] %v2211, 128
      %2259 = vxpose.xlu0.b32.cont [2/16] 0.0, 128
      %2260 = vxpose.xlu0.b32.cont [3/16] 0.0, 128
      %2261 = vxpose.xlu0.b32.cont [4/16] 0.0, 128
      %2262 = vxpose.xlu0.b32.cont [5/16] 0.0, 128
      %2263 = vxpose.xlu0.b32.cont [6/16] 0.0, 128
      %2264 = vxpose.xlu0.b32.cont [7/16] 0.0, 128
      %2265 = vxpose.xlu0.b32.cont [8/16] 0.0, 128
      %2266 = vxpose.xlu0.b32.cont [9/16] 0.0, 128
      %2267 = vxpose.xlu0.b32.cont [10/16] 0.0, 128
      %2268 = vxpose.xlu0.b32.cont [11/16] 0.0, 128
      %2269 = vxpose.xlu0.b32.cont [12/16] 0.0, 128
      %2270 = vxpose.xlu0.b32.cont [13/16] 0.0, 128
      %2271 = vxpose.xlu0.b32.cont [14/16] 0.0, 128
      %2272 = vxpose.xlu0.b32.cont [15/16] 0.0, 128
      %2273 = vxpose.xlu0.b32.end [16/16] 0.0, 128
      %v2274 = vpop.trf.xlu0
      %v2275 = vpop.trf.xlu0
      %v2276 = vpop.trf.xlu0
      %v2277 = vpop.trf.xlu0
      %v2278 = vpop.trf.xlu0
      %v2279 = vpop.trf.xlu0
      %v2280 = vpop.trf.xlu0
      %v2281 = vpop.trf.xlu0
      %v2282 = vpop.trf.xlu0
      %v2283 = vpop.trf.xlu0
      %v2284 = vpop.trf.xlu0
      %v2285 = vpop.trf.xlu0
      %v2286 = vpop.trf.xlu0
      %v2287 = vpop.trf.xlu0
      %v2288 = vpop.trf.xlu0
      %v2289 = vpop.trf.xlu0
      %2290 = vxpose.xlu0.b32.start [1/16] %v2212, 128
      %2291 = vxpose.xlu0.b32.cont [2/16] 0.0, 128
      %2292 = vxpose.xlu0.b32.cont [3/16] 0.0, 128
      %2293 = vxpose.xlu0.b32.cont [4/16] 0.0, 128
      %2294 = vxpose.xlu0.b32.cont [5/16] 0.0, 128
      %2295 = vxpose.xlu0.b32.cont [6/16] 0.0, 128
      %2296 = vxpose.xlu0.b32.cont [7/16] 0.0, 128
      %2297 = vxpose.xlu0.b32.cont [8/16] 0.0, 128
      %2298 = vxpose.xlu0.b32.cont [9/16] 0.0, 128
      %2299 = vxpose.xlu0.b32.cont [10/16] 0.0, 128
      %2300 = vxpose.xlu0.b32.cont [11/16] 0.0, 128
      %2301 = vxpose.xlu0.b32.cont [12/16] 0.0, 128
      %2302 = vxpose.xlu0.b32.cont [13/16] 0.0, 128
      %2303 = vxpose.xlu0.b32.cont [14/16] 0.0, 128
      %2304 = vxpose.xlu0.b32.cont [15/16] 0.0, 128
      %2305 = vxpose.xlu0.b32.end [16/16] 0.0, 128
      %v2306 = vpop.trf.xlu0
      %v2307 = vpop.trf.xlu0
      %v2308 = vpop.trf.xlu0
      %v2309 = vpop.trf.xlu0
      %v2310 = vpop.trf.xlu0
      %v2311 = vpop.trf.xlu0
      %v2312 = vpop.trf.xlu0
      %v2313 = vpop.trf.xlu0
      %v2314 = vpop.trf.xlu0
      %v2315 = vpop.trf.xlu0
      %v2316 = vpop.trf.xlu0
      %v2317 = vpop.trf.xlu0
      %v2318 = vpop.trf.xlu0
      %v2319 = vpop.trf.xlu0
      %v2320 = vpop.trf.xlu0
      %v2321 = vpop.trf.xlu0
      %2322 = vxpose.xlu0.b32.start [1/16] %v2213, 128
      %2323 = vxpose.xlu0.b32.cont [2/16] 0.0, 128
      %2324 = vxpose.xlu0.b32.cont [3/16] 0.0, 128
      %2325 = vxpose.xlu0.b32.cont [4/16] 0.0, 128
      %2326 = vxpose.xlu0.b32.cont [5/16] 0.0, 128
      %2327 = vxpose.xlu0.b32.cont [6/16] 0.0, 128
      %2328 = vxpose.xlu0.b32.cont [7/16] 0.0, 128
      %2329 = vxpose.xlu0.b32.cont [8/16] 0.0, 128
      %2330 = vxpose.xlu0.b32.cont [9/16] 0.0, 128
      %2331 = vxpose.xlu0.b32.cont [10/16] 0.0, 128
      %2332 = vxpose.xlu0.b32.cont [11/16] 0.0, 128
      %2333 = vxpose.xlu0.b32.cont [12/16] 0.0, 128
      %2334 = vxpose.xlu0.b32.cont [13/16] 0.0, 128
      %2335 = vxpose.xlu0.b32.cont [14/16] 0.0, 128
      %2336 = vxpose.xlu0.b32.cont [15/16] 0.0, 128
      %2337 = vxpose.xlu0.b32.end [16/16] 0.0, 128
      %v2338 = vpop.trf.xlu0
      %v2339 = vpop.trf.xlu0
      %v2340 = vpop.trf.xlu0
      %v2341 = vpop.trf.xlu0
      %v2342 = vpop.trf.xlu0
      %v2343 = vpop.trf.xlu0
      %v2344 = vpop.trf.xlu0
      %v2345 = vpop.trf.xlu0
      %v2346 = vpop.trf.xlu0
      %v2347 = vpop.trf.xlu0
      %v2348 = vpop.trf.xlu0
      %v2349 = vpop.trf.xlu0
      %v2350 = vpop.trf.xlu0
      %v2351 = vpop.trf.xlu0
      %v2352 = vpop.trf.xlu0
      %v2353 = vpop.trf.xlu0
      %v2354 = vpack.c.bf16 %v2242, %v2242
      %v2355 = vpack.c.bf16 %v2243, %v2243
      %v2356 = vpack.c.bf16 %v2274, %v2274
      %v2357 = vpack.c.bf16 %v2275, %v2275
      %v2358 = vpack.c.bf16 %v2306, %v2306
      %v2359 = vpack.c.bf16 %v2307, %v2307
      %v2360 = vpack.c.bf16 %v2338, %v2338
      %v2361 = vpack.c.bf16 %v2339, %v2339
      %2362 = vxpose.xlu0.b32.start [1/16] %v2188, 128
      %2363 = vxpose.xlu0.b32.cont [2/16] %v2191, 128
      %2364 = vxpose.xlu0.b32.cont [3/16] 0.0, 128
      %2365 = vxpose.xlu0.b32.cont [4/16] 0.0, 128
      %2366 = vxpose.xlu0.b32.cont [5/16] 0.0, 128
      %2367 = vxpose.xlu0.b32.cont [6/16] 0.0, 128
      %2368 = vxpose.xlu0.b32.cont [7/16] 0.0, 128
      %2369 = vxpose.xlu0.b32.cont [8/16] 0.0, 128
      %2370 = vxpose.xlu0.b32.cont [9/16] 0.0, 128
      %2371 = vxpose.xlu0.b32.cont [10/16] 0.0, 128
      %2372 = vxpose.xlu0.b32.cont [11/16] 0.0, 128
      %2373 = vxpose.xlu0.b32.cont [12/16] 0.0, 128
      %2374 = vxpose.xlu0.b32.cont [13/16] 0.0, 128
      %2375 = vxpose.xlu0.b32.cont [14/16] 0.0, 128
      %2376 = vxpose.xlu0.b32.cont [15/16] 0.0, 128
      %2377 = vxpose.xlu0.b32.end [16/16] 0.0, 128
      %v2378 = vpop.trf.xlu0
      %v2379 = vpop.trf.xlu0
      %v2380 = vpop.trf.xlu0
      %v2381 = vpop.trf.xlu0
      %v2382 = vpop.trf.xlu0
      %v2383 = vpop.trf.xlu0
      %v2384 = vpop.trf.xlu0
      %v2385 = vpop.trf.xlu0
      %v2386 = vpop.trf.xlu0
      %v2387 = vpop.trf.xlu0
      %v2388 = vpop.trf.xlu0
      %v2389 = vpop.trf.xlu0
      %v2390 = vpop.trf.xlu0
      %v2391 = vpop.trf.xlu0
      %v2392 = vpop.trf.xlu0
      %v2393 = vpop.trf.xlu0
      %2394 = vxpose.xlu0.b32.start [1/16] %v2378, 128
      %2395 = vxpose.xlu0.b32.cont [2/16] 0.0, 128
      %2396 = vxpose.xlu0.b32.cont [3/16] 0.0, 128
      %2397 = vxpose.xlu0.b32.cont [4/16] 0.0, 128
      %2398 = vxpose.xlu0.b32.cont [5/16] 0.0, 128
      %2399 = vxpose.xlu0.b32.cont [6/16] 0.0, 128
      %2400 = vxpose.xlu0.b32.cont [7/16] 0.0, 128
      %2401 = vxpose.xlu0.b32.cont [8/16] 0.0, 128
      %2402 = vxpose.xlu0.b32.cont [9/16] 0.0, 128
      %2403 = vxpose.xlu0.b32.cont [10/16] 0.0, 128
      %2404 = vxpose.xlu0.b32.cont [11/16] 0.0, 128
      %2405 = vxpose.xlu0.b32.cont [12/16] 0.0, 128
      %2406 = vxpose.xlu0.b32.cont [13/16] 0.0, 128
      %2407 = vxpose.xlu0.b32.cont [14/16] 0.0, 128
      %2408 = vxpose.xlu0.b32.cont [15/16] 0.0, 128
      %2409 = vxpose.xlu0.b32.end [16/16] 0.0, 128
      %v2410 = vpop.trf.xlu0
      %v2411 = vpop.trf.xlu0
      %v2412 = vpop.trf.xlu0
      %v2413 = vpop.trf.xlu0
      %v2414 = vpop.trf.xlu0
      %v2415 = vpop.trf.xlu0
      %v2416 = vpop.trf.xlu0
      %v2417 = vpop.trf.xlu0
      %v2418 = vpop.trf.xlu0
      %v2419 = vpop.trf.xlu0
      %v2420 = vpop.trf.xlu0
      %v2421 = vpop.trf.xlu0
      %v2422 = vpop.trf.xlu0
      %v2423 = vpop.trf.xlu0
      %v2424 = vpop.trf.xlu0
      %v2425 = vpop.trf.xlu0
      %2426 = vxpose.xlu0.b32.start [1/16] %v2379, 128
      %2427 = vxpose.xlu0.b32.cont [2/16] 0.0, 128
      %2428 = vxpose.xlu0.b32.cont [3/16] 0.0, 128
      %2429 = vxpose.xlu0.b32.cont [4/16] 0.0, 128
      %2430 = vxpose.xlu0.b32.cont [5/16] 0.0, 128
      %2431 = vxpose.xlu0.b32.cont [6/16] 0.0, 128
      %2432 = vxpose.xlu0.b32.cont [7/16] 0.0, 128
      %2433 = vxpose.xlu0.b32.cont [8/16] 0.0, 128
      %2434 = vxpose.xlu0.b32.cont [9/16] 0.0, 128
      %2435 = vxpose.xlu0.b32.cont [10/16] 0.0, 128
      %2436 = vxpose.xlu0.b32.cont [11/16] 0.0, 128
      %2437 = vxpose.xlu0.b32.cont [12/16] 0.0, 128
      %2438 = vxpose.xlu0.b32.cont [13/16] 0.0, 128
      %2439 = vxpose.xlu0.b32.cont [14/16] 0.0, 128
      %2440 = vxpose.xlu0.b32.cont [15/16] 0.0, 128
      %2441 = vxpose.xlu0.b32.end [16/16] 0.0, 128
      %v2442 = vpop.trf.xlu0
      %v2443 = vpop.trf.xlu0
      %v2444 = vpop.trf.xlu0
      %v2445 = vpop.trf.xlu0
      %v2446 = vpop.trf.xlu0
      %v2447 = vpop.trf.xlu0
      %v2448 = vpop.trf.xlu0
      %v2449 = vpop.trf.xlu0
      %v2450 = vpop.trf.xlu0
      %v2451 = vpop.trf.xlu0
      %v2452 = vpop.trf.xlu0
      %v2453 = vpop.trf.xlu0
      %v2454 = vpop.trf.xlu0
      %v2455 = vpop.trf.xlu0
      %v2456 = vpop.trf.xlu0
      %v2457 = vpop.trf.xlu0
      %2458 = vxpose.xlu0.b32.start [1/16] %v2380, 128
      %2459 = vxpose.xlu0.b32.cont [2/16] 0.0, 128
      %2460 = vxpose.xlu0.b32.cont [3/16] 0.0, 128
      %2461 = vxpose.xlu0.b32.cont [4/16] 0.0, 128
      %2462 = vxpose.xlu0.b32.cont [5/16] 0.0, 128
      %2463 = vxpose.xlu0.b32.cont [6/16] 0.0, 128
      %2464 = vxpose.xlu0.b32.cont [7/16] 0.0, 128
      %2465 = vxpose.xlu0.b32.cont [8/16] 0.0, 128
      %2466 = vxpose.xlu0.b32.cont [9/16] 0.0, 128
      %2467 = vxpose.xlu0.b32.cont [10/16] 0.0, 128
      %2468 = vxpose.xlu0.b32.cont [11/16] 0.0, 128
      %2469 = vxpose.xlu0.b32.cont [12/16] 0.0, 128
      %2470 = vxpose.xlu0.b32.cont [13/16] 0.0, 128
      %2471 = vxpose.xlu0.b32.cont [14/16] 0.0, 128
      %2472 = vxpose.xlu0.b32.cont [15/16] 0.0, 128
      %2473 = vxpose.xlu0.b32.end [16/16] 0.0, 128
      %v2474 = vpop.trf.xlu0
      %v2475 = vpop.trf.xlu0
      %v2476 = vpop.trf.xlu0
      %v2477 = vpop.trf.xlu0
      %v2478 = vpop.trf.xlu0
      %v2479 = vpop.trf.xlu0
      %v2480 = vpop.trf.xlu0
      %v2481 = vpop.trf.xlu0
      %v2482 = vpop.trf.xlu0
      %v2483 = vpop.trf.xlu0
      %v2484 = vpop.trf.xlu0
      %v2485 = vpop.trf.xlu0
      %v2486 = vpop.trf.xlu0
      %v2487 = vpop.trf.xlu0
      %v2488 = vpop.trf.xlu0
      %v2489 = vpop.trf.xlu0
      %2490 = vxpose.xlu0.b32.start [1/16] %v2381, 128
      %2491 = vxpose.xlu0.b32.cont [2/16] 0.0, 128
      %2492 = vxpose.xlu0.b32.cont [3/16] 0.0, 128
      %2493 = vxpose.xlu0.b32.cont [4/16] 0.0, 128
      %2494 = vxpose.xlu0.b32.cont [5/16] 0.0, 128
      %2495 = vxpose.xlu0.b32.cont [6/16] 0.0, 128
      %2496 = vxpose.xlu0.b32.cont [7/16] 0.0, 128
      %2497 = vxpose.xlu0.b32.cont [8/16] 0.0, 128
      %2498 = vxpose.xlu0.b32.cont [9/16] 0.0, 128
      %2499 = vxpose.xlu0.b32.cont [10/16] 0.0, 128
      %2500 = vxpose.xlu0.b32.cont [11/16] 0.0, 128
      %2501 = vxpose.xlu0.b32.cont [12/16] 0.0, 128
      %2502 = vxpose.xlu0.b32.cont [13/16] 0.0, 128
      %2503 = vxpose.xlu0.b32.cont [14/16] 0.0, 128
      %2504 = vxpose.xlu0.b32.cont [15/16] 0.0, 128
      %2505 = vxpose.xlu0.b32.end [16/16] 0.0, 128
      %v2506 = vpop.trf.xlu0
      %v2507 = vpop.trf.xlu0
      %v2508 = vpop.trf.xlu0
      %v2509 = vpop.trf.xlu0
      %v2510 = vpop.trf.xlu0
      %v2511 = vpop.trf.xlu0
      %v2512 = vpop.trf.xlu0
      %v2513 = vpop.trf.xlu0
      %v2514 = vpop.trf.xlu0
      %v2515 = vpop.trf.xlu0
      %v2516 = vpop.trf.xlu0
      %v2517 = vpop.trf.xlu0
      %v2518 = vpop.trf.xlu0
      %v2519 = vpop.trf.xlu0
      %v2520 = vpop.trf.xlu0
      %v2521 = vpop.trf.xlu0
      %v2522 = vpack.c.bf16 %v2410, %v2410
      %v2523 = vpack.c.bf16 %v2411, %v2411
      %v2524 = vpack.c.bf16 %v2442, %v2442
      %v2525 = vpack.c.bf16 %v2443, %v2443
      %v2526 = vpack.c.bf16 %v2474, %v2474
      %v2527 = vpack.c.bf16 %v2475, %v2475
      %v2528 = vpack.c.bf16 %v2506, %v2506
      %v2529 = vpack.c.bf16 %v2507, %v2507
      %2532 = vrot.lane.b32.xlu0 %v2188, 96
      %v2533 = vpop.permute.xlu0 %2532
      %2534 = vrot.lane.b32.xlu0 %v2191, 96
      %v2535 = vpop.permute.xlu0 %2534
      %2538 = vxpose.xlu0.b32.start [1/16] %v2533, 128
      %2539 = vxpose.xlu0.b32.cont [2/16] %v2535, 128
      %2540 = vxpose.xlu0.b32.cont [3/16] 0.0, 128
      %2541 = vxpose.xlu0.b32.cont [4/16] 0.0, 128
      %2542 = vxpose.xlu0.b32.cont [5/16] 0.0, 128
      %2543 = vxpose.xlu0.b32.cont [6/16] 0.0, 128
      %2544 = vxpose.xlu0.b32.cont [7/16] 0.0, 128
      %2545 = vxpose.xlu0.b32.cont [8/16] 0.0, 128
      %2546 = vxpose.xlu0.b32.cont [9/16] 0.0, 128
      %2547 = vxpose.xlu0.b32.cont [10/16] 0.0, 128
      %2548 = vxpose.xlu0.b32.cont [11/16] 0.0, 128
      %2549 = vxpose.xlu0.b32.cont [12/16] 0.0, 128
      %2550 = vxpose.xlu0.b32.cont [13/16] 0.0, 128
      %2551 = vxpose.xlu0.b32.cont [14/16] 0.0, 128
      %2552 = vxpose.xlu0.b32.cont [15/16] 0.0, 128
      %2553 = vxpose.xlu0.b32.end [16/16] 0.0, 128
      %v2554 = vpop.trf.xlu0
      %v2555 = vpop.trf.xlu0
      %v2556 = vpop.trf.xlu0
      %v2557 = vpop.trf.xlu0
      %v2558 = vpop.trf.xlu0
      %v2559 = vpop.trf.xlu0
      %v2560 = vpop.trf.xlu0
      %v2561 = vpop.trf.xlu0
      %v2562 = vpop.trf.xlu0
      %v2563 = vpop.trf.xlu0
      %v2564 = vpop.trf.xlu0
      %v2565 = vpop.trf.xlu0
      %v2566 = vpop.trf.xlu0
      %v2567 = vpop.trf.xlu0
      %v2568 = vpop.trf.xlu0
      %v2569 = vpop.trf.xlu0
      %2570 = vxpose.xlu0.b32.start [1/16] %v2554, 128
      %2571 = vxpose.xlu0.b32.cont [2/16] 0.0, 128
      %2572 = vxpose.xlu0.b32.cont [3/16] 0.0, 128
      %2573 = vxpose.xlu0.b32.cont [4/16] 0.0, 128
      %2574 = vxpose.xlu0.b32.cont [5/16] 0.0, 128
      %2575 = vxpose.xlu0.b32.cont [6/16] 0.0, 128
      %2576 = vxpose.xlu0.b32.cont [7/16] 0.0, 128
      %2577 = vxpose.xlu0.b32.cont [8/16] 0.0, 128
      %2578 = vxpose.xlu0.b32.cont [9/16] 0.0, 128
      %2579 = vxpose.xlu0.b32.cont [10/16] 0.0, 128
      %2580 = vxpose.xlu0.b32.cont [11/16] 0.0, 128
      %2581 = vxpose.xlu0.b32.cont [12/16] 0.0, 128
      %2582 = vxpose.xlu0.b32.cont [13/16] 0.0, 128
      %2583 = vxpose.xlu0.b32.cont [14/16] 0.0, 128
      %2584 = vxpose.xlu0.b32.cont [15/16] 0.0, 128
      %2585 = vxpose.xlu0.b32.end [16/16] 0.0, 128
      %v2586 = vpop.trf.xlu0
      %v2587 = vpop.trf.xlu0
      %v2588 = vpop.trf.xlu0
      %v2589 = vpop.trf.xlu0
      %v2590 = vpop.trf.xlu0
      %v2591 = vpop.trf.xlu0
      %v2592 = vpop.trf.xlu0
      %v2593 = vpop.trf.xlu0
      %v2594 = vpop.trf.xlu0
      %v2595 = vpop.trf.xlu0
      %v2596 = vpop.trf.xlu0
      %v2597 = vpop.trf.xlu0
      %v2598 = vpop.trf.xlu0
      %v2599 = vpop.trf.xlu0
      %v2600 = vpop.trf.xlu0
      %v2601 = vpop.trf.xlu0
      %2602 = vxpose.xlu0.b32.start [1/16] %v2555, 128
      %2603 = vxpose.xlu0.b32.cont [2/16] 0.0, 128
      %2604 = vxpose.xlu0.b32.cont [3/16] 0.0, 128
      %2605 = vxpose.xlu0.b32.cont [4/16] 0.0, 128
      %2606 = vxpose.xlu0.b32.cont [5/16] 0.0, 128
      %2607 = vxpose.xlu0.b32.cont [6/16] 0.0, 128
      %2608 = vxpose.xlu0.b32.cont [7/16] 0.0, 128
      %2609 = vxpose.xlu0.b32.cont [8/16] 0.0, 128
      %2610 = vxpose.xlu0.b32.cont [9/16] 0.0, 128
      %2611 = vxpose.xlu0.b32.cont [10/16] 0.0, 128
      %2612 = vxpose.xlu0.b32.cont [11/16] 0.0, 128
      %2613 = vxpose.xlu0.b32.cont [12/16] 0.0, 128
      %2614 = vxpose.xlu0.b32.cont [13/16] 0.0, 128
      %2615 = vxpose.xlu0.b32.cont [14/16] 0.0, 128
      %2616 = vxpose.xlu0.b32.cont [15/16] 0.0, 128
      %2617 = vxpose.xlu0.b32.end [16/16] 0.0, 128
      %v2618 = vpop.trf.xlu0
      %v2619 = vpop.trf.xlu0
      %v2620 = vpop.trf.xlu0
      %v2621 = vpop.trf.xlu0
      %v2622 = vpop.trf.xlu0
      %v2623 = vpop.trf.xlu0
      %v2624 = vpop.trf.xlu0
      %v2625 = vpop.trf.xlu0
      %v2626 = vpop.trf.xlu0
      %v2627 = vpop.trf.xlu0
      %v2628 = vpop.trf.xlu0
      %v2629 = vpop.trf.xlu0
      %v2630 = vpop.trf.xlu0
      %v2631 = vpop.trf.xlu0
      %v2632 = vpop.trf.xlu0
      %v2633 = vpop.trf.xlu0
      %2634 = vxpose.xlu0.b32.start [1/16] %v2556, 128
      %2635 = vxpose.xlu0.b32.cont [2/16] 0.0, 128
      %2636 = vxpose.xlu0.b32.cont [3/16] 0.0, 128
      %2637 = vxpose.xlu0.b32.cont [4/16] 0.0, 128
      %2638 = vxpose.xlu0.b32.cont [5/16] 0.0, 128
      %2639 = vxpose.xlu0.b32.cont [6/16] 0.0, 128
      %2640 = vxpose.xlu0.b32.cont [7/16] 0.0, 128
      %2641 = vxpose.xlu0.b32.cont [8/16] 0.0, 128
      %2642 = vxpose.xlu0.b32.cont [9/16] 0.0, 128
      %2643 = vxpose.xlu0.b32.cont [10/16] 0.0, 128
      %2644 = vxpose.xlu0.b32.cont [11/16] 0.0, 128
      %2645 = vxpose.xlu0.b32.cont [12/16] 0.0, 128
      %2646 = vxpose.xlu0.b32.cont [13/16] 0.0, 128
      %2647 = vxpose.xlu0.b32.cont [14/16] 0.0, 128
      %2648 = vxpose.xlu0.b32.cont [15/16] 0.0, 128
      %2649 = vxpose.xlu0.b32.end [16/16] 0.0, 128
      %v2650 = vpop.trf.xlu0
      %v2651 = vpop.trf.xlu0
      %v2652 = vpop.trf.xlu0
      %v2653 = vpop.trf.xlu0
      %v2654 = vpop.trf.xlu0
      %v2655 = vpop.trf.xlu0
      %v2656 = vpop.trf.xlu0
      %v2657 = vpop.trf.xlu0
      %v2658 = vpop.trf.xlu0
      %v2659 = vpop.trf.xlu0
      %v2660 = vpop.trf.xlu0
      %v2661 = vpop.trf.xlu0
      %v2662 = vpop.trf.xlu0
      %v2663 = vpop.trf.xlu0
      %v2664 = vpop.trf.xlu0
      %v2665 = vpop.trf.xlu0
      %2666 = vxpose.xlu0.b32.start [1/16] %v2557, 128
      %2667 = vxpose.xlu0.b32.cont [2/16] 0.0, 128
      %2668 = vxpose.xlu0.b32.cont [3/16] 0.0, 128
      %2669 = vxpose.xlu0.b32.cont [4/16] 0.0, 128
      %2670 = vxpose.xlu0.b32.cont [5/16] 0.0, 128
      %2671 = vxpose.xlu0.b32.cont [6/16] 0.0, 128
      %2672 = vxpose.xlu0.b32.cont [7/16] 0.0, 128
      %2673 = vxpose.xlu0.b32.cont [8/16] 0.0, 128
      %2674 = vxpose.xlu0.b32.cont [9/16] 0.0, 128
      %2675 = vxpose.xlu0.b32.cont [10/16] 0.0, 128
      %2676 = vxpose.xlu0.b32.cont [11/16] 0.0, 128
      %2677 = vxpose.xlu0.b32.cont [12/16] 0.0, 128
      %2678 = vxpose.xlu0.b32.cont [13/16] 0.0, 128
      %2679 = vxpose.xlu0.b32.cont [14/16] 0.0, 128
      %2680 = vxpose.xlu0.b32.cont [15/16] 0.0, 128
      %2681 = vxpose.xlu0.b32.end [16/16] 0.0, 128
      %v2682 = vpop.trf.xlu0
      %v2683 = vpop.trf.xlu0
      %v2684 = vpop.trf.xlu0
      %v2685 = vpop.trf.xlu0
      %v2686 = vpop.trf.xlu0
      %v2687 = vpop.trf.xlu0
      %v2688 = vpop.trf.xlu0
      %v2689 = vpop.trf.xlu0
      %v2690 = vpop.trf.xlu0
      %v2691 = vpop.trf.xlu0
      %v2692 = vpop.trf.xlu0
      %v2693 = vpop.trf.xlu0
      %v2694 = vpop.trf.xlu0
      %v2695 = vpop.trf.xlu0
      %v2696 = vpop.trf.xlu0
      %v2697 = vpop.trf.xlu0
      %v2698 = vpack.c.bf16 %v2586, %v2586
      %v2699 = vpack.c.bf16 %v2587, %v2587
      %v2700 = vpack.c.bf16 %v2618, %v2618
      %v2701 = vpack.c.bf16 %v2619, %v2619
      %v2702 = vpack.c.bf16 %v2650, %v2650
      %v2703 = vpack.c.bf16 %v2651, %v2651
      %v2704 = vpack.c.bf16 %v2682, %v2682
      %v2705 = vpack.c.bf16 %v2683, %v2683
      %v2707 = vsel %vm926, %v2354, 0
      %v2710 = vsel %vm926, %v2522, 0
      %2712 = vmatprep.subr.bf16.mxu0 0
      %2713 = vmatpush1.bf16.xpose.msra.mxu0 %v2710
      %2714 = vmatprep.subr.bf16.mxu0 0
      %2715 = vmatpush1.bf16.xpose.msra.mxu0 0
      %2716 = vmatprep.subr.bf16.mxu0 0
      %2717 = vmatpush1.bf16.xpose.msra.mxu0 0
      %2718 = vmatprep.subr.bf16.mxu0 0
      %2719 = vmatpush1.bf16.xpose.msra.mxu0 0
      %2720 = vmatprep.subr.bf16.mxu0 0
      %2721 = vmatpush1.bf16.xpose.msra.mxu0 0
      %2722 = vmatprep.subr.bf16.mxu0 0
      %2723 = vmatpush1.bf16.xpose.msra.mxu0 0
      %2724 = vmatprep.subr.bf16.mxu0 0
      %2725 = vmatpush1.bf16.xpose.msra.mxu0 0
      %2726 = vmatprep.subr.bf16.mxu0 0
      %2727 = vmatpush1.bf16.xpose.msra.mxu0 0
      %2728 = vmatprep.subr.bf16.mxu0 0
      %2729 = vmatpush1.bf16.xpose.msra.mxu0 0
      %2730 = vmatprep.subr.bf16.mxu0 0
      %2731 = vmatpush1.bf16.xpose.msra.mxu0 0
      %2732 = vmatprep.subr.bf16.mxu0 0
      %2733 = vmatpush1.bf16.xpose.msra.mxu0 0
      %2734 = vmatprep.subr.bf16.mxu0 0
      %2735 = vmatpush1.bf16.xpose.msra.mxu0 0
      %2736 = vmatprep.subr.bf16.mxu0 0
      %2737 = vmatpush1.bf16.xpose.msra.mxu0 0
      %2738 = vmatprep.subr.bf16.mxu0 0
      %2739 = vmatpush1.bf16.xpose.msra.mxu0 0
      %2740 = vmatprep.subr.bf16.mxu0 0
      %2741 = vmatpush1.bf16.xpose.msra.mxu0 0
      %2742 = vmatprep.subr.bf16.mxu0 0
      %2743 = vmatpush1.bf16.xpose.msra.mxu0 0
      %2744 = vmatprep.mubr.bf16.mxu0 0
      %2745 = vmatmul.mubr.bf16.gmra.mrb[0].mxu0 %v2707
      %v2746 = vpop.f32.mrb[0].mxu0
      %v2747 = vadd.f32 0.0, %v2746
      %v2748 = vpop.f32.mrb[0].mxu0
      %v2749 = vpop.f32.mrb[0].mxu0
      %v2750 = vpop.f32.mrb[0].mxu0
      %2751 = vdwg.mxu0
      %v2753 = vsel %vm926, %v2355, 0
      %v2756 = vsel %vm926, %v2523, 0
      %2758 = vmatprep.subr.bf16.mxu0 0
      %2759 = vmatpush1.bf16.xpose.msra.mxu0 %v2756
      %2760 = vmatprep.subr.bf16.mxu0 0
      %2761 = vmatpush1.bf16.xpose.msra.mxu0 0
      %2762 = vmatprep.subr.bf16.mxu0 0
      %2763 = vmatpush1.bf16.xpose.msra.mxu0 0
      %2764 = vmatprep.subr.bf16.mxu0 0
      %2765 = vmatpush1.bf16.xpose.msra.mxu0 0
      %2766 = vmatprep.subr.bf16.mxu0 0
      %2767 = vmatpush1.bf16.xpose.msra.mxu0 0
      %2768 = vmatprep.subr.bf16.mxu0 0
      %2769 = vmatpush1.bf16.xpose.msra.mxu0 0
      %2770 = vmatprep.subr.bf16.mxu0 0
      %2771 = vmatpush1.bf16.xpose.msra.mxu0 0
      %2772 = vmatprep.subr.bf16.mxu0 0
      %2773 = vmatpush1.bf16.xpose.msra.mxu0 0
      %2774 = vmatprep.subr.bf16.mxu0 0
      %2775 = vmatpush1.bf16.xpose.msra.mxu0 0
      %2776 = vmatprep.subr.bf16.mxu0 0
      %2777 = vmatpush1.bf16.xpose.msra.mxu0 0
      %2778 = vmatprep.subr.bf16.mxu0 0
      %2779 = vmatpush1.bf16.xpose.msra.mxu0 0
      %2780 = vmatprep.subr.bf16.mxu0 0
      %2781 = vmatpush1.bf16.xpose.msra.mxu0 0
      %2782 = vmatprep.subr.bf16.mxu0 0
      %2783 = vmatpush1.bf16.xpose.msra.mxu0 0
      %2784 = vmatprep.subr.bf16.mxu0 0
      %2785 = vmatpush1.bf16.xpose.msra.mxu0 0
      %2786 = vmatprep.subr.bf16.mxu0 0
      %2787 = vmatpush1.bf16.xpose.msra.mxu0 0
      %2788 = vmatprep.subr.bf16.mxu0 0
      %2789 = vmatpush1.bf16.xpose.msra.mxu0 0
      %2790 = vmatprep.mubr.bf16.mxu0 0
      %2791 = vmatmul.mubr.bf16.gmra.mrb[0].mxu0 %v2753
      %v2792 = vpop.f32.mrb[0].mxu0
      %v2793 = vadd.f32 0.0, %v2792
      %v2794 = vpop.f32.mrb[0].mxu0
      %v2795 = vpop.f32.mrb[0].mxu0
      %v2796 = vpop.f32.mrb[0].mxu0
      %2797 = vdwg.mxu0
      %v2799 = vsel %vm926, %v2356, 0
      %v2802 = vsel %vm926, %v2524, 0
      %2804 = vmatprep.subr.bf16.mxu0 0
      %2805 = vmatpush1.bf16.xpose.msra.mxu0 %v2802
      %2806 = vmatprep.subr.bf16.mxu0 0
      %2807 = vmatpush1.bf16.xpose.msra.mxu0 0
      %2808 = vmatprep.subr.bf16.mxu0 0
      %2809 = vmatpush1.bf16.xpose.msra.mxu0 0
      %2810 = vmatprep.subr.bf16.mxu0 0
      %2811 = vmatpush1.bf16.xpose.msra.mxu0 0
      %2812 = vmatprep.subr.bf16.mxu0 0
      %2813 = vmatpush1.bf16.xpose.msra.mxu0 0
      %2814 = vmatprep.subr.bf16.mxu0 0
      %2815 = vmatpush1.bf16.xpose.msra.mxu0 0
      %2816 = vmatprep.subr.bf16.mxu0 0
      %2817 = vmatpush1.bf16.xpose.msra.mxu0 0
      %2818 = vmatprep.subr.bf16.mxu0 0
      %2819 = vmatpush1.bf16.xpose.msra.mxu0 0
      %2820 = vmatprep.subr.bf16.mxu0 0
      %2821 = vmatpush1.bf16.xpose.msra.mxu0 0
      %2822 = vmatprep.subr.bf16.mxu0 0
      %2823 = vmatpush1.bf16.xpose.msra.mxu0 0
      %2824 = vmatprep.subr.bf16.mxu0 0
      %2825 = vmatpush1.bf16.xpose.msra.mxu0 0
      %2826 = vmatprep.subr.bf16.mxu0 0
      %2827 = vmatpush1.bf16.xpose.msra.mxu0 0
      %2828 = vmatprep.subr.bf16.mxu0 0
      %2829 = vmatpush1.bf16.xpose.msra.mxu0 0
      %2830 = vmatprep.subr.bf16.mxu0 0
      %2831 = vmatpush1.bf16.xpose.msra.mxu0 0
      %2832 = vmatprep.subr.bf16.mxu0 0
      %2833 = vmatpush1.bf16.xpose.msra.mxu0 0
      %2834 = vmatprep.subr.bf16.mxu0 0
      %2835 = vmatpush1.bf16.xpose.msra.mxu0 0
      %2836 = vmatprep.mubr.bf16.mxu0 0
      %2837 = vmatmul.mubr.bf16.gmra.mrb[0].mxu0 %v2799
      %v2838 = vpop.f32.mrb[0].mxu0
      %v2839 = vadd.f32 0.0, %v2838
      %v2840 = vpop.f32.mrb[0].mxu0
      %v2841 = vpop.f32.mrb[0].mxu0
      %v2842 = vpop.f32.mrb[0].mxu0
      %2843 = vdwg.mxu0
      %v2845 = vsel %vm926, %v2357, 0
      %v2848 = vsel %vm926, %v2525, 0
      %2850 = vmatprep.subr.bf16.mxu0 0
      %2851 = vmatpush1.bf16.xpose.msra.mxu0 %v2848
      %2852 = vmatprep.subr.bf16.mxu0 0
      %2853 = vmatpush1.bf16.xpose.msra.mxu0 0
      %2854 = vmatprep.subr.bf16.mxu0 0
      %2855 = vmatpush1.bf16.xpose.msra.mxu0 0
      %2856 = vmatprep.subr.bf16.mxu0 0
      %2857 = vmatpush1.bf16.xpose.msra.mxu0 0
      %2858 = vmatprep.subr.bf16.mxu0 0
      %2859 = vmatpush1.bf16.xpose.msra.mxu0 0
      %2860 = vmatprep.subr.bf16.mxu0 0
      %2861 = vmatpush1.bf16.xpose.msra.mxu0 0
      %2862 = vmatprep.subr.bf16.mxu0 0
      %2863 = vmatpush1.bf16.xpose.msra.mxu0 0
      %2864 = vmatprep.subr.bf16.mxu0 0
      %2865 = vmatpush1.bf16.xpose.msra.mxu0 0
      %2866 = vmatprep.subr.bf16.mxu0 0
      %2867 = vmatpush1.bf16.xpose.msra.mxu0 0
      %2868 = vmatprep.subr.bf16.mxu0 0
      %2869 = vmatpush1.bf16.xpose.msra.mxu0 0
      %2870 = vmatprep.subr.bf16.mxu0 0
      %2871 = vmatpush1.bf16.xpose.msra.mxu0 0
      %2872 = vmatprep.subr.bf16.mxu0 0
      %2873 = vmatpush1.bf16.xpose.msra.mxu0 0
      %2874 = vmatprep.subr.bf16.mxu0 0
      %2875 = vmatpush1.bf16.xpose.msra.mxu0 0
      %2876 = vmatprep.subr.bf16.mxu0 0
      %2877 = vmatpush1.bf16.xpose.msra.mxu0 0
      %2878 = vmatprep.subr.bf16.mxu0 0
      %2879 = vmatpush1.bf16.xpose.msra.mxu0 0
      %2880 = vmatprep.subr.bf16.mxu0 0
      %2881 = vmatpush1.bf16.xpose.msra.mxu0 0
      %2882 = vmatprep.mubr.bf16.mxu0 0
      %2883 = vmatmul.mubr.bf16.gmra.mrb[0].mxu0 %v2845
      %v2884 = vpop.f32.mrb[0].mxu0
      %v2885 = vadd.f32 0.0, %v2884
      %v2886 = vpop.f32.mrb[0].mxu0
      %v2887 = vpop.f32.mrb[0].mxu0
      %v2888 = vpop.f32.mrb[0].mxu0
      %2889 = vdwg.mxu0
      %v2891 = vsel %vm926, %v2358, 0
      %v2894 = vsel %vm926, %v2526, 0
      %2896 = vmatprep.subr.bf16.mxu0 0
      %2897 = vmatpush1.bf16.xpose.msra.mxu0 %v2894
      %2898 = vmatprep.subr.bf16.mxu0 0
      %2899 = vmatpush1.bf16.xpose.msra.mxu0 0
      %2900 = vmatprep.subr.bf16.mxu0 0
      %2901 = vmatpush1.bf16.xpose.msra.mxu0 0
      %2902 = vmatprep.subr.bf16.mxu0 0
      %2903 = vmatpush1.bf16.xpose.msra.mxu0 0
      %2904 = vmatprep.subr.bf16.mxu0 0
      %2905 = vmatpush1.bf16.xpose.msra.mxu0 0
      %2906 = vmatprep.subr.bf16.mxu0 0
      %2907 = vmatpush1.bf16.xpose.msra.mxu0 0
      %2908 = vmatprep.subr.bf16.mxu0 0
      %2909 = vmatpush1.bf16.xpose.msra.mxu0 0
      %2910 = vmatprep.subr.bf16.mxu0 0
      %2911 = vmatpush1.bf16.xpose.msra.mxu0 0
      %2912 = vmatprep.subr.bf16.mxu0 0
      %2913 = vmatpush1.bf16.xpose.msra.mxu0 0
      %2914 = vmatprep.subr.bf16.mxu0 0
      %2915 = vmatpush1.bf16.xpose.msra.mxu0 0
      %2916 = vmatprep.subr.bf16.mxu0 0
      %2917 = vmatpush1.bf16.xpose.msra.mxu0 0
      %2918 = vmatprep.subr.bf16.mxu0 0
      %2919 = vmatpush1.bf16.xpose.msra.mxu0 0
      %2920 = vmatprep.subr.bf16.mxu0 0
      %2921 = vmatpush1.bf16.xpose.msra.mxu0 0
      %2922 = vmatprep.subr.bf16.mxu0 0
      %2923 = vmatpush1.bf16.xpose.msra.mxu0 0
      %2924 = vmatprep.subr.bf16.mxu0 0
      %2925 = vmatpush1.bf16.xpose.msra.mxu0 0
      %2926 = vmatprep.subr.bf16.mxu0 0
      %2927 = vmatpush1.bf16.xpose.msra.mxu0 0
      %2928 = vmatprep.mubr.bf16.mxu0 0
      %2929 = vmatmul.mubr.bf16.gmra.mrb[0].mxu0 %v2891
      %v2930 = vpop.f32.mrb[0].mxu0
      %v2931 = vadd.f32 0.0, %v2930
      %v2932 = vpop.f32.mrb[0].mxu0
      %v2933 = vpop.f32.mrb[0].mxu0
      %v2934 = vpop.f32.mrb[0].mxu0
      %2935 = vdwg.mxu0
      %v2937 = vsel %vm926, %v2359, 0
      %v2940 = vsel %vm926, %v2527, 0
      %2942 = vmatprep.subr.bf16.mxu0 0
      %2943 = vmatpush1.bf16.xpose.msra.mxu0 %v2940
      %2944 = vmatprep.subr.bf16.mxu0 0
      %2945 = vmatpush1.bf16.xpose.msra.mxu0 0
      %2946 = vmatprep.subr.bf16.mxu0 0
      %2947 = vmatpush1.bf16.xpose.msra.mxu0 0
      %2948 = vmatprep.subr.bf16.mxu0 0
      %2949 = vmatpush1.bf16.xpose.msra.mxu0 0
      %2950 = vmatprep.subr.bf16.mxu0 0
      %2951 = vmatpush1.bf16.xpose.msra.mxu0 0
      %2952 = vmatprep.subr.bf16.mxu0 0
      %2953 = vmatpush1.bf16.xpose.msra.mxu0 0
      %2954 = vmatprep.subr.bf16.mxu0 0
      %2955 = vmatpush1.bf16.xpose.msra.mxu0 0
      %2956 = vmatprep.subr.bf16.mxu0 0
      %2957 = vmatpush1.bf16.xpose.msra.mxu0 0
      %2958 = vmatprep.subr.bf16.mxu0 0
      %2959 = vmatpush1.bf16.xpose.msra.mxu0 0
      %2960 = vmatprep.subr.bf16.mxu0 0
      %2961 = vmatpush1.bf16.xpose.msra.mxu0 0
      %2962 = vmatprep.subr.bf16.mxu0 0
      %2963 = vmatpush1.bf16.xpose.msra.mxu0 0
      %2964 = vmatprep.subr.bf16.mxu0 0
      %2965 = vmatpush1.bf16.xpose.msra.mxu0 0
      %2966 = vmatprep.subr.bf16.mxu0 0
      %2967 = vmatpush1.bf16.xpose.msra.mxu0 0
      %2968 = vmatprep.subr.bf16.mxu0 0
      %2969 = vmatpush1.bf16.xpose.msra.mxu0 0
      %2970 = vmatprep.subr.bf16.mxu0 0
      %2971 = vmatpush1.bf16.xpose.msra.mxu0 0
      %2972 = vmatprep.subr.bf16.mxu0 0
      %2973 = vmatpush1.bf16.xpose.msra.mxu0 0
      %2974 = vmatprep.mubr.bf16.mxu0 0
      %2975 = vmatmul.mubr.bf16.gmra.mrb[0].mxu0 %v2937
      %v2976 = vpop.f32.mrb[0].mxu0
      %v2977 = vadd.f32 0.0, %v2976
      %v2978 = vpop.f32.mrb[0].mxu0
      %v2979 = vpop.f32.mrb[0].mxu0
      %v2980 = vpop.f32.mrb[0].mxu0
      %2981 = vdwg.mxu0
      %v2983 = vsel %vm926, %v2360, 0
      %v2986 = vsel %vm926, %v2528, 0
      %2988 = vmatprep.subr.bf16.mxu0 0
      %2989 = vmatpush1.bf16.xpose.msra.mxu0 %v2986
      %2990 = vmatprep.subr.bf16.mxu0 0
      %2991 = vmatpush1.bf16.xpose.msra.mxu0 0
      %2992 = vmatprep.subr.bf16.mxu0 0
      %2993 = vmatpush1.bf16.xpose.msra.mxu0 0
      %2994 = vmatprep.subr.bf16.mxu0 0
      %2995 = vmatpush1.bf16.xpose.msra.mxu0 0
      %2996 = vmatprep.subr.bf16.mxu0 0
      %2997 = vmatpush1.bf16.xpose.msra.mxu0 0
      %2998 = vmatprep.subr.bf16.mxu0 0
      %2999 = vmatpush1.bf16.xpose.msra.mxu0 0
      %3000 = vmatprep.subr.bf16.mxu0 0
      %3001 = vmatpush1.bf16.xpose.msra.mxu0 0
      %3002 = vmatprep.subr.bf16.mxu0 0
      %3003 = vmatpush1.bf16.xpose.msra.mxu0 0
      %3004 = vmatprep.subr.bf16.mxu0 0
      %3005 = vmatpush1.bf16.xpose.msra.mxu0 0
      %3006 = vmatprep.subr.bf16.mxu0 0
      %3007 = vmatpush1.bf16.xpose.msra.mxu0 0
      %3008 = vmatprep.subr.bf16.mxu0 0
      %3009 = vmatpush1.bf16.xpose.msra.mxu0 0
      %3010 = vmatprep.subr.bf16.mxu0 0
      %3011 = vmatpush1.bf16.xpose.msra.mxu0 0
      %3012 = vmatprep.subr.bf16.mxu0 0
      %3013 = vmatpush1.bf16.xpose.msra.mxu0 0
      %3014 = vmatprep.subr.bf16.mxu0 0
      %3015 = vmatpush1.bf16.xpose.msra.mxu0 0
      %3016 = vmatprep.subr.bf16.mxu0 0
      %3017 = vmatpush1.bf16.xpose.msra.mxu0 0
      %3018 = vmatprep.subr.bf16.mxu0 0
      %3019 = vmatpush1.bf16.xpose.msra.mxu0 0
      %3020 = vmatprep.mubr.bf16.mxu0 0
      %3021 = vmatmul.mubr.bf16.gmra.mrb[0].mxu0 %v2983
      %v3022 = vpop.f32.mrb[0].mxu0
      %v3023 = vadd.f32 0.0, %v3022
      %v3024 = vpop.f32.mrb[0].mxu0
      %v3025 = vpop.f32.mrb[0].mxu0
      %v3026 = vpop.f32.mrb[0].mxu0
      %3027 = vdwg.mxu0
      %v3029 = vsel %vm926, %v2361, 0
      %v3032 = vsel %vm926, %v2529, 0
      %3034 = vmatprep.subr.bf16.mxu0 0
      %3035 = vmatpush1.bf16.xpose.msra.mxu0 %v3032
      %3036 = vmatprep.subr.bf16.mxu0 0
      %3037 = vmatpush1.bf16.xpose.msra.mxu0 0
      %3038 = vmatprep.subr.bf16.mxu0 0
      %3039 = vmatpush1.bf16.xpose.msra.mxu0 0
      %3040 = vmatprep.subr.bf16.mxu0 0
      %3041 = vmatpush1.bf16.xpose.msra.mxu0 0
      %3042 = vmatprep.subr.bf16.mxu0 0
      %3043 = vmatpush1.bf16.xpose.msra.mxu0 0
      %3044 = vmatprep.subr.bf16.mxu0 0
      %3045 = vmatpush1.bf16.xpose.msra.mxu0 0
      %3046 = vmatprep.subr.bf16.mxu0 0
      %3047 = vmatpush1.bf16.xpose.msra.mxu0 0
      %3048 = vmatprep.subr.bf16.mxu0 0
      %3049 = vmatpush1.bf16.xpose.msra.mxu0 0
      %3050 = vmatprep.subr.bf16.mxu0 0
      %3051 = vmatpush1.bf16.xpose.msra.mxu0 0
      %3052 = vmatprep.subr.bf16.mxu0 0
      %3053 = vmatpush1.bf16.xpose.msra.mxu0 0
      %3054 = vmatprep.subr.bf16.mxu0 0
      %3055 = vmatpush1.bf16.xpose.msra.mxu0 0
      %3056 = vmatprep.subr.bf16.mxu0 0
      %3057 = vmatpush1.bf16.xpose.msra.mxu0 0
      %3058 = vmatprep.subr.bf16.mxu0 0
      %3059 = vmatpush1.bf16.xpose.msra.mxu0 0
      %3060 = vmatprep.subr.bf16.mxu0 0
      %3061 = vmatpush1.bf16.xpose.msra.mxu0 0
      %3062 = vmatprep.subr.bf16.mxu0 0
      %3063 = vmatpush1.bf16.xpose.msra.mxu0 0
      %3064 = vmatprep.subr.bf16.mxu0 0
      %3065 = vmatpush1.bf16.xpose.msra.mxu0 0
      %3066 = vmatprep.mubr.bf16.mxu0 0
      %3067 = vmatmul.mubr.bf16.gmra.mrb[0].mxu0 %v3029
      %v3068 = vpop.f32.mrb[0].mxu0
      %v3069 = vadd.f32 0.0, %v3068
      %v3070 = vpop.f32.mrb[0].mxu0
      %v3071 = vpop.f32.mrb[0].mxu0
      %v3072 = vpop.f32.mrb[0].mxu0
      %3073 = vdwg.mxu0
      %v3076 = vlaneseq
      %v3077 = vshrl.u32 %v3076, 7
      %v3078 = vsub.s32 0, %v3077
      %v3079 = vrot.slane %v325, %v3078
      %v3080 = vlaneseq
      %v3081 = vshrl.u32 %v3080, 7
      %v3082 = vsub.s32 0, %v3081
      %v3083 = vrot.slane %v326, %v3082
      %v3086 = vadd.f32 %v2747, %v3079
      %v3087 = vadd.f32 %v2793, %v3083
      %v3088 = vadd.f32 %v2839, %v3079
      %v3089 = vadd.f32 %v2885, %v3083
      %v3090 = vadd.f32 %v2931, %v3079
      %v3091 = vadd.f32 %v2977, %v3083
      %v3092 = vadd.f32 %v3023, %v3079
      %v3093 = vadd.f32 %v3069, %v3083
      %v3094 = vsel %vm926, %v3086, -inf
      %3095 = vmax.xlane.f32.xlu0 %v3094
      %v3096 = vpop.xlane.xlu0 %3095
      %v3097 = vsel %vm926, %v3087, -inf
      %3098 = vmax.xlane.f32.xlu0 %v3097
      %v3099 = vpop.xlane.xlu0 %3098
      %v3100 = vsel %vm926, %v3088, -inf
      %3101 = vmax.xlane.f32.xlu0 %v3100
      %v3102 = vpop.xlane.xlu0 %3101
      %v3103 = vsel %vm926, %v3089, -inf
      %3104 = vmax.xlane.f32.xlu0 %v3103
      %v3105 = vpop.xlane.xlu0 %3104
      %v3106 = vsel %vm926, %v3090, -inf
      %3107 = vmax.xlane.f32.xlu0 %v3106
      %v3108 = vpop.xlane.xlu0 %3107
      %v3109 = vsel %vm926, %v3091, -inf
      %3110 = vmax.xlane.f32.xlu0 %v3109
      %v3111 = vpop.xlane.xlu0 %3110
      %v3112 = vsel %vm926, %v3092, -inf
      %3113 = vmax.xlane.f32.xlu0 %v3112
      %v3114 = vpop.xlane.xlu0 %3113
      %v3115 = vsel %vm926, %v3093, -inf
      %3116 = vmax.xlane.f32.xlu0 %v3115
      %v3117 = vpop.xlane.xlu0 %3116
      %v3118 = vsub.f32 %v3086, %v3096
      %v3119 = vsub.f32 %v3087, %v3099
      %v3120 = vsub.f32 %v3088, %v3102
      %v3121 = vsub.f32 %v3089, %v3105
      %v3122 = vsub.f32 %v3090, %v3108
      %v3123 = vsub.f32 %v3091, %v3111
      %v3124 = vsub.f32 %v3092, %v3114
      %v3125 = vsub.f32 %v3093, %v3117
      %v3126 = vmul.f32 %v3118, 1.442695
      %v3127 = vpow.pop %v3126
      %v3128 = vmul.f32 %v3119, 1.442695
      %v3129 = vpow.pop %v3128
      %v3130 = vmul.f32 %v3120, 1.442695
      %v3131 = vpow.pop %v3130
      %v3132 = vmul.f32 %v3121, 1.442695
      %v3133 = vpow.pop %v3132
      %v3134 = vmul.f32 %v3122, 1.442695
      %v3135 = vpow.pop %v3134
      %v3136 = vmul.f32 %v3123, 1.442695
      %v3137 = vpow.pop %v3136
      %v3138 = vmul.f32 %v3124, 1.442695
      %v3139 = vpow.pop %v3138
      %v3140 = vmul.f32 %v3125, 1.442695
      %v3141 = vpow.pop %v3140
      %v3142 = vsel %vm926, %v3127, 0.0
      %3143 = vadd.xlane.f32.xlu0 %v3142
      %v3144 = vpop.xlane.xlu0 %3143
      %v3145 = vsel %vm926, %v3129, 0.0
      %3146 = vadd.xlane.f32.xlu0 %v3145
      %v3147 = vpop.xlane.xlu0 %3146
      %v3148 = vsel %vm926, %v3131, 0.0
      %3149 = vadd.xlane.f32.xlu0 %v3148
      %v3150 = vpop.xlane.xlu0 %3149
      %v3151 = vsel %vm926, %v3133, 0.0
      %3152 = vadd.xlane.f32.xlu0 %v3151
      %v3153 = vpop.xlane.xlu0 %3152
      %v3154 = vsel %vm926, %v3135, 0.0
      %3155 = vadd.xlane.f32.xlu0 %v3154
      %v3156 = vpop.xlane.xlu0 %3155
      %v3157 = vsel %vm926, %v3137, 0.0
      %3158 = vadd.xlane.f32.xlu0 %v3157
      %v3159 = vpop.xlane.xlu0 %3158
      %v3160 = vsel %vm926, %v3139, 0.0
      %3161 = vadd.xlane.f32.xlu0 %v3160
      %v3162 = vpop.xlane.xlu0 %3161
      %v3163 = vsel %vm926, %v3141, 0.0
      %3164 = vadd.xlane.f32.xlu0 %v3163
      %v3165 = vpop.xlane.xlu0 %3164
      %v3166 = vrcp.pop %v3144
      %v3167 = vrcp.pop %v3147
      %v3168 = vrcp.pop %v3150
      %v3169 = vrcp.pop %v3153
      %v3170 = vrcp.pop %v3156
      %v3171 = vrcp.pop %v3159
      %v3172 = vrcp.pop %v3162
      %v3173 = vrcp.pop %v3165
      %v3174 = vmul.f32 %v3127, %v3166
      %v3175 = vmul.f32 %v3129, %v3167
      %v3176 = vmul.f32 %v3131, %v3168
      %v3177 = vmul.f32 %v3133, %v3169
      %v3178 = vmul.f32 %v3135, %v3170
      %v3179 = vmul.f32 %v3137, %v3171
      %v3180 = vmul.f32 %v3139, %v3172
      %v3181 = vmul.f32 %v3141, %v3173
      %v3182 = vpack.c.bf16 %v3174, %v3174
      %v3183 = vpack.c.bf16 %v3175, %v3175
      %v3184 = vpack.c.bf16 %v3176, %v3176
      %v3185 = vpack.c.bf16 %v3177, %v3177
      %v3186 = vpack.c.bf16 %v3178, %v3178
      %v3187 = vpack.c.bf16 %v3179, %v3179
      %v3188 = vpack.c.bf16 %v3180, %v3180
      %v3189 = vpack.c.bf16 %v3181, %v3181
      %v3191 = vsel %vm926, %v3182, 0
      %v3194 = vsel %vm1402, %v2698, 0
      %3196 = vmatprep.subr.bf16.mxu0 0
      %3197 = vmatpush1.bf16.msra.mxu0 %v3194
      %3198 = vmatprep.subr.bf16.mxu0 0
      %3199 = vmatpush1.bf16.msra.mxu0 0
      %3200 = vmatprep.subr.bf16.mxu0 0
      %3201 = vmatpush1.bf16.msra.mxu0 0
      %3202 = vmatprep.subr.bf16.mxu0 0
      %3203 = vmatpush1.bf16.msra.mxu0 0
      %3204 = vmatprep.subr.bf16.mxu0 0
      %3205 = vmatpush1.bf16.msra.mxu0 0
      %3206 = vmatprep.subr.bf16.mxu0 0
      %3207 = vmatpush1.bf16.msra.mxu0 0
      %3208 = vmatprep.subr.bf16.mxu0 0
      %3209 = vmatpush1.bf16.msra.mxu0 0
      %3210 = vmatprep.subr.bf16.mxu0 0
      %3211 = vmatpush1.bf16.msra.mxu0 0
      %3212 = vmatprep.subr.bf16.mxu0 0
      %3213 = vmatpush1.bf16.msra.mxu0 0
      %3214 = vmatprep.subr.bf16.mxu0 0
      %3215 = vmatpush1.bf16.msra.mxu0 0
      %3216 = vmatprep.subr.bf16.mxu0 0
      %3217 = vmatpush1.bf16.msra.mxu0 0
      %3218 = vmatprep.subr.bf16.mxu0 0
      %3219 = vmatpush1.bf16.msra.mxu0 0
      %3220 = vmatprep.subr.bf16.mxu0 0
      %3221 = vmatpush1.bf16.msra.mxu0 0
      %3222 = vmatprep.subr.bf16.mxu0 0
      %3223 = vmatpush1.bf16.msra.mxu0 0
      %3224 = vmatprep.subr.bf16.mxu0 0
      %3225 = vmatpush1.bf16.msra.mxu0 0
      %3226 = vmatprep.subr.bf16.mxu0 0
      %3227 = vmatpush1.bf16.msra.mxu0 0
      %3228 = vmatprep.mubr.bf16.mxu0 0
      %3229 = vmatmul.mubr.bf16.gmra.mrb[0].mxu0 %v3191
      %v3230 = vpop.f32.mrb[0].mxu0
      %v3231 = vadd.f32 0.0, %v3230
      %v3232 = vpop.f32.mrb[0].mxu0
      %v3233 = vpop.f32.mrb[0].mxu0
      %v3234 = vpop.f32.mrb[0].mxu0
      %3235 = vdwg.mxu0
      %v3237 = vsel %vm926, %v3183, 0
      %v3240 = vsel %vm1402, %v2699, 0
      %3242 = vmatprep.subr.bf16.mxu0 0
      %3243 = vmatpush1.bf16.msra.mxu0 %v3240
      %3244 = vmatprep.subr.bf16.mxu0 0
      %3245 = vmatpush1.bf16.msra.mxu0 0
      %3246 = vmatprep.subr.bf16.mxu0 0
      %3247 = vmatpush1.bf16.msra.mxu0 0
      %3248 = vmatprep.subr.bf16.mxu0 0
      %3249 = vmatpush1.bf16.msra.mxu0 0
      %3250 = vmatprep.subr.bf16.mxu0 0
      %3251 = vmatpush1.bf16.msra.mxu0 0
      %3252 = vmatprep.subr.bf16.mxu0 0
      %3253 = vmatpush1.bf16.msra.mxu0 0
      %3254 = vmatprep.subr.bf16.mxu0 0
      %3255 = vmatpush1.bf16.msra.mxu0 0
      %3256 = vmatprep.subr.bf16.mxu0 0
      %3257 = vmatpush1.bf16.msra.mxu0 0
      %3258 = vmatprep.subr.bf16.mxu0 0
      %3259 = vmatpush1.bf16.msra.mxu0 0
      %3260 = vmatprep.subr.bf16.mxu0 0
      %3261 = vmatpush1.bf16.msra.mxu0 0
      %3262 = vmatprep.subr.bf16.mxu0 0
      %3263 = vmatpush1.bf16.msra.mxu0 0
      %3264 = vmatprep.subr.bf16.mxu0 0
      %3265 = vmatpush1.bf16.msra.mxu0 0
      %3266 = vmatprep.subr.bf16.mxu0 0
      %3267 = vmatpush1.bf16.msra.mxu0 0
      %3268 = vmatprep.subr.bf16.mxu0 0
      %3269 = vmatpush1.bf16.msra.mxu0 0
      %3270 = vmatprep.subr.bf16.mxu0 0
      %3271 = vmatpush1.bf16.msra.mxu0 0
      %3272 = vmatprep.subr.bf16.mxu0 0
      %3273 = vmatpush1.bf16.msra.mxu0 0
      %3274 = vmatprep.mubr.bf16.mxu0 0
      %3275 = vmatmul.mubr.bf16.gmra.mrb[0].mxu0 %v3237
      %v3276 = vpop.f32.mrb[0].mxu0
      %v3277 = vadd.f32 0.0, %v3276
      %v3278 = vpop.f32.mrb[0].mxu0
      %v3279 = vpop.f32.mrb[0].mxu0
      %v3280 = vpop.f32.mrb[0].mxu0
      %3281 = vdwg.mxu0
      %v3283 = vsel %vm926, %v3184, 0
      %v3286 = vsel %vm1402, %v2700, 0
      %3288 = vmatprep.subr.bf16.mxu0 0
      %3289 = vmatpush1.bf16.msra.mxu0 %v3286
      %3290 = vmatprep.subr.bf16.mxu0 0
      %3291 = vmatpush1.bf16.msra.mxu0 0
      %3292 = vmatprep.subr.bf16.mxu0 0
      %3293 = vmatpush1.bf16.msra.mxu0 0
      %3294 = vmatprep.subr.bf16.mxu0 0
      %3295 = vmatpush1.bf16.msra.mxu0 0
      %3296 = vmatprep.subr.bf16.mxu0 0
      %3297 = vmatpush1.bf16.msra.mxu0 0
      %3298 = vmatprep.subr.bf16.mxu0 0
      %3299 = vmatpush1.bf16.msra.mxu0 0
      %3300 = vmatprep.subr.bf16.mxu0 0
      %3301 = vmatpush1.bf16.msra.mxu0 0
      %3302 = vmatprep.subr.bf16.mxu0 0
      %3303 = vmatpush1.bf16.msra.mxu0 0
      %3304 = vmatprep.subr.bf16.mxu0 0
      %3305 = vmatpush1.bf16.msra.mxu0 0
      %3306 = vmatprep.subr.bf16.mxu0 0
      %3307 = vmatpush1.bf16.msra.mxu0 0
      %3308 = vmatprep.subr.bf16.mxu0 0
      %3309 = vmatpush1.bf16.msra.mxu0 0
      %3310 = vmatprep.subr.bf16.mxu0 0
      %3311 = vmatpush1.bf16.msra.mxu0 0
      %3312 = vmatprep.subr.bf16.mxu0 0
      %3313 = vmatpush1.bf16.msra.mxu0 0
      %3314 = vmatprep.subr.bf16.mxu0 0
      %3315 = vmatpush1.bf16.msra.mxu0 0
      %3316 = vmatprep.subr.bf16.mxu0 0
      %3317 = vmatpush1.bf16.msra.mxu0 0
      %3318 = vmatprep.subr.bf16.mxu0 0
      %3319 = vmatpush1.bf16.msra.mxu0 0
      %3320 = vmatprep.mubr.bf16.mxu0 0
      %3321 = vmatmul.mubr.bf16.gmra.mrb[0].mxu0 %v3283
      %v3322 = vpop.f32.mrb[0].mxu0
      %v3323 = vadd.f32 0.0, %v3322
      %v3324 = vpop.f32.mrb[0].mxu0
      %v3325 = vpop.f32.mrb[0].mxu0
      %v3326 = vpop.f32.mrb[0].mxu0
      %3327 = vdwg.mxu0
      %v3329 = vsel %vm926, %v3185, 0
      %v3332 = vsel %vm1402, %v2701, 0
      %3334 = vmatprep.subr.bf16.mxu0 0
      %3335 = vmatpush1.bf16.msra.mxu0 %v3332
      %3336 = vmatprep.subr.bf16.mxu0 0
      %3337 = vmatpush1.bf16.msra.mxu0 0
      %3338 = vmatprep.subr.bf16.mxu0 0
      %3339 = vmatpush1.bf16.msra.mxu0 0
      %3340 = vmatprep.subr.bf16.mxu0 0
      %3341 = vmatpush1.bf16.msra.mxu0 0
      %3342 = vmatprep.subr.bf16.mxu0 0
      %3343 = vmatpush1.bf16.msra.mxu0 0
      %3344 = vmatprep.subr.bf16.mxu0 0
      %3345 = vmatpush1.bf16.msra.mxu0 0
      %3346 = vmatprep.subr.bf16.mxu0 0
      %3347 = vmatpush1.bf16.msra.mxu0 0
      %3348 = vmatprep.subr.bf16.mxu0 0
      %3349 = vmatpush1.bf16.msra.mxu0 0
      %3350 = vmatprep.subr.bf16.mxu0 0
      %3351 = vmatpush1.bf16.msra.mxu0 0
      %3352 = vmatprep.subr.bf16.mxu0 0
      %3353 = vmatpush1.bf16.msra.mxu0 0
      %3354 = vmatprep.subr.bf16.mxu0 0
      %3355 = vmatpush1.bf16.msra.mxu0 0
      %3356 = vmatprep.subr.bf16.mxu0 0
      %3357 = vmatpush1.bf16.msra.mxu0 0
      %3358 = vmatprep.subr.bf16.mxu0 0
      %3359 = vmatpush1.bf16.msra.mxu0 0
      %3360 = vmatprep.subr.bf16.mxu0 0
      %3361 = vmatpush1.bf16.msra.mxu0 0
      %3362 = vmatprep.subr.bf16.mxu0 0
      %3363 = vmatpush1.bf16.msra.mxu0 0
      %3364 = vmatprep.subr.bf16.mxu0 0
      %3365 = vmatpush1.bf16.msra.mxu0 0
      %3366 = vmatprep.mubr.bf16.mxu0 0
      %3367 = vmatmul.mubr.bf16.gmra.mrb[0].mxu0 %v3329
      %v3368 = vpop.f32.mrb[0].mxu0
      %v3369 = vadd.f32 0.0, %v3368
      %v3370 = vpop.f32.mrb[0].mxu0
      %v3371 = vpop.f32.mrb[0].mxu0
      %v3372 = vpop.f32.mrb[0].mxu0
      %3373 = vdwg.mxu0
      %v3375 = vsel %vm926, %v3186, 0
      %v3378 = vsel %vm1402, %v2702, 0
      %3380 = vmatprep.subr.bf16.mxu0 0
      %3381 = vmatpush1.bf16.msra.mxu0 %v3378
      %3382 = vmatprep.subr.bf16.mxu0 0
      %3383 = vmatpush1.bf16.msra.mxu0 0
      %3384 = vmatprep.subr.bf16.mxu0 0
      %3385 = vmatpush1.bf16.msra.mxu0 0
      %3386 = vmatprep.subr.bf16.mxu0 0
      %3387 = vmatpush1.bf16.msra.mxu0 0
      %3388 = vmatprep.subr.bf16.mxu0 0
      %3389 = vmatpush1.bf16.msra.mxu0 0
      %3390 = vmatprep.subr.bf16.mxu0 0
      %3391 = vmatpush1.bf16.msra.mxu0 0
      %3392 = vmatprep.subr.bf16.mxu0 0
      %3393 = vmatpush1.bf16.msra.mxu0 0
      %3394 = vmatprep.subr.bf16.mxu0 0
      %3395 = vmatpush1.bf16.msra.mxu0 0
      %3396 = vmatprep.subr.bf16.mxu0 0
      %3397 = vmatpush1.bf16.msra.mxu0 0
      %3398 = vmatprep.subr.bf16.mxu0 0
      %3399 = vmatpush1.bf16.msra.mxu0 0
      %3400 = vmatprep.subr.bf16.mxu0 0
      %3401 = vmatpush1.bf16.msra.mxu0 0
      %3402 = vmatprep.subr.bf16.mxu0 0
      %3403 = vmatpush1.bf16.msra.mxu0 0
      %3404 = vmatprep.subr.bf16.mxu0 0
      %3405 = vmatpush1.bf16.msra.mxu0 0
      %3406 = vmatprep.subr.bf16.mxu0 0
      %3407 = vmatpush1.bf16.msra.mxu0 0
      %3408 = vmatprep.subr.bf16.mxu0 0
      %3409 = vmatpush1.bf16.msra.mxu0 0
      %3410 = vmatprep.subr.bf16.mxu0 0
      %3411 = vmatpush1.bf16.msra.mxu0 0
      %3412 = vmatprep.mubr.bf16.mxu0 0
      %3413 = vmatmul.mubr.bf16.gmra.mrb[0].mxu0 %v3375
      %v3414 = vpop.f32.mrb[0].mxu0
      %v3415 = vadd.f32 0.0, %v3414
      %v3416 = vpop.f32.mrb[0].mxu0
      %v3417 = vpop.f32.mrb[0].mxu0
      %v3418 = vpop.f32.mrb[0].mxu0
      %3419 = vdwg.mxu0
      %v3421 = vsel %vm926, %v3187, 0
      %v3424 = vsel %vm1402, %v2703, 0
      %3426 = vmatprep.subr.bf16.mxu0 0
      %3427 = vmatpush1.bf16.msra.mxu0 %v3424
      %3428 = vmatprep.subr.bf16.mxu0 0
      %3429 = vmatpush1.bf16.msra.mxu0 0
      %3430 = vmatprep.subr.bf16.mxu0 0
      %3431 = vmatpush1.bf16.msra.mxu0 0
      %3432 = vmatprep.subr.bf16.mxu0 0
      %3433 = vmatpush1.bf16.msra.mxu0 0
      %3434 = vmatprep.subr.bf16.mxu0 0
      %3435 = vmatpush1.bf16.msra.mxu0 0
      %3436 = vmatprep.subr.bf16.mxu0 0
      %3437 = vmatpush1.bf16.msra.mxu0 0
      %3438 = vmatprep.subr.bf16.mxu0 0
      %3439 = vmatpush1.bf16.msra.mxu0 0
      %3440 = vmatprep.subr.bf16.mxu0 0
      %3441 = vmatpush1.bf16.msra.mxu0 0
      %3442 = vmatprep.subr.bf16.mxu0 0
      %3443 = vmatpush1.bf16.msra.mxu0 0
      %3444 = vmatprep.subr.bf16.mxu0 0
      %3445 = vmatpush1.bf16.msra.mxu0 0
      %3446 = vmatprep.subr.bf16.mxu0 0
      %3447 = vmatpush1.bf16.msra.mxu0 0
      %3448 = vmatprep.subr.bf16.mxu0 0
      %3449 = vmatpush1.bf16.msra.mxu0 0
      %3450 = vmatprep.subr.bf16.mxu0 0
      %3451 = vmatpush1.bf16.msra.mxu0 0
      %3452 = vmatprep.subr.bf16.mxu0 0
      %3453 = vmatpush1.bf16.msra.mxu0 0
      %3454 = vmatprep.subr.bf16.mxu0 0
      %3455 = vmatpush1.bf16.msra.mxu0 0
      %3456 = vmatprep.subr.bf16.mxu0 0
      %3457 = vmatpush1.bf16.msra.mxu0 0
      %3458 = vmatprep.mubr.bf16.mxu0 0
      %3459 = vmatmul.mubr.bf16.gmra.mrb[0].mxu0 %v3421
      %v3460 = vpop.f32.mrb[0].mxu0
      %v3461 = vadd.f32 0.0, %v3460
      %v3462 = vpop.f32.mrb[0].mxu0
      %v3463 = vpop.f32.mrb[0].mxu0
      %v3464 = vpop.f32.mrb[0].mxu0
      %3465 = vdwg.mxu0
      %v3467 = vsel %vm926, %v3188, 0
      %v3470 = vsel %vm1402, %v2704, 0
      %3472 = vmatprep.subr.bf16.mxu0 0
      %3473 = vmatpush1.bf16.msra.mxu0 %v3470
      %3474 = vmatprep.subr.bf16.mxu0 0
      %3475 = vmatpush1.bf16.msra.mxu0 0
      %3476 = vmatprep.subr.bf16.mxu0 0
      %3477 = vmatpush1.bf16.msra.mxu0 0
      %3478 = vmatprep.subr.bf16.mxu0 0
      %3479 = vmatpush1.bf16.msra.mxu0 0
      %3480 = vmatprep.subr.bf16.mxu0 0
      %3481 = vmatpush1.bf16.msra.mxu0 0
      %3482 = vmatprep.subr.bf16.mxu0 0
      %3483 = vmatpush1.bf16.msra.mxu0 0
      %3484 = vmatprep.subr.bf16.mxu0 0
      %3485 = vmatpush1.bf16.msra.mxu0 0
      %3486 = vmatprep.subr.bf16.mxu0 0
      %3487 = vmatpush1.bf16.msra.mxu0 0
      %3488 = vmatprep.subr.bf16.mxu0 0
      %3489 = vmatpush1.bf16.msra.mxu0 0
      %3490 = vmatprep.subr.bf16.mxu0 0
      %3491 = vmatpush1.bf16.msra.mxu0 0
      %3492 = vmatprep.subr.bf16.mxu0 0
      %3493 = vmatpush1.bf16.msra.mxu0 0
      %3494 = vmatprep.subr.bf16.mxu0 0
      %3495 = vmatpush1.bf16.msra.mxu0 0
      %3496 = vmatprep.subr.bf16.mxu0 0
      %3497 = vmatpush1.bf16.msra.mxu0 0
      %3498 = vmatprep.subr.bf16.mxu0 0
      %3499 = vmatpush1.bf16.msra.mxu0 0
      %3500 = vmatprep.subr.bf16.mxu0 0
      %3501 = vmatpush1.bf16.msra.mxu0 0
      %3502 = vmatprep.subr.bf16.mxu0 0
      %3503 = vmatpush1.bf16.msra.mxu0 0
      %3504 = vmatprep.mubr.bf16.mxu0 0
      %3505 = vmatmul.mubr.bf16.gmra.mrb[0].mxu0 %v3467
      %v3506 = vpop.f32.mrb[0].mxu0
      %v3507 = vadd.f32 0.0, %v3506
      %v3508 = vpop.f32.mrb[0].mxu0
      %v3509 = vpop.f32.mrb[0].mxu0
      %v3510 = vpop.f32.mrb[0].mxu0
      %3511 = vdwg.mxu0
      %v3513 = vsel %vm926, %v3189, 0
      %v3516 = vsel %vm1402, %v2705, 0
      %3518 = vmatprep.subr.bf16.mxu0 0
      %3519 = vmatpush1.bf16.msra.mxu0 %v3516
      %3520 = vmatprep.subr.bf16.mxu0 0
      %3521 = vmatpush1.bf16.msra.mxu0 0
      %3522 = vmatprep.subr.bf16.mxu0 0
      %3523 = vmatpush1.bf16.msra.mxu0 0
      %3524 = vmatprep.subr.bf16.mxu0 0
      %3525 = vmatpush1.bf16.msra.mxu0 0
      %3526 = vmatprep.subr.bf16.mxu0 0
      %3527 = vmatpush1.bf16.msra.mxu0 0
      %3528 = vmatprep.subr.bf16.mxu0 0
      %3529 = vmatpush1.bf16.msra.mxu0 0
      %3530 = vmatprep.subr.bf16.mxu0 0
      %3531 = vmatpush1.bf16.msra.mxu0 0
      %3532 = vmatprep.subr.bf16.mxu0 0
      %3533 = vmatpush1.bf16.msra.mxu0 0
      %3534 = vmatprep.subr.bf16.mxu0 0
      %3535 = vmatpush1.bf16.msra.mxu0 0
      %3536 = vmatprep.subr.bf16.mxu0 0
      %3537 = vmatpush1.bf16.msra.mxu0 0
      %3538 = vmatprep.subr.bf16.mxu0 0
      %3539 = vmatpush1.bf16.msra.mxu0 0
      %3540 = vmatprep.subr.bf16.mxu0 0
      %3541 = vmatpush1.bf16.msra.mxu0 0
      %3542 = vmatprep.subr.bf16.mxu0 0
      %3543 = vmatpush1.bf16.msra.mxu0 0
      %3544 = vmatprep.subr.bf16.mxu0 0
      %3545 = vmatpush1.bf16.msra.mxu0 0
      %3546 = vmatprep.subr.bf16.mxu0 0
      %3547 = vmatpush1.bf16.msra.mxu0 0
      %3548 = vmatprep.subr.bf16.mxu0 0
      %3549 = vmatpush1.bf16.msra.mxu0 0
      %3550 = vmatprep.mubr.bf16.mxu0 0
      %3551 = vmatmul.mubr.bf16.gmra.mrb[0].mxu0 %v3513
      %v3552 = vpop.f32.mrb[0].mxu0
      %v3553 = vadd.f32 0.0, %v3552
      %v3554 = vpop.f32.mrb[0].mxu0
      %v3555 = vpop.f32.mrb[0].mxu0
      %v3556 = vpop.f32.mrb[0].mxu0
      %3557 = vdwg.mxu0
      %3558 = vxpose.xlu0.b32.start [1/16] %v3231, 128
      %3559 = vxpose.xlu0.b32.cont [2/16] %v3277, 128
      %3560 = vxpose.xlu0.b32.cont [3/16] 0.0, 128
      %3561 = vxpose.xlu0.b32.cont [4/16] 0.0, 128
      %3562 = vxpose.xlu0.b32.cont [5/16] 0.0, 128
      %3563 = vxpose.xlu0.b32.cont [6/16] 0.0, 128
      %3564 = vxpose.xlu0.b32.cont [7/16] 0.0, 128
      %3565 = vxpose.xlu0.b32.cont [8/16] 0.0, 128
      %3566 = vxpose.xlu0.b32.cont [9/16] 0.0, 128
      %3567 = vxpose.xlu0.b32.cont [10/16] 0.0, 128
      %3568 = vxpose.xlu0.b32.cont [11/16] 0.0, 128
      %3569 = vxpose.xlu0.b32.cont [12/16] 0.0, 128
      %3570 = vxpose.xlu0.b32.cont [13/16] 0.0, 128
      %3571 = vxpose.xlu0.b32.cont [14/16] 0.0, 128
      %3572 = vxpose.xlu0.b32.cont [15/16] 0.0, 128
      %3573 = vxpose.xlu0.b32.end [16/16] 0.0, 128
      %v3574 = vpop.trf.xlu0
      %v3575 = vpop.trf.xlu0
      %v3576 = vpop.trf.xlu0
      %v3577 = vpop.trf.xlu0
      %v3578 = vpop.trf.xlu0
      %v3579 = vpop.trf.xlu0
      %v3580 = vpop.trf.xlu0
      %v3581 = vpop.trf.xlu0
      %v3582 = vpop.trf.xlu0
      %v3583 = vpop.trf.xlu0
      %v3584 = vpop.trf.xlu0
      %v3585 = vpop.trf.xlu0
      %v3586 = vpop.trf.xlu0
      %v3587 = vpop.trf.xlu0
      %v3588 = vpop.trf.xlu0
      %v3589 = vpop.trf.xlu0
      %3590 = vxpose.xlu0.b32.start [1/16] %v3323, 128
      %3591 = vxpose.xlu0.b32.cont [2/16] %v3369, 128
      %3592 = vxpose.xlu0.b32.cont [3/16] 0.0, 128
      %3593 = vxpose.xlu0.b32.cont [4/16] 0.0, 128
      %3594 = vxpose.xlu0.b32.cont [5/16] 0.0, 128
      %3595 = vxpose.xlu0.b32.cont [6/16] 0.0, 128
      %3596 = vxpose.xlu0.b32.cont [7/16] 0.0, 128
      %3597 = vxpose.xlu0.b32.cont [8/16] 0.0, 128
      %3598 = vxpose.xlu0.b32.cont [9/16] 0.0, 128
      %3599 = vxpose.xlu0.b32.cont [10/16] 0.0, 128
      %3600 = vxpose.xlu0.b32.cont [11/16] 0.0, 128
      %3601 = vxpose.xlu0.b32.cont [12/16] 0.0, 128
      %3602 = vxpose.xlu0.b32.cont [13/16] 0.0, 128
      %3603 = vxpose.xlu0.b32.cont [14/16] 0.0, 128
      %3604 = vxpose.xlu0.b32.cont [15/16] 0.0, 128
      %3605 = vxpose.xlu0.b32.end [16/16] 0.0, 128
      %v3606 = vpop.trf.xlu0
      %v3607 = vpop.trf.xlu0
      %v3608 = vpop.trf.xlu0
      %v3609 = vpop.trf.xlu0
      %v3610 = vpop.trf.xlu0
      %v3611 = vpop.trf.xlu0
      %v3612 = vpop.trf.xlu0
      %v3613 = vpop.trf.xlu0
      %v3614 = vpop.trf.xlu0
      %v3615 = vpop.trf.xlu0
      %v3616 = vpop.trf.xlu0
      %v3617 = vpop.trf.xlu0
      %v3618 = vpop.trf.xlu0
      %v3619 = vpop.trf.xlu0
      %v3620 = vpop.trf.xlu0
      %v3621 = vpop.trf.xlu0
      %3622 = vxpose.xlu0.b32.start [1/16] %v3415, 128
      %3623 = vxpose.xlu0.b32.cont [2/16] %v3461, 128
      %3624 = vxpose.xlu0.b32.cont [3/16] 0.0, 128
      %3625 = vxpose.xlu0.b32.cont [4/16] 0.0, 128
      %3626 = vxpose.xlu0.b32.cont [5/16] 0.0, 128
      %3627 = vxpose.xlu0.b32.cont [6/16] 0.0, 128
      %3628 = vxpose.xlu0.b32.cont [7/16] 0.0, 128
      %3629 = vxpose.xlu0.b32.cont [8/16] 0.0, 128
      %3630 = vxpose.xlu0.b32.cont [9/16] 0.0, 128
      %3631 = vxpose.xlu0.b32.cont [10/16] 0.0, 128
      %3632 = vxpose.xlu0.b32.cont [11/16] 0.0, 128
      %3633 = vxpose.xlu0.b32.cont [12/16] 0.0, 128
      %3634 = vxpose.xlu0.b32.cont [13/16] 0.0, 128
      %3635 = vxpose.xlu0.b32.cont [14/16] 0.0, 128
      %3636 = vxpose.xlu0.b32.cont [15/16] 0.0, 128
      %3637 = vxpose.xlu0.b32.end [16/16] 0.0, 128
      %v3638 = vpop.trf.xlu0
      %v3639 = vpop.trf.xlu0
      %v3640 = vpop.trf.xlu0
      %v3641 = vpop.trf.xlu0
      %v3642 = vpop.trf.xlu0
      %v3643 = vpop.trf.xlu0
      %v3644 = vpop.trf.xlu0
      %v3645 = vpop.trf.xlu0
      %v3646 = vpop.trf.xlu0
      %v3647 = vpop.trf.xlu0
      %v3648 = vpop.trf.xlu0
      %v3649 = vpop.trf.xlu0
      %v3650 = vpop.trf.xlu0
      %v3651 = vpop.trf.xlu0
      %v3652 = vpop.trf.xlu0
      %v3653 = vpop.trf.xlu0
      %3654 = vxpose.xlu0.b32.start [1/16] %v3507, 128
      %3655 = vxpose.xlu0.b32.cont [2/16] %v3553, 128
      %3656 = vxpose.xlu0.b32.cont [3/16] 0.0, 128
      %3657 = vxpose.xlu0.b32.cont [4/16] 0.0, 128
      %3658 = vxpose.xlu0.b32.cont [5/16] 0.0, 128
      %3659 = vxpose.xlu0.b32.cont [6/16] 0.0, 128
      %3660 = vxpose.xlu0.b32.cont [7/16] 0.0, 128
      %3661 = vxpose.xlu0.b32.cont [8/16] 0.0, 128
      %3662 = vxpose.xlu0.b32.cont [9/16] 0.0, 128
      %3663 = vxpose.xlu0.b32.cont [10/16] 0.0, 128
      %3664 = vxpose.xlu0.b32.cont [11/16] 0.0, 128
      %3665 = vxpose.xlu0.b32.cont [12/16] 0.0, 128
      %3666 = vxpose.xlu0.b32.cont [13/16] 0.0, 128
      %3667 = vxpose.xlu0.b32.cont [14/16] 0.0, 128
      %3668 = vxpose.xlu0.b32.cont [15/16] 0.0, 128
      %3669 = vxpose.xlu0.b32.end [16/16] 0.0, 128
      %v3670 = vpop.trf.xlu0
      %v3671 = vpop.trf.xlu0
      %v3672 = vpop.trf.xlu0
      %v3673 = vpop.trf.xlu0
      %v3674 = vpop.trf.xlu0
      %v3675 = vpop.trf.xlu0
      %v3676 = vpop.trf.xlu0
      %v3677 = vpop.trf.xlu0
      %v3678 = vpop.trf.xlu0
      %v3679 = vpop.trf.xlu0
      %v3680 = vpop.trf.xlu0
      %v3681 = vpop.trf.xlu0
      %v3682 = vpop.trf.xlu0
      %v3683 = vpop.trf.xlu0
      %v3684 = vpop.trf.xlu0
      %v3685 = vpop.trf.xlu0
      %3686 = vxpose.xlu0.b32.start [1/16] %v3574, 128
      %3687 = vxpose.xlu0.b32.cont [2/16] %v3606, 128
      %3688 = vxpose.xlu0.b32.cont [3/16] %v3638, 128
      %3689 = vxpose.xlu0.b32.cont [4/16] %v3670, 128
      %3690 = vxpose.xlu0.b32.cont [5/16] 0.0, 128
      %3691 = vxpose.xlu0.b32.cont [6/16] 0.0, 128
      %3692 = vxpose.xlu0.b32.cont [7/16] 0.0, 128
      %3693 = vxpose.xlu0.b32.cont [8/16] 0.0, 128
      %3694 = vxpose.xlu0.b32.cont [9/16] 0.0, 128
      %3695 = vxpose.xlu0.b32.cont [10/16] 0.0, 128
      %3696 = vxpose.xlu0.b32.cont [11/16] 0.0, 128
      %3697 = vxpose.xlu0.b32.cont [12/16] 0.0, 128
      %3698 = vxpose.xlu0.b32.cont [13/16] 0.0, 128
      %3699 = vxpose.xlu0.b32.cont [14/16] 0.0, 128
      %3700 = vxpose.xlu0.b32.cont [15/16] 0.0, 128
      %3701 = vxpose.xlu0.b32.end [16/16] 0.0, 128
      %v3702 = vpop.trf.xlu0
      %v3703 = vpop.trf.xlu0
      %v3704 = vpop.trf.xlu0
      %v3705 = vpop.trf.xlu0
      %v3706 = vpop.trf.xlu0
      %v3707 = vpop.trf.xlu0
      %v3708 = vpop.trf.xlu0
      %v3709 = vpop.trf.xlu0
      %v3710 = vpop.trf.xlu0
      %v3711 = vpop.trf.xlu0
      %v3712 = vpop.trf.xlu0
      %v3713 = vpop.trf.xlu0
      %v3714 = vpop.trf.xlu0
      %v3715 = vpop.trf.xlu0
      %v3716 = vpop.trf.xlu0
      %v3717 = vpop.trf.xlu0
      %v3718 = vpack.c.bf16 %v3703, %v3702
      %s3719 = smul.addr %s336, 4
      %s3720 = scalar_lea.vmem [#allocation17], %s3719
      %v3721 = vld [vmem:[%s3720] sm:$0xf]
      %v3722 = vld [vmem:[%s3720 + $0x4] sm:$0xf]
      %v3723 = vld [vmem:[%s3720 + $0x8] sm:$0xf]
      %v3724 = vld [vmem:[%s3720 + $0xc] sm:$0xf]
      %s3725 = scalar_lea.vmem [#allocation19], %s328
      %v3726 = vld [vmem:[%s3725] sm:$0x1]
      %v3728 = vlaneseq
      %v3729 = vshrl.u32 %v3728, 7
      %v3730 = vsub.s32 0, %v3729
      %v3731 = vrot.slane %v3726, %v3730
      %v3737 = vunpack.c.l.b16 %v3721
      %v3738 = vunpack.c.l.b16 %v3722
      %v3739 = vunpack.c.l.b16 %v3723
      %v3740 = vunpack.c.l.b16 %v3724
      %v3741 = vpack.c.b16 %v3738, %v3737
      %v3742 = vpack.c.b16 %v3740, %v3739
      %v3746 = vsel %vm363, %v3718, 0
      %3748 = vmatprep.subr.bf16.mxu0 0
      %3749 = vmatpush1.bf16.msra.mxu0 %v3741
      %3750 = vmatprep.subr.bf16.mxu0 0
      %3751 = vmatpush1.bf16.msra.mxu0 %v3742
      %3752 = vmatprep.subr.bf16.mxu0 0
      %3753 = vmatpush1.bf16.msra.mxu0 0
      %3754 = vmatprep.subr.bf16.mxu0 0
      %3755 = vmatpush1.bf16.msra.mxu0 0
      %3756 = vmatprep.subr.bf16.mxu0 0
      %3757 = vmatpush1.bf16.msra.mxu0 0
      %3758 = vmatprep.subr.bf16.mxu0 0
      %3759 = vmatpush1.bf16.msra.mxu0 0
      %3760 = vmatprep.subr.bf16.mxu0 0
      %3761 = vmatpush1.bf16.msra.mxu0 0
      %3762 = vmatprep.subr.bf16.mxu0 0
      %3763 = vmatpush1.bf16.msra.mxu0 0
      %3764 = vmatprep.subr.bf16.mxu0 0
      %3765 = vmatpush1.bf16.msra.mxu0 0
      %3766 = vmatprep.subr.bf16.mxu0 0
      %3767 = vmatpush1.bf16.msra.mxu0 0
      %3768 = vmatprep.subr.bf16.mxu0 0
      %3769 = vmatpush1.bf16.msra.mxu0 0
      %3770 = vmatprep.subr.bf16.mxu0 0
      %3771 = vmatpush1.bf16.msra.mxu0 0
      %3772 = vmatprep.subr.bf16.mxu0 0
      %3773 = vmatpush1.bf16.msra.mxu0 0
      %3774 = vmatprep.subr.bf16.mxu0 0
      %3775 = vmatpush1.bf16.msra.mxu0 0
      %3776 = vmatprep.subr.bf16.mxu0 0
      %3777 = vmatpush1.bf16.msra.mxu0 0
      %3778 = vmatprep.subr.bf16.mxu0 0
      %3779 = vmatpush1.bf16.msra.mxu0 0
      %3780 = vmatprep.mubr.bf16.mxu0 0
      %3781 = vmatmul.mubr.bf16.gmra.mrb[0].mxu0 %v3746
      %v3782 = vpop.f32.mrb[0].mxu0
      %v3783 = vadd.f32 %v3731, %v3782
      %v3784 = vpop.f32.mrb[0].mxu0
      %v3785 = vpop.f32.mrb[0].mxu0
      %v3786 = vadd.f32 %v3731, %v3785
      %v3787 = vpop.f32.mrb[0].mxu0
      %3788 = vdwg.mxu0
      %v3789 = vadd.f32 %v2046, %v3783
      %v3790 = vadd.f32 %v2047, %v3786
      %s3791 = scalar_lea.vmem [#allocation23], %s328
      %v3792 = vld [vmem:[%s3791] sm:$0x1]
      %s3793 = scalar_lea.vmem %s18, %s328
      %v3794 = vld [vmem:[%s3793] sm:$0x1]
      %v3795 = vsel %vm363, %v3789, 0.0
      %3796 = vadd.xlane.f32.xlu0 %v3795
      %v3797 = vpop.xlane.xlu0 %3796
      %v3798 = vsel %vm363, %v3790, 0.0
      %3799 = vadd.xlane.f32.xlu0 %v3798
      %v3800 = vpop.xlane.xlu0 %3799
      %v3801 = vmul.f32 %v3797, %v2011
      %v3802 = vmul.f32 %v3800, %v2011
      %v3803 = vsub.f32 %v3789, %v3801
      %v3804 = vsub.f32 %v3790, %v3802
      %v3805 = vmul.f32 %v3803, %v3803
      %v3806 = vmul.f32 %v3804, %v3804
      %v3807 = vsel %vm363, %v3805, 0.0
      %3808 = vadd.xlane.f32.xlu0 %v3807
      %v3809 = vpop.xlane.xlu0 %3808
      %v3810 = vsel %vm363, %v3806, 0.0
      %3811 = vadd.xlane.f32.xlu0 %v3810
      %v3812 = vpop.xlane.xlu0 %3811
      %v3813 = vmul.f32 %v3809, %v2011
      %v3814 = vmul.f32 %v3812, %v2011
      %v3815 = vadd.f32 %v3813, 1e-05
      %v3816 = vadd.f32 %v3814, 1e-05
      %v3817 = vrsqrt.pop %v3815
      %v3818 = vrsqrt.pop %v3816
      %v3819 = vmul.f32 %v3803, %v3817
      %v3820 = vmul.f32 %v3804, %v3818
      %v3822 = vlaneseq
      %v3823 = vshrl.u32 %v3822, 7
      %v3824 = vsub.s32 0, %v3823
      %v3825 = vrot.slane %v3792, %v3824
      %v3827 = vmul.f32 %v3819, %v3825
      %v3828 = vmul.f32 %v3820, %v3825
      %v3830 = vlaneseq
      %v3831 = vshrl.u32 %v3830, 7
      %v3832 = vsub.s32 0, %v3831
      %v3833 = vrot.slane %v3794, %v3832
      %v3835 = vadd.f32 %v3827, %v3833
      %v3836 = vadd.f32 %v3828, %v3833
      %v3837 = vpack.c.bf16 %v3836, %v3835
      %s3838 = smul.addr %s336, 4
      %s3839 = scalar_lea.vmem [#allocation25], %s3838
      %v3840 = vld [vmem:[%s3839] sm:$0xf]
      %v3841 = vld [vmem:[%s3839 + $0x4] sm:$0xf]
      %v3842 = vld [vmem:[%s3839 + $0x8] sm:$0xf]
      %v3843 = vld [vmem:[%s3839 + $0xc] sm:$0xf]
      %s3844 = scalar_lea.vmem %s22, %s328
      %v3845 = vld [vmem:[%s3844] sm:$0x1]
      %v3847 = vlaneseq
      %v3848 = vshrl.u32 %v3847, 7
      %v3849 = vsub.s32 0, %v3848
      %v3850 = vrot.slane %v3845, %v3849
      %v3856 = vunpack.c.l.b16 %v3840
      %v3857 = vunpack.c.l.b16 %v3841
      %v3858 = vunpack.c.l.b16 %v3842
      %v3859 = vunpack.c.l.b16 %v3843
      %v3860 = vpack.c.b16 %v3857, %v3856
      %v3861 = vpack.c.b16 %v3859, %v3858
      %v3865 = vsel %vm363, %v3837, 0
      %3867 = vmatprep.subr.bf16.mxu0 0
      %3868 = vmatpush1.bf16.msra.mxu0 %v3860
      %3869 = vmatprep.subr.bf16.mxu0 0
      %3870 = vmatpush1.bf16.msra.mxu0 %v3861
      %3871 = vmatprep.subr.bf16.mxu0 0
      %3872 = vmatpush1.bf16.msra.mxu0 0
      %3873 = vmatprep.subr.bf16.mxu0 0
      %3874 = vmatpush1.bf16.msra.mxu0 0
      %3875 = vmatprep.subr.bf16.mxu0 0
      %3876 = vmatpush1.bf16.msra.mxu0 0
      %3877 = vmatprep.subr.bf16.mxu0 0
      %3878 = vmatpush1.bf16.msra.mxu0 0
      %3879 = vmatprep.subr.bf16.mxu0 0
      %3880 = vmatpush1.bf16.msra.mxu0 0
      %3881 = vmatprep.subr.bf16.mxu0 0
      %3882 = vmatpush1.bf16.msra.mxu0 0
      %3883 = vmatprep.subr.bf16.mxu0 0
      %3884 = vmatpush1.bf16.msra.mxu0 0
      %3885 = vmatprep.subr.bf16.mxu0 0
      %3886 = vmatpush1.bf16.msra.mxu0 0
      %3887 = vmatprep.subr.bf16.mxu0 0
      %3888 = vmatpush1.bf16.msra.mxu0 0
      %3889 = vmatprep.subr.bf16.mxu0 0
      %3890 = vmatpush1.bf16.msra.mxu0 0
      %3891 = vmatprep.subr.bf16.mxu0 0
      %3892 = vmatpush1.bf16.msra.mxu0 0
      %3893 = vmatprep.subr.bf16.mxu0 0
      %3894 = vmatpush1.bf16.msra.mxu0 0
      %3895 = vmatprep.subr.bf16.mxu0 0
      %3896 = vmatpush1.bf16.msra.mxu0 0
      %3897 = vmatprep.subr.bf16.mxu0 0
      %3898 = vmatpush1.bf16.msra.mxu0 0
      %3899 = vmatprep.mubr.bf16.mxu0 0
      %3900 = vmatmul.mubr.bf16.gmra.mrb[0].mxu0 %v3865
      %v3901 = vpop.f32.mrb[0].mxu0
      %v3902 = vadd.f32 %v3850, %v3901
      %v3903 = vpop.f32.mrb[0].mxu0
      %v3904 = vpop.f32.mrb[0].mxu0
      %v3905 = vadd.f32 %v3850, %v3904
      %v3906 = vpop.f32.mrb[0].mxu0
      %3907 = vdwg.mxu0
      %v3908 = vmax.f32 %v3902, 0.0
      %v3909 = vmax.f32 %v3905, 0.0
      %v3910 = vpack.c.bf16 %v3909, %v3908
      %s3911 = smul.u32 %s328, 8
      %s3912 = smul.addr %s3911, 4
      %s3913 = scalar_lea.vmem %s23, %s3912
      %v3914 = vld [vmem:[%s3913] sm:$0xf]
      %v3915 = vld [vmem:[%s3913 + $0x4] sm:$0xf]
      %v3916 = vld [vmem:[%s3913 + $0x8] sm:$0xf]
      %v3917 = vld [vmem:[%s3913 + $0xc] sm:$0xf]
      %v3918 = vld [vmem:[%s3913 + $0x10] sm:$0xf]
      %v3919 = vld [vmem:[%s3913 + $0x14] sm:$0xf]
      %v3920 = vld [vmem:[%s3913 + $0x18] sm:$0xf]
      %v3921 = vld [vmem:[%s3913 + $0x1c] sm:$0xf]
      %s3922 = scalar_lea.vmem %s24, %s328
      %v3923 = vld [vmem:[%s3922] sm:$0x1]
      %v3925 = vlaneseq
      %v3926 = vshrl.u32 %v3925, 7
      %v3927 = vsub.s32 0, %v3926
      %v3928 = vrot.slane %v3923, %v3927
      %v3938 = vunpack.c.l.b16 %v3914
      %v3939 = vunpack.c.l.b16 %v3915
      %v3940 = vunpack.c.l.b16 %v3916
      %v3941 = vunpack.c.l.b16 %v3917
      %v3942 = vunpack.c.l.b16 %v3918
      %v3943 = vunpack.c.l.b16 %v3919
      %v3944 = vunpack.c.l.b16 %v3920
      %v3945 = vunpack.c.l.b16 %v3921
      %v3946 = vpack.c.b16 %v3939, %v3938
      %v3947 = vpack.c.b16 %v3941, %v3940
      %v3948 = vpack.c.b16 %v3943, %v3942
      %v3949 = vpack.c.b16 %v3945, %v3944
      %vm3954 = vcmask 523264
      %v3956 = vsel %vm3954, %v3910, 0
      %3958 = vmatprep.subr.bf16.mxu0 0
      %3959 = vmatpush1.bf16.msra.mxu0 %v3946
      %3960 = vmatprep.subr.bf16.mxu0 0
      %3961 = vmatpush1.bf16.msra.mxu0 %v3947
      %3962 = vmatprep.subr.bf16.mxu0 0
      %3963 = vmatpush1.bf16.msra.mxu0 %v3948
      %3964 = vmatprep.subr.bf16.mxu0 0
      %3965 = vmatpush1.bf16.msra.mxu0 %v3949
      %3966 = vmatprep.subr.bf16.mxu0 0
      %3967 = vmatpush1.bf16.msra.mxu0 0
      %3968 = vmatprep.subr.bf16.mxu0 0
      %3969 = vmatpush1.bf16.msra.mxu0 0
      %3970 = vmatprep.subr.bf16.mxu0 0
      %3971 = vmatpush1.bf16.msra.mxu0 0
      %3972 = vmatprep.subr.bf16.mxu0 0
      %3973 = vmatpush1.bf16.msra.mxu0 0
      %3974 = vmatprep.subr.bf16.mxu0 0
      %3975 = vmatpush1.bf16.msra.mxu0 0
      %3976 = vmatprep.subr.bf16.mxu0 0
      %3977 = vmatpush1.bf16.msra.mxu0 0
      %3978 = vmatprep.subr.bf16.mxu0 0
      %3979 = vmatpush1.bf16.msra.mxu0 0
      %3980 = vmatprep.subr.bf16.mxu0 0
      %3981 = vmatpush1.bf16.msra.mxu0 0
      %3982 = vmatprep.subr.bf16.mxu0 0
      %3983 = vmatpush1.bf16.msra.mxu0 0
      %3984 = vmatprep.subr.bf16.mxu0 0
      %3985 = vmatpush1.bf16.msra.mxu0 0
      %3986 = vmatprep.subr.bf16.mxu0 0
      %3987 = vmatpush1.bf16.msra.mxu0 0
      %3988 = vmatprep.subr.bf16.mxu0 0
      %3989 = vmatpush1.bf16.msra.mxu0 0
      %3990 = vmatprep.mubr.bf16.mxu0 0
      %3991 = vmatmul.mubr.bf16.gmra.mrb[0].mxu0 %v3956
      %v3992 = vpop.f32.mrb[0].mxu0
      %v3993 = vadd.f32 %v3928, %v3992
      %v3994 = vpop.f32.mrb[0].mxu0
      %v3995 = vpop.f32.mrb[0].mxu0
      %v3996 = vadd.f32 %v3928, %v3995
      %v3997 = vpop.f32.mrb[0].mxu0
      %3998 = vdwg.mxu0
      %v3999 = vadd.f32 %v3835, %v3993
      %v4000 = vadd.f32 %v3836, %v3996
      %s4001 = scalar_lea.vmem %s19, %s328
      %v4002 = vld [vmem:[%s4001] sm:$0x1]
      %s4003 = scalar_lea.vmem %s20, %s328
      %v4004 = vld [vmem:[%s4003] sm:$0x1]
      %v4005 = vsel %vm363, %v3999, 0.0
      %4006 = vadd.xlane.f32.xlu0 %v4005
      %v4007 = vpop.xlane.xlu0 %4006
      %v4008 = vsel %vm363, %v4000, 0.0
      %4009 = vadd.xlane.f32.xlu0 %v4008
      %v4010 = vpop.xlane.xlu0 %4009
      %v4011 = vmul.f32 %v4007, %v2011
      %v4012 = vmul.f32 %v4010, %v2011
      %v4013 = vsub.f32 %v3999, %v4011
      %v4014 = vsub.f32 %v4000, %v4012
      %v4015 = vmul.f32 %v4013, %v4013
      %v4016 = vmul.f32 %v4014, %v4014
      %v4017 = vsel %vm363, %v4015, 0.0
      %4018 = vadd.xlane.f32.xlu0 %v4017
      %v4019 = vpop.xlane.xlu0 %4018
      %v4020 = vsel %vm363, %v4016, 0.0
      %4021 = vadd.xlane.f32.xlu0 %v4020
      %v4022 = vpop.xlane.xlu0 %4021
      %v4023 = vmul.f32 %v4019, %v2011
      %v4024 = vmul.f32 %v4022, %v2011
      %v4025 = vadd.f32 %v4023, 1e-05
      %v4026 = vadd.f32 %v4024, 1e-05
      %v4027 = vrsqrt.pop %v4025
      %v4028 = vrsqrt.pop %v4026
      %v4029 = vmul.f32 %v4013, %v4027
      %v4030 = vmul.f32 %v4014, %v4028
      %v4032 = vlaneseq
      %v4033 = vshrl.u32 %v4032, 7
      %v4034 = vsub.s32 0, %v4033
      %v4035 = vrot.slane %v4002, %v4034
      %v4037 = vmul.f32 %v4029, %v4035
      %v4038 = vmul.f32 %v4030, %v4035
      %v4040 = vlaneseq
      %v4041 = vshrl.u32 %v4040, 7
      %v4042 = vsub.s32 0, %v4041
      %v4043 = vrot.slane %v4004, %v4042
      %v4045 = vadd.f32 %v4037, %v4043
      %v4046 = vadd.f32 %v4038, %v4043
    $region166: #{tpu_custom_call.1} parent=1 // loop_footer
      %s332 = sadd.s32 1, %s328
    $region167: #{tpu_custom_call.1} parent=1 // loop_footer_branch
      %327 = sbr.rel target = $region163
    $region168: #{tpu_custom_call.1} parent=1 // loop_exit
      _
    %vm4047 = vcmask 261120
    %4048 = vst.msk [vmem:[#allocation26] sm:$0xff] %vm4047, %v333
    %4049 = vst.msk [vmem:[#allocation26 + $0x8] sm:$0xff] %vm4047, %v334
    // Predicated region
    $region169: #{tpu_custom_call.1} parent=1 // pred_check
      _
    $region170: #{tpu_custom_call.1} parent=1 // pred_check_branch
      %4051 = sbr.rel (0) target = $region172
    $region171: #{tpu_custom_call.1} parent=1 // pred_region
      %s4053 = ssub.s32 256, 256
      %4054 = vsyncadd [#allocation4], %s4053
      %s4055 = sshll.u32 [#allocation26], 4
      %s4056 = int_to_ptr.vmem [resolvable:$true] %s4055
      %4061 = dma.vmem_to_hbm [thread:$0]  %s4056, 256, %s25, [#allocation4], 128, 128, 8
    $region172: #{tpu_custom_call.1} parent=1 // pred_fallthru
      _
    // Predicated region
    $region173: #{tpu_custom_call.1} parent=1 // pred_check
      _
    $region174: #{tpu_custom_call.1} parent=1 // pred_check_branch
      %4063 = sbr.rel (0) target = $region176
    $region175: #{tpu_custom_call.1} parent=1 // pred_region
      %4064 = dma.done [#allocation4], 256
    $region176: #{tpu_custom_call.1} parent=1 // pred_fallthru
      _
    %4065 = vsyncpa [#allocation3], 1
    %4066 = vsyncpa [#allocation6], 1
    %4067 = vsyncpa [#allocation9], 1
    %4068 = vsyncpa [#allocation12], 1
    %4069 = vsyncpa [#allocation15], 1
    %4070 = vsyncpa [#allocation18], 1
    %4071 = vsyncpa [#allocation21], 1
    %4072 = vsyncpa [#allocation24], 1
    %4073 = vsyncpa [#allocation4], 1

</llo_original>
